<compile_context>
chip_gen: v7x
topology: tpu7x:2x2x1
jax: 0.10.0
libtpu: 0.0.40
codegen_flags: <defaults>
</compile_context>

<pallas_src>
import jax
import jax.numpy as jnp
from jax import lax
from jax.experimental import pallas as pl
from jax.experimental.pallas import tpu as pltpu


# --------------------------------------------------------------------------
# shared gate math (PyTorch nn.LSTM semantics), f32
# --------------------------------------------------------------------------
def _lstm_gates(gates, c, hidden):
    i = jax.nn.sigmoid(gates[:, 0 * hidden:1 * hidden])
    f = jax.nn.sigmoid(gates[:, 1 * hidden:2 * hidden])
    g = jnp.tanh(gates[:, 2 * hidden:3 * hidden])
    o = jax.nn.sigmoid(gates[:, 3 * hidden:4 * hidden])
    c_new = f * c + i * g
    h_new = o * jnp.tanh(c_new)
    return h_new, c_new


# --------------------------------------------------------------------------
# eval kernel: LSTM -> LayerNorm -> Linear -> (target logit - LSE) -> masked sum
# one grid step = one block of R option rows, full sequence inside.
# --------------------------------------------------------------------------
def _gen_decoder_eval_kernel(emb_ref, tgt_ref, h0_ref,
                             wih0_ref, whh0_ref, b0_ref,
                             w1cat_ref, b1_ref,
                             ln_g_ref, ln_b_ref,
                             wout_ref, bout_ref,
                             out_ref, xg_scr):
    seq, rows, embed = emb_ref.shape
    hidden = h0_ref.shape[-1]
    vocab = wout_ref.shape[-1]
    cdt = wih0_ref.dtype                      # MXU compute dtype (f32 or bf16)

    whh0 = whh0_ref[...]
    w1cat = w1cat_ref[...]
    b1 = b1_ref[...]
    ln_g = ln_g_ref[...]
    ln_b = ln_b_ref[...]
    wout = wout_ref[...]
    bout = bout_ref[...]

    # ---- hoisted layer-0 input->gate matmul: one (seq*rows, E) x (E, 4H) dot
    #      (removes half the MXU work from the serial recurrence) ----
    x_all = emb_ref[...].reshape(seq * rows, embed)
    xg = jnp.dot(x_all, wih0_ref[...],
                 preferred_element_type=jnp.float32) + b0_ref[...]
    xg_scr[...] = xg.reshape(seq, rows, 4 * hidden)

    h0 = h0_ref[...]
    zeros = jnp.zeros((rows, hidden), jnp.float32)
    acc0 = jnp.zeros((rows, 1), jnp.float32)
    vocab_ids = lax.broadcasted_iota(jnp.int32, (rows, vocab), 1)

    def body(t, carry):
        h1, c1, h2, c2, acc = carry
        # layer 0: precomputed input gates + recurrent matmul only
        g1 = xg_scr[t] + jnp.dot(h1.astype(cdt), whh0,
                                 preferred_element_type=jnp.float32)
        h1, c1 = _lstm_gates(g1, c1, hidden)
        # layer 1: fused (h1 | h2) x [W_ih1 ; W_hh1]
        g2 = jnp.dot(jnp.concatenate([h1, h2], axis=-1).astype(cdt), w1cat,
                     preferred_element_type=jnp.float32) + b1
        h2, c2 = _lstm_gates(g2, c2, hidden)
        # LayerNorm over hidden dim (eps = 1e-5, PyTorch default)
        mu = jnp.mean(h2, axis=-1, keepdims=True)
        var = jnp.mean(jnp.square(h2 - mu), axis=-1, keepdims=True)
        y = (h2 - mu) * lax.rsqrt(var + 1e-5) * ln_g + ln_b
        # vocab projection; gather target logit and subtract LSE
        # (full log-softmax tensor is never materialized)
        logits = jnp.dot(y.astype(cdt), wout,
                         preferred_element_type=jnp.float32) + bout
        m = jnp.max(logits, axis=-1, keepdims=True)
        lse = jnp.log(jnp.sum(jnp.exp(logits - m), axis=-1, keepdims=True)) + m
        tgt = tgt_ref[t]                                      # (rows, 1) int32
        tgt_logit = jnp.sum(jnp.where(vocab_ids == tgt, logits, 0.0),
                            axis=-1, keepdims=True)
        mask = (tgt > 0).astype(jnp.float32)                  # padding mask
        acc = acc + (tgt_logit - lse) * mask
        return (h1, c1, h2, c2, acc)

    _, _, _, _, acc = lax.fori_loop(0, seq, body, (h0, zeros, h0, zeros, acc0))
    out_ref[...] = acc


# --------------------------------------------------------------------------
# train kernel: one grid step = (batch block b, timestep t).
# LSTM state lives in VMEM scratch across the (arbitrary) time axis;
# per-step (1, TB, V) logits block is written back by the pipeline.
# --------------------------------------------------------------------------
def _gen_decoder_train_kernel(emb_ref, h0_ref,
                              w0cat_ref, b0_ref,
                              w1cat_ref, b1_ref,
                              wout_ref, bout_ref,
                              out_ref,
                              h1_scr, c1_scr, h2_scr, c2_scr):
    hidden = h0_ref.shape[-1]
    cdt = w0cat_ref.dtype
    t = pl.program_id(1)

    @pl.when(t == 0)
    def _():
        h0 = h0_ref[...]
        h1_scr[...] = h0
        h2_scr[...] = h0
        c1_scr[...] = jnp.zeros_like(c1_scr)
        c2_scr[...] = jnp.zeros_like(c2_scr)

    x = emb_ref[0]                              # (TB, E), compute dtype
    h1 = h1_scr[...]
    c1 = c1_scr[...]
    h2 = h2_scr[...]
    c2 = c2_scr[...]

    # layer 0: fused (x | h1) x [W_ih0 ; W_hh0]
    g1 = jnp.dot(jnp.concatenate([x, h1.astype(cdt)], axis=-1), w0cat_ref[...],
                 preferred_element_type=jnp.float32) + b0_ref[...]
    h1, c1 = _lstm_gates(g1, c1, hidden)
    # layer 1: fused (h1 | h2) x [W_ih1 ; W_hh1]
    g2 = jnp.dot(jnp.concatenate([h1, h2], axis=-1).astype(cdt), w1cat_ref[...],
                 preferred_element_type=jnp.float32) + b1_ref[...]
    h2, c2 = _lstm_gates(g2, c2, hidden)

    h1_scr[...] = h1
    c1_scr[...] = c1
    h2_scr[...] = h2
    c2_scr[...] = c2

    out_ref[0] = (jnp.dot(h2.astype(cdt), wout_ref[...],
                          preferred_element_type=jnp.float32) + bout_ref[...])


# --------------------------------------------------------------------------
# wrappers (glue: embedding gather, weight transposes/fusion, BlockSpecs)
# --------------------------------------------------------------------------
def _pick_block(n, target, mult=8):
    """Largest divisor of n that is <= target and a multiple of `mult`
    (or equal to n itself)."""
    for t in range(min(target, n), 0, -1):
        if n % t == 0 and (t % mult == 0 or t == n):
            return t
    return n


def _prep_weights(params, cdt):
    wih0_t = params['w_ih_l0'].T.astype(cdt)                      # (E, 4H)
    whh0_t = params['w_hh_l0'].T.astype(cdt)                      # (H, 4H)
    w0cat_t = jnp.concatenate([wih0_t, whh0_t], axis=0)           # (E+H, 4H)
    b0 = (params['b_ih_l0'] + params['b_hh_l0'])[None, :].astype(jnp.float32)
    w1cat_t = jnp.concatenate([params['w_ih_l1'].T, params['w_hh_l1'].T],
                              axis=0).astype(cdt)                 # (2H, 4H)
    b1 = (params['b_ih_l1'] + params['b_hh_l1'])[None, :].astype(jnp.float32)
    wout_t = params['w_out'].T.astype(cdt)                        # (H, V)
    bout = params['b_out'][None, :].astype(jnp.float32)
    return wih0_t, whh0_t, w0cat_t, b0, w1cat_t, b1, wout_t, bout


def gen_decoder_eval(opts_in, opts_out, context_vec, params, *,
                     compute_dtype=jnp.float32, block_rows=None,
                     vmem_limit_bytes=48 * 1024 * 1024):
    """Validation/eval branch -> opts_out_scores [BS, NH, NO]."""
    # TODO(synk): test-mode round slicing (opts_in[:, num_rounds-1]) is pure
    # data selection on the batch dict and stays outside the kernel.
    BS, NH, NO, SEQ = opts_in.shape
    H = context_vec.shape[-1]
    Bt = BS * NH * NO
    cdt = compute_dtype

    R = _pick_block(Bt, 256 if block_rows is None else block_rows)

    # Embedding gather directly into the time-major layout (the gather itself
    # produces [SEQ, Bt, E]; no separate HBM transpose pass of the embedded seq).
    idx = opts_in.reshape(Bt, SEQ).T                                  # (SEQ, Bt)
    emb = params['embedding'].astype(cdt)[idx]                        # (SEQ, Bt, E)
    tgt = opts_out.reshape(Bt, SEQ).T[:, :, None].astype(jnp.int32)   # (SEQ, Bt, 1)
    # TODO(synk): h0 is still materialized NO-times in HBM; with option-major
    # row blocking the broadcast could move inside the kernel (minor win).
    h0 = jnp.broadcast_to(context_vec.reshape(BS, NH, 1, H),
                          (BS, NH, NO, H)).reshape(Bt, H).astype(jnp.float32)

    wih0_t, whh0_t, _, b0, w1cat_t, b1, wout_t, bout = _prep_weights(params, cdt)
    ln_g = params['ln_gamma'][None, :].astype(jnp.float32)
    ln_b = params['ln_beta'][None, :].astype(jnp.float32)
    E = emb.shape[-1]

    full = lambda a: pl.BlockSpec(a.shape, lambda b: (0,) * a.ndim)

    scores = pl.pallas_call(
        _gen_decoder_eval_kernel,
        out_shape=jax.ShapeDtypeStruct((Bt, 1), jnp.float32),
        grid_spec=pltpu.PrefetchScalarGridSpec(
            num_scalar_prefetch=0,
            grid=(Bt // R,),
            in_specs=[
                pl.BlockSpec((SEQ, R, E), lambda b: (0, b, 0)),
                pl.BlockSpec((SEQ, R, 1), lambda b: (0, b, 0)),
                pl.BlockSpec((R, H), lambda b: (b, 0)),
                full(wih0_t), full(whh0_t), full(b0),
                full(w1cat_t), full(b1),
                full(ln_g), full(ln_b),
                full(wout_t), full(bout),
            ],
            out_specs=pl.BlockSpec((R, 1), lambda b: (b, 0)),
            scratch_shapes=[pltpu.VMEM((SEQ, R, 4 * H), jnp.float32)],
        ),
        compiler_params=pltpu.CompilerParams(
            dimension_semantics=("parallel",),
            vmem_limit_bytes=vmem_limit_bytes),
    )(emb, tgt, h0, wih0_t, whh0_t, b0, w1cat_t, b1, ln_g, ln_b, wout_t, bout)
    return scores.reshape(BS, NH, NO)


def gen_decoder_train(ans_in, context_vec, params, *,
                      compute_dtype=jnp.float32, block_rows=None,
                      vmem_limit_bytes=48 * 1024 * 1024):
    """Training branch -> ans_out_scores [BS, NH, SEQ, V]."""
    # TODO(synk): nn.LSTM inter-layer dropout is stochastic; it is treated as
    # 0.0 here (inference-equivalent forward), matching eval semantics.
    BS, NH, SEQ = ans_in.shape
    H = context_vec.shape[-1]
    V = params['w_out'].shape[0]
    Bt = BS * NH
    cdt = compute_dtype

    TB = _pick_block(Bt, 256 if block_rows is None else block_rows)

    idx = ans_in.reshape(Bt, SEQ).T                                   # (SEQ, Bt)
    emb = params['embedding'].astype(cdt)[idx]                        # (SEQ, Bt, E)
    h0 = context_vec.reshape(Bt, H).astype(jnp.float32)

    _, _, w0cat_t, b0, w1cat_t, b1, wout_t, bout = _prep_weights(params, cdt)
    E = emb.shape[-1]

    full = lambda a: pl.BlockSpec(a.shape, lambda b, t: (0,) * a.ndim)

    out = pl.pallas_call(
        _gen_decoder_train_kernel,
        out_shape=jax.ShapeDtypeStruct((SEQ, Bt, V), jnp.float32),
        grid_spec=pltpu.PrefetchScalarGridSpec(
            num_scalar_prefetch=0,
            grid=(Bt // TB, SEQ),
            in_specs=[
                pl.BlockSpec((1, TB, E), lambda b, t: (t, b, 0)),
                pl.BlockSpec((TB, H), lambda b, t: (b, 0)),
                full(w0cat_t), full(b0),
                full(w1cat_t), full(b1),
                full(wout_t), full(bout),
            ],
            out_specs=pl.BlockSpec((1, TB, V), lambda b, t: (t, b, 0)),
            scratch_shapes=[pltpu.VMEM((TB, H), jnp.float32),
                            pltpu.VMEM((TB, H), jnp.float32),
                            pltpu.VMEM((TB, H), jnp.float32),
                            pltpu.VMEM((TB, H), jnp.float32)],
        ),
        compiler_params=pltpu.CompilerParams(
            dimension_semantics=("parallel", "arbitrary"),
            vmem_limit_bytes=vmem_limit_bytes),
    )(emb, h0, w0cat_t, b0, w1cat_t, b1, wout_t, bout)
    # back to the PyTorch output layout [BS, NH, SEQ, V]
    return jnp.transpose(out, (1, 0, 2)).reshape(BS, NH, SEQ, V)


# --------------------------------------------------------------------------
# deterministic parameter init (shapes from GenerativeDecoder.__init__)
# --------------------------------------------------------------------------
def init_params(key, vocab, embed, hidden):
    ks = jax.random.split(key, 12)
    n = lambda k, s: (jax.random.normal(k, s, jnp.float32) * 0.1)
    emb_table = n(ks[0], (vocab, embed)).at[0].set(0.0)   # padding_idx=0
    return dict(
        embedding=emb_table,
        w_ih_l0=n(ks[1], (4 * hidden, embed)),
        w_hh_l0=n(ks[2], (4 * hidden, hidden)),
        b_ih_l0=n(ks[3], (4 * hidden,)),
        b_hh_l0=n(ks[4], (4 * hidden,)),
        w_ih_l1=n(ks[5], (4 * hidden, hidden)),
        w_hh_l1=n(ks[6], (4 * hidden, hidden)),
        b_ih_l1=n(ks[7], (4 * hidden,)),
        b_hh_l1=n(ks[8], (4 * hidden,)),
        ln_gamma=jnp.ones((hidden,), jnp.float32),
        ln_beta=jnp.zeros((hidden,), jnp.float32),
        w_out=n(ks[9], (vocab, hidden)),
        b_out=n(ks[10], (vocab,)),
    )


# --------------------------------------------------------------------------
# pure-JAX reference (mirrors the PyTorch forward)
# --------------------------------------------------------------------------
def _ref_cell(x, h, c, wih, whh, bih, bhh):
    g = x @ wih.T + h @ whh.T + bih + bhh
    H = h.shape[-1]
    i, f, gg, o = (g[:, 0:H], g[:, H:2 * H], g[:, 2 * H:3 * H], g[:, 3 * H:4 * H])
    c = jax.nn.sigmoid(f) * c + jax.nn.sigmoid(i) * jnp.tanh(gg)
    h = jax.nn.sigmoid(o) * jnp.tanh(c)
    return h, c


def _ref_lstm(emb_bt_seq_e, h0, p):
    def step(carry, xt):
        h1, c1, h2, c2 = carry
        h1, c1 = _ref_cell(xt, h1, c1, p['w_ih_l0'], p['w_hh_l0'],
                           p['b_ih_l0'], p['b_hh_l0'])
        h2, c2 = _ref_cell(h1, h2, c2, p['w_ih_l1'], p['w_hh_l1'],
                           p['b_ih_l1'], p['b_hh_l1'])
        return (h1, c1, h2, c2), h2
    z = jnp.zeros_like(h0)
    _, ys = lax.scan(step, (h0, z, h0, z), jnp.transpose(emb_bt_seq_e, (1, 0, 2)))
    return jnp.transpose(ys, (1, 0, 2))                               # [Bt, SEQ, H]


def ref_eval(opts_in, opts_out, context_vec, p):
    BS, NH, NO, SEQ = opts_in.shape
    H = context_vec.shape[-1]
    Bt = BS * NH * NO
    emb = p['embedding'][opts_in.reshape(Bt, SEQ)]
    h0 = jnp.broadcast_to(context_vec.reshape(BS, NH, 1, H),
                          (BS, NH, NO, H)).reshape(Bt, H)
    ys = _ref_lstm(emb, h0, p)
    mu = ys.mean(-1, keepdims=True)
    var = ((ys - mu) ** 2).mean(-1, keepdims=True)
    ys = (ys - mu) / jnp.sqrt(var + 1e-5) * p['ln_gamma'] + p['ln_beta']
    logits = ys @ p['w_out'].T + p['b_out']
    logp = jax.nn.log_softmax(logits, axis=-1)
    tgt = opts_out.reshape(Bt, SEQ)
    picked = jnp.take_along_axis(logp, tgt[..., None], axis=-1)[..., 0]
    picked = picked * (tgt > 0).astype(jnp.float32)
    return picked.sum(-1).reshape(BS, NH, NO)


def ref_train(ans_in, context_vec, p):
    BS, NH, SEQ = ans_in.shape
    H = context_vec.shape[-1]
    Bt = BS * NH
    emb = p['embedding'][ans_in.reshape(Bt, SEQ)]
    h0 = context_vec.reshape(Bt, H)
    ys = _ref_lstm(emb, h0, p)
    return (ys @ p['w_out'].T + p['b_out']).reshape(BS, NH, SEQ, -1)


# --------------------------------------------------------------------------
if __name__ == "__main__":
    VOCAB, EMBED, HIDDEN = 256, 128, 128
    BS, NH, NO, SEQ = 2, 16, 4, 8

    key = jax.random.PRNGKey(0)
    k_param, k_opts_in, k_opts_out, k_ans_in, k_ctx = jax.random.split(key, 5)
    params = init_params(k_param, VOCAB, EMBED, HIDDEN)

    opts_in = jax.random.randint(k_opts_in, (BS, NH, NO, SEQ), 1, VOCAB, jnp.int32)
    opts_out = jax.random.randint(k_opts_out, (BS, NH, NO, SEQ), 0, VOCAB, jnp.int32)
    ans_in = jax.random.randint(k_ans_in, (BS, NH, SEQ), 1, VOCAB, jnp.int32)
    context_vec = jax.random.normal(k_ctx, (BS, NH, HIDDEN), jnp.float32)

    # --- f32 path: tight check against the pure-JAX reference -------------
    opts_scores = jax.block_until_ready(
        gen_decoder_eval(opts_in, opts_out, context_vec, params,
                         compute_dtype=jnp.float32, block_rows=32))
    ans_scores = jax.block_until_ready(
        gen_decoder_train(ans_in, context_vec, params,
                          compute_dtype=jnp.float32, block_rows=16))
    assert opts_scores.shape == (BS, NH, NO)
    assert ans_scores.shape == (BS, NH, SEQ, VOCAB)

    ref_opts = ref_eval(opts_in, opts_out, context_vec, params)
    ref_ans = ref_train(ans_in, context_vec, params)
    assert jnp.allclose(opts_scores, ref_opts, rtol=1e-3, atol=1e-3), "eval f32 mismatch"
    assert jnp.allclose(ans_scores, ref_ans, rtol=1e-3, atol=1e-3), "train f32 mismatch"

    # --- bf16 weights/embeddings (f32 accumulation): loose sanity check ---
    opts_bf16 = jax.block_until_ready(
        gen_decoder_eval(opts_in, opts_out, context_vec, params,
                         compute_dtype=jnp.bfloat16, block_rows=32))
    ans_bf16 = jax.block_until_ready(
        gen_decoder_train(ans_in, context_vec, params,
                          compute_dtype=jnp.bfloat16, block_rows=16))
    assert jnp.allclose(opts_bf16, ref_opts, rtol=1e-1, atol=1.0), "eval bf16 mismatch"
    assert jnp.allclose(ans_bf16, ref_ans, rtol=1e-1, atol=1e-1), "train bf16 mismatch"

    print("KERNEL_OK")
</pallas_src>

<mosaic_0001>
module attributes {stable_mosaic.version = 11 : i64} {
  func.func @_gen_decoder_eval_kernel(%arg0: i32, %arg1: memref<8x32x128xf32, #tpu.memory_space<vmem>>, %arg2: memref<8x32x1xi32, #tpu.memory_space<vmem>>, %arg3: memref<32x128xf32, #tpu.memory_space<vmem>>, %arg4: memref<128x512xf32, #tpu.memory_space<vmem>>, %arg5: memref<128x512xf32, #tpu.memory_space<vmem>>, %arg6: memref<1x512xf32, #tpu.memory_space<vmem>>, %arg7: memref<256x512xf32, #tpu.memory_space<vmem>>, %arg8: memref<1x512xf32, #tpu.memory_space<vmem>>, %arg9: memref<1x128xf32, #tpu.memory_space<vmem>>, %arg10: memref<1x128xf32, #tpu.memory_space<vmem>>, %arg11: memref<128x256xf32, #tpu.memory_space<vmem>>, %arg12: memref<1x256xf32, #tpu.memory_space<vmem>>, %arg13: memref<32x1xf32, #tpu.memory_space<vmem>>, %arg14: memref<8x32x512xf32, #tpu.memory_space<vmem>>) attributes {dimension_semantics = [#tpu.dimension_semantics<parallel>], iteration_bounds = array<i64: 4>, scalar_prefetch = 0 : i64, scratch_operands = 1 : i64, tpu.core_type = #tpu.core_type<tc>, window_params = [{transform_indices = @transform_0, window_bounds = array<i64: 8, 32, 128>}, {transform_indices = @transform_1, window_bounds = array<i64: 8, 32, 1>}, {transform_indices = @transform_2, window_bounds = array<i64: 32, 128>}, {pipeline_mode = #tpu.pipeline_mode<synchronous>, transform_indices = @transform_3, window_bounds = array<i64: 128, 512>}, {pipeline_mode = #tpu.pipeline_mode<synchronous>, transform_indices = @transform_4, window_bounds = array<i64: 128, 512>}, {pipeline_mode = #tpu.pipeline_mode<synchronous>, transform_indices = @transform_5, window_bounds = array<i64: 1, 512>}, {pipeline_mode = #tpu.pipeline_mode<synchronous>, transform_indices = @transform_6, window_bounds = array<i64: 256, 512>}, {pipeline_mode = #tpu.pipeline_mode<synchronous>, transform_indices = @transform_7, window_bounds = array<i64: 1, 512>}, {pipeline_mode = #tpu.pipeline_mode<synchronous>, transform_indices = @transform_8, window_bounds = array<i64: 1, 128>}, {pipeline_mode = #tpu.pipeline_mode<synchronous>, transform_indices = @transform_9, window_bounds = array<i64: 1, 128>}, {pipeline_mode = #tpu.pipeline_mode<synchronous>, transform_indices = @transform_10, window_bounds = array<i64: 128, 256>}, {pipeline_mode = #tpu.pipeline_mode<synchronous>, transform_indices = @transform_11, window_bounds = array<i64: 1, 256>}, {transform_indices = @transform_12, window_bounds = array<i64: 32, 1>}]} {
    %c0 = arith.constant 0 : index
    %c0_0 = arith.constant 0 : index
    %0 = vector.load %arg5[%c0, %c0_0] : memref<128x512xf32, #tpu.memory_space<vmem>>, vector<128x512xf32>
    %c0_1 = arith.constant 0 : index
    %c0_2 = arith.constant 0 : index
    %1 = vector.load %arg7[%c0_1, %c0_2] : memref<256x512xf32, #tpu.memory_space<vmem>>, vector<256x512xf32>
    %c0_3 = arith.constant 0 : index
    %c0_4 = arith.constant 0 : index
    %2 = vector.load %arg8[%c0_3, %c0_4] : memref<1x512xf32, #tpu.memory_space<vmem>>, vector<1x512xf32>
    %c0_5 = arith.constant 0 : index
    %c0_6 = arith.constant 0 : index
    %3 = vector.load %arg9[%c0_5, %c0_6] : memref<1x128xf32, #tpu.memory_space<vmem>>, vector<1x128xf32>
    %c0_7 = arith.constant 0 : index
    %c0_8 = arith.constant 0 : index
    %4 = vector.load %arg10[%c0_7, %c0_8] : memref<1x128xf32, #tpu.memory_space<vmem>>, vector<1x128xf32>
    %c0_9 = arith.constant 0 : index
    %c0_10 = arith.constant 0 : index
    %5 = vector.load %arg11[%c0_9, %c0_10] : memref<128x256xf32, #tpu.memory_space<vmem>>, vector<128x256xf32>
    %c0_11 = arith.constant 0 : index
    %c0_12 = arith.constant 0 : index
    %6 = vector.load %arg12[%c0_11, %c0_12] : memref<1x256xf32, #tpu.memory_space<vmem>>, vector<1x256xf32>
    %c0_13 = arith.constant 0 : index
    %c0_14 = arith.constant 0 : index
    %c0_15 = arith.constant 0 : index
    %7 = vector.load %arg1[%c0_13, %c0_14, %c0_15] : memref<8x32x128xf32, #tpu.memory_space<vmem>>, vector<8x32x128xf32>
    %8 = vector.shape_cast %7 : vector<8x32x128xf32> to vector<256x128xf32>
    %c0_16 = arith.constant 0 : index
    %c0_17 = arith.constant 0 : index
    %9 = vector.load %arg4[%c0_16, %c0_17] : memref<128x512xf32, #tpu.memory_space<vmem>>, vector<128x512xf32>
    %cst = arith.constant dense<0.000000e+00> : vector<256x512xf32>
    %10 = tpu.matmul %8, %9, %cst {dimension_numbers = #tpu.dot_dimension_numbers<[1], [0], [0], [1], [0, 0, 1, 1], [], []>} : vector<256x128xf32>, vector<128x512xf32>, vector<256x512xf32> -> vector<256x512xf32>
    %c0_18 = arith.constant 0 : index
    %c0_19 = arith.constant 0 : index
    %11 = vector.load %arg6[%c0_18, %c0_19] : memref<1x512xf32, #tpu.memory_space<vmem>>, vector<1x512xf32>
    %12 = vector.broadcast %11 : vector<1x512xf32> to vector<256x512xf32>
    %13 = arith.addf %10, %12 : vector<256x512xf32>
    %14 = vector.shape_cast %13 : vector<256x512xf32> to vector<8x32x512xf32>
    %c0_20 = arith.constant 0 : index
    %c0_21 = arith.constant 0 : index
    %c0_22 = arith.constant 0 : index
    %15 = vector.load %arg14[%c0_20, %c0_21, %c0_22] : memref<8x32x512xf32, #tpu.memory_space<vmem>>, vector<8x32x512xf32>
    tpu.vector_store %arg14[%c0_20, %c0_21, %c0_22], %14 {strides = array<i32>} : memref<8x32x512xf32, #tpu.memory_space<vmem>>, vector<8x32x512xf32>,
    %c0_23 = arith.constant 0 : index
    %c0_24 = arith.constant 0 : index
    %16 = vector.load %arg3[%c0_23, %c0_24] : memref<32x128xf32, #tpu.memory_space<vmem>>, vector<32x128xf32>
    %cst_25 = arith.constant 0.000000e+00 : f32
    %17 = vector.broadcast %cst_25 : f32 to vector<32x128xf32>
    %cst_26 = arith.constant 0.000000e+00 : f32
    %18 = vector.broadcast %cst_26 : f32 to vector<32x1xf32>
    %19 = tpu.iota {dimensions = array<i32: 1>} : vector<32x256xi32>
    %c0_i32 = arith.constant 0 : i32
    %c8_i32 = arith.constant 8 : i32
    %20 = arith.addi %c0_i32, %c8_i32 : i32
    %c1_i32 = arith.constant 1 : i32
    %21:5 = scf.for %arg15 = %c0_i32 to %20 step %c1_i32 iter_args(%arg16 = %16, %arg17 = %17, %arg18 = %16, %arg19 = %17, %arg20 = %18) -> (vector<32x128xf32>, vector<32x128xf32>, vector<32x128xf32>, vector<32x128xf32>, vector<32x1xf32>)  : i32 {
      %23 = arith.index_cast %arg15 : i32 to index
      %c0_30 = arith.constant 0 : index
      %c0_31 = arith.constant 0 : index
      %24 = vector.load %arg14[%23, %c0_30, %c0_31] : memref<8x32x512xf32, #tpu.memory_space<vmem>>, vector<1x32x512xf32>
      %25 = vector.shape_cast %24 : vector<1x32x512xf32> to vector<32x512xf32>
      %cst_32 = arith.constant dense<0.000000e+00> : vector<32x512xf32>
      %26 = tpu.matmul %arg16, %0, %cst_32 {dimension_numbers = #tpu.dot_dimension_numbers<[1], [0], [0], [1], [0, 0, 1, 1], [], []>} : vector<32x128xf32>, vector<128x512xf32>, vector<32x512xf32> -> vector<32x512xf32>
      %27 = arith.addf %25, %26 : vector<32x512xf32>
      %28 = vector.extract_strided_slice %27 {offsets = [0, 0], sizes = [32, 128], strides = [1, 1]} : vector<32x512xf32> to vector<32x128xf32>
      %29 = arith.negf %28 : vector<32x128xf32>
      %30 = math.exp %29 : vector<32x128xf32>
      %cst_33 = arith.constant 1.000000e+00 : f32
      %31 = vector.broadcast %cst_33 : f32 to vector<32x128xf32>
      %32 = arith.addf %31, %30 : vector<32x128xf32>
      %33 = arith.divf %31, %32 : vector<32x128xf32>
      %34 = vector.extract_strided_slice %27 {offsets = [0, 128], sizes = [32, 128], strides = [1, 1]} : vector<32x512xf32> to vector<32x128xf32>
      %35 = arith.negf %34 : vector<32x128xf32>
      %36 = math.exp %35 : vector<32x128xf32>
      %cst_34 = arith.constant 1.000000e+00 : f32
      %37 = vector.broadcast %cst_34 : f32 to vector<32x128xf32>
      %38 = arith.addf %37, %36 : vector<32x128xf32>
      %39 = arith.divf %37, %38 : vector<32x128xf32>
      %40 = vector.extract_strided_slice %27 {offsets = [0, 256], sizes = [32, 128], strides = [1, 1]} : vector<32x512xf32> to vector<32x128xf32>
      %41 = math.tanh %40 : vector<32x128xf32>
      %42 = vector.extract_strided_slice %27 {offsets = [0, 384], sizes = [32, 128], strides = [1, 1]} : vector<32x512xf32> to vector<32x128xf32>
      %43 = arith.negf %42 : vector<32x128xf32>
      %44 = math.exp %43 : vector<32x128xf32>
      %cst_35 = arith.constant 1.000000e+00 : f32
      %45 = vector.broadcast %cst_35 : f32 to vector<32x128xf32>
      %46 = arith.addf %45, %44 : vector<32x128xf32>
      %47 = arith.divf %45, %46 : vector<32x128xf32>
      %48 = arith.mulf %39, %arg17 : vector<32x128xf32>
      %49 = arith.mulf %33, %41 : vector<32x128xf32>
      %50 = arith.addf %48, %49 : vector<32x128xf32>
      %51 = math.tanh %50 : vector<32x128xf32>
      %52 = arith.mulf %47, %51 : vector<32x128xf32>
      %53 = tpu.concatenate %52, %arg18 in 1 : vector<32x128xf32>, vector<32x128xf32> -> vector<32x256xf32>
      %cst_36 = arith.constant dense<0.000000e+00> : vector<32x512xf32>
      %54 = tpu.matmul %53, %1, %cst_36 {dimension_numbers = #tpu.dot_dimension_numbers<[1], [0], [0], [1], [0, 0, 1, 1], [], []>} : vector<32x256xf32>, vector<256x512xf32>, vector<32x512xf32> -> vector<32x512xf32>
      %55 = vector.broadcast %2 : vector<1x512xf32> to vector<32x512xf32>
      %56 = arith.addf %54, %55 : vector<32x512xf32>
      %57 = vector.extract_strided_slice %56 {offsets = [0, 0], sizes = [32, 128], strides = [1, 1]} : vector<32x512xf32> to vector<32x128xf32>
      %58 = arith.negf %57 : vector<32x128xf32>
      %59 = math.exp %58 : vector<32x128xf32>
      %cst_37 = arith.constant 1.000000e+00 : f32
      %60 = vector.broadcast %cst_37 : f32 to vector<32x128xf32>
      %61 = arith.addf %60, %59 : vector<32x128xf32>
      %62 = arith.divf %60, %61 : vector<32x128xf32>
      %63 = vector.extract_strided_slice %56 {offsets = [0, 128], sizes = [32, 128], strides = [1, 1]} : vector<32x512xf32> to vector<32x128xf32>
      %64 = arith.negf %63 : vector<32x128xf32>
      %65 = math.exp %64 : vector<32x128xf32>
      %cst_38 = arith.constant 1.000000e+00 : f32
      %66 = vector.broadcast %cst_38 : f32 to vector<32x128xf32>
      %67 = arith.addf %66, %65 : vector<32x128xf32>
      %68 = arith.divf %66, %67 : vector<32x128xf32>
      %69 = vector.extract_strided_slice %56 {offsets = [0, 256], sizes = [32, 128], strides = [1, 1]} : vector<32x512xf32> to vector<32x128xf32>
      %70 = math.tanh %69 : vector<32x128xf32>
      %71 = vector.extract_strided_slice %56 {offsets = [0, 384], sizes = [32, 128], strides = [1, 1]} : vector<32x512xf32> to vector<32x128xf32>
      %72 = arith.negf %71 : vector<32x128xf32>
      %73 = math.exp %72 : vector<32x128xf32>
      %cst_39 = arith.constant 1.000000e+00 : f32
      %74 = vector.broadcast %cst_39 : f32 to vector<32x128xf32>
      %75 = arith.addf %74, %73 : vector<32x128xf32>
      %76 = arith.divf %74, %75 : vector<32x128xf32>
      %77 = arith.mulf %68, %arg19 : vector<32x128xf32>
      %78 = arith.mulf %62, %70 : vector<32x128xf32>
      %79 = arith.addf %77, %78 : vector<32x128xf32>
      %80 = math.tanh %79 : vector<32x128xf32>
      %81 = arith.mulf %76, %80 : vector<32x128xf32>
      %cst_40 = arith.constant dense<0.000000e+00> : vector<32xf32>
      %82 = vector.multi_reduction <add>, %81, %cst_40 [1] : vector<32x128xf32> to vector<32xf32>
      %83 = vector.shape_cast %82 : vector<32xf32> to vector<32x1xf32>
      %cst_41 = arith.constant 1.280000e+02 : f32
      %84 = vector.broadcast %cst_41 : f32 to vector<32x1xf32>
      %85 = arith.divf %83, %84 : vector<32x1xf32>
      %86 = vector.broadcast %85 : vector<32x1xf32> to vector<32x128xf32>
      %87 = arith.subf %81, %86 : vector<32x128xf32>
      %88 = arith.mulf %87, %87 : vector<32x128xf32>
      %cst_42 = arith.constant dense<0.000000e+00> : vector<32xf32>
      %89 = vector.multi_reduction <add>, %88, %cst_42 [1] : vector<32x128xf32> to vector<32xf32>
      %90 = vector.shape_cast %89 : vector<32xf32> to vector<32x1xf32>
      %cst_43 = arith.constant 1.280000e+02 : f32
      %91 = vector.broadcast %cst_43 : f32 to vector<32x1xf32>
      %92 = arith.divf %90, %91 : vector<32x1xf32>
      %93 = vector.broadcast %85 : vector<32x1xf32> to vector<32x128xf32>
      %94 = arith.subf %81, %93 : vector<32x128xf32>
      %cst_44 = arith.constant 9.99999974E-6 : f32
      %95 = vector.broadcast %cst_44 : f32 to vector<32x1xf32>
      %96 = arith.addf %92, %95 : vector<32x1xf32>
      %97 = math.rsqrt %96 : vector<32x1xf32>
      %98 = vector.broadcast %97 : vector<32x1xf32> to vector<32x128xf32>
      %99 = arith.mulf %94, %98 : vector<32x128xf32>
      %100 = vector.broadcast %3 : vector<1x128xf32> to vector<32x128xf32>
      %101 = arith.mulf %99, %100 : vector<32x128xf32>
      %102 = vector.broadcast %4 : vector<1x128xf32> to vector<32x128xf32>
      %103 = arith.addf %101, %102 : vector<32x128xf32>
      %cst_45 = arith.constant dense<0.000000e+00> : vector<32x256xf32>
      %104 = tpu.matmul %103, %5, %cst_45 {dimension_numbers = #tpu.dot_dimension_numbers<[1], [0], [0], [1], [0, 0, 1, 1], [], []>} : vector<32x128xf32>, vector<128x256xf32>, vector<32x256xf32> -> vector<32x256xf32>
      %105 = vector.broadcast %6 : vector<1x256xf32> to vector<32x256xf32>
      %106 = arith.addf %104, %105 : vector<32x256xf32>
      %cst_46 = arith.constant dense<0xFF800000> : vector<32xf32>
      %107 = vector.multi_reduction <maximumf>, %106, %cst_46 [1] : vector<32x256xf32> to vector<32xf32>
      %108 = vector.shape_cast %107 : vector<32xf32> to vector<32x1xf32>
      %109 = vector.broadcast %108 : vector<32x1xf32> to vector<32x256xf32>
      %110 = arith.subf %106, %109 : vector<32x256xf32>
      %111 = math.exp %110 : vector<32x256xf32>
      %cst_47 = arith.constant dense<0.000000e+00> : vector<32xf32>
      %112 = vector.multi_reduction <add>, %111, %cst_47 [1] : vector<32x256xf32> to vector<32xf32>
      %113 = vector.shape_cast %112 : vector<32xf32> to vector<32x1xf32>
      %114 = math.log %113 : vector<32x1xf32>
      %115 = arith.addf %114, %108 : vector<32x1xf32>
      %116 = arith.index_cast %arg15 : i32 to index
      %c0_48 = arith.constant 0 : index
      %c0_49 = arith.constant 0 : index
      %117 = vector.load %arg2[%116, %c0_48, %c0_49] : memref<8x32x1xi32, #tpu.memory_space<vmem>>, vector<1x32x1xi32>
      %118 = vector.shape_cast %117 : vector<1x32x1xi32> to vector<32x1xi32>
      %119 = vector.broadcast %118 : vector<32x1xi32> to vector<32x256xi32>
      %120 = arith.cmpi eq, %19, %119 : vector<32x256xi32>
      %cst_50 = arith.constant 0.000000e+00 : f32
      %121 = vector.broadcast %cst_50 : f32 to vector<32x256xf32>
      %122 = arith.select %120, %106, %121 : vector<32x256xi1>, vector<32x256xf32>
      %cst_51 = arith.constant dense<0.000000e+00> : vector<32xf32>
      %123 = vector.multi_reduction <add>, %122, %cst_51 [1] : vector<32x256xf32> to vector<32xf32>
      %124 = vector.shape_cast %123 : vector<32xf32> to vector<32x1xf32>
      %c0_i32_52 = arith.constant 0 : i32
      %125 = vector.broadcast %c0_i32_52 : i32 to vector<32x1xi32>
      %126 = arith.cmpi sgt, %118, %125 : vector<32x1xi32>
      %127 = arith.extui %126 : vector<32x1xi1> to vector<32x1xi32>
      %128 = arith.sitofp %127 : vector<32x1xi32> to vector<32x1xf32>
      %129 = arith.subf %124, %115 : vector<32x1xf32>
      %130 = arith.mulf %129, %128 : vector<32x1xf32>
      %131 = arith.addf %arg20, %130 : vector<32x1xf32>
      scf.yield %52, %50, %81, %79, %131 : vector<32x128xf32>, vector<32x128xf32>, vector<32x128xf32>, vector<32x128xf32>, vector<32x1xf32>
    }
    %c8_i32_27 = arith.constant 8 : i32
    %c0_28 = arith.constant 0 : index
    %c0_29 = arith.constant 0 : index
    %22 = vector.load %arg13[%c0_28, %c0_29] : memref<32x1xf32, #tpu.memory_space<vmem>>, vector<32x1xf32>
    tpu.vector_store %arg13[%c0_28, %c0_29], %21#4 {strides = array<i32>} : memref<32x1xf32, #tpu.memory_space<vmem>>, vector<32x1xf32>,
    return
  }
  func.func @transform_0(%arg0: i32) -> (i32, i32, i32) {
    %c0_i32 = arith.constant 0 : i32
    %c0_i32_0 = arith.constant 0 : i32
    %c0_i32_1 = arith.constant 0 : i32
    return %c0_i32, %arg0, %c0_i32_0 : i32, i32, i32
  }
  func.func @transform_1(%arg0: i32) -> (i32, i32, i32) {
    %c0_i32 = arith.constant 0 : i32
    %c0_i32_0 = arith.constant 0 : i32
    %c0_i32_1 = arith.constant 0 : i32
    return %c0_i32, %arg0, %c0_i32_0 : i32, i32, i32
  }
  func.func @transform_2(%arg0: i32) -> (i32, i32) {
    %c0_i32 = arith.constant 0 : i32
    %c0_i32_0 = arith.constant 0 : i32
    return %arg0, %c0_i32 : i32, i32
  }
  func.func @transform_3(%arg0: i32) -> (i32, i32) {
    %c0_i32 = arith.constant 0 : i32
    %c0_i32_0 = arith.constant 0 : i32
    %c0_i32_1 = arith.constant 0 : i32
    return %c0_i32, %c0_i32_0 : i32, i32
  }
  func.func @transform_4(%arg0: i32) -> (i32, i32) {
    %c0_i32 = arith.constant 0 : i32
    %c0_i32_0 = arith.constant 0 : i32
    %c0_i32_1 = arith.constant 0 : i32
    return %c0_i32, %c0_i32_0 : i32, i32
  }
  func.func @transform_5(%arg0: i32) -> (i32, i32) {
    %c0_i32 = arith.constant 0 : i32
    %c0_i32_0 = arith.constant 0 : i32
    %c0_i32_1 = arith.constant 0 : i32
    return %c0_i32, %c0_i32_0 : i32, i32
  }
  func.func @transform_6(%arg0: i32) -> (i32, i32) {
    %c0_i32 = arith.constant 0 : i32
    %c0_i32_0 = arith.constant 0 : i32
    %c0_i32_1 = arith.constant 0 : i32
    return %c0_i32, %c0_i32_0 : i32, i32
  }
  func.func @transform_7(%arg0: i32) -> (i32, i32) {
    %c0_i32 = arith.constant 0 : i32
    %c0_i32_0 = arith.constant 0 : i32
    %c0_i32_1 = arith.constant 0 : i32
    return %c0_i32, %c0_i32_0 : i32, i32
  }
  func.func @transform_8(%arg0: i32) -> (i32, i32) {
    %c0_i32 = arith.constant 0 : i32
    %c0_i32_0 = arith.constant 0 : i32
    %c0_i32_1 = arith.constant 0 : i32
    return %c0_i32, %c0_i32_0 : i32, i32
  }
  func.func @transform_9(%arg0: i32) -> (i32, i32) {
    %c0_i32 = arith.constant 0 : i32
    %c0_i32_0 = arith.constant 0 : i32
    %c0_i32_1 = arith.constant 0 : i32
    return %c0_i32, %c0_i32_0 : i32, i32
  }
  func.func @transform_10(%arg0: i32) -> (i32, i32) {
    %c0_i32 = arith.constant 0 : i32
    %c0_i32_0 = arith.constant 0 : i32
    %c0_i32_1 = arith.constant 0 : i32
    return %c0_i32, %c0_i32_0 : i32, i32
  }
  func.func @transform_11(%arg0: i32) -> (i32, i32) {
    %c0_i32 = arith.constant 0 : i32
    %c0_i32_0 = arith.constant 0 : i32
    %c0_i32_1 = arith.constant 0 : i32
    return %c0_i32, %c0_i32_0 : i32, i32
  }
  func.func @transform_12(%arg0: i32) -> (i32, i32) {
    %c0_i32 = arith.constant 0 : i32
    %c0_i32_0 = arith.constant 0 : i32
    return %arg0, %c0_i32 : i32, i32
  }
}

</mosaic_0001>

<llo_original>
// kernel: tpu_custom_call.1
$region0: #{tpu_custom_call.1}
  #allocation0 [shape = 'u32[]', space=smem, size = 0x4, offset = 0x4, fixed_abs, tag = 'smem constant byte address 0x4 - core index']
  #allocation1 [shape = 'u32[144,128]{1,0:T(1,128)}', space=vmem, size = 0x12000, scoped, tag = 'internal scratch']
  #allocation2 [shape = 'f32[8,32,512]{2,1,0:T(8,128)}', space=vmem, size = 0x80000, scoped, tag = 'scratch operand']
  %s0 = inlined_call_operand.vmem [shape: f32[8,128,128], index: 0, kind: input, shape index: {}]
  %s1 = inlined_call_operand.vmem [shape: s32[8,128,1], index: 1, kind: input, shape index: {}]
  %s2 = inlined_call_operand.hbm [shape: f32[128,128], index: 2, kind: input, shape index: {}]
  %s3 = inlined_call_operand.hbm [shape: f32[128,512], index: 3, kind: input, shape index: {}]
  %s4 = inlined_call_operand.hbm [shape: f32[128,512], index: 4, kind: input, shape index: {}]
  %s5 = inlined_call_operand.vmem [shape: f32[1,512], index: 5, kind: input, shape index: {}]
  %s6 = inlined_call_operand.hbm [shape: f32[256,512], index: 6, kind: input, shape index: {}]
  %s7 = inlined_call_operand.vmem [shape: f32[1,512], index: 7, kind: input, shape index: {}]
  %s8 = inlined_call_operand.vmem [shape: f32[1,128], index: 8, kind: input, shape index: {}]
  %s9 = inlined_call_operand.vmem [shape: f32[1,128], index: 9, kind: input, shape index: {}]
  %s10 = inlined_call_operand.hbm [shape: f32[128,256], index: 10, kind: input, shape index: {}]
  %s11 = inlined_call_operand.vmem [shape: f32[1,256], index: 11, kind: input, shape index: {}]
  %s12 = inlined_call_operand.vmem [shape: f32[128,1], index: 12, kind: output, shape index: {}]
  %s13 = sld [smem:[#allocation0]]
  $region184: #{tpu_custom_call.1} parent=0
    _
  %s15 = ssub.s32 1, %s13
  %s16 = scalar_select 0, %s15, %s13
  $region1: #{tpu_custom_call.1} parent=0
    #allocation3 [shape = 'u8[262144]{0}', space=vmem, size = 0x40000, scoped, tag = 'input window, operand 0']
    #allocation4 [shape = 'u8[262144]{0}', space=vmem, size = 0x40000, scoped, tag = 'input window, operand 1']
    #allocation5 [shape = 'u8[32768]{0}', space=vmem, size = 0x8000, scoped, tag = 'input window, operand 2']
    #allocation6 [shape = 's32[2]{0}', space=sflag, size = 0x8, scoped, tag = 'scoped memory for tpu_custom_call.1']
    #allocation7 [shape = 'u8[262144]{0}', space=vmem, size = 0x40000, scoped, tag = 'input window, operand 3, single buffered']
    #allocation8 [shape = 's32[1]{0}', space=sflag, size = 0x4, scoped, tag = 'scoped memory for tpu_custom_call.1']
    #allocation9 [shape = 'u8[262144]{0}', space=vmem, size = 0x40000, scoped, tag = 'input window, operand 4, single buffered']
    #allocation10 [shape = 'u8[524288]{0}', space=vmem, size = 0x80000, scoped, tag = 'input window, operand 6, single buffered']
    #allocation11 [shape = 's32[1]{0}', space=sflag, size = 0x4, scoped, tag = 'scoped memory for tpu_custom_call.1']
    #allocation12 [shape = 'u8[131072]{0}', space=vmem, size = 0x20000, scoped, tag = 'input window, operand 10, single buffered']
    %17 = vsyncpa [#allocation6], 0
    %s18 = scalar_lea.sflag [#allocation6], 1
    %19 = vsyncpa %s18, 0
    %20 = vsyncpa [#allocation8], 0
    %21 = vsyncpa [#allocation11], 0
    loop: start=0, step=1, limit=6
    $region2: #{tpu_custom_call.1} parent=1 // loop_pre_header
      _
    $region3: #{tpu_custom_call.1} parent=1 // loop_header
      %s23 = sphi 0, %s27
      %p24 = scmp.ge.s32.totalorder %s23, 6
      %s33 = sphi 0, %s35
      %s36 = sphi 0, %s33
      %s37 = sphi 0, %s36
      %s53 = sphi 0, %s37
      %s59 = sphi 0, %s61
      %s62 = sphi 0, %s59
      %s63 = sphi 0, %s62
      %s79 = sphi 0, %s63
      %s85 = sphi 0, %s87
      %s88 = sphi 0, %s85
      %s89 = sphi 0, %s88
      %s105 = sphi 0, %s89
      %s109 = sphi 0, %s109
      %s111 = sphi 0, %s109
      %s112 = sphi 0, %s111
      %s126 = sphi 0, %s112
      %s130 = sphi 0, %s130
      %s132 = sphi 0, %s130
      %s133 = sphi 0, %s132
      %s147 = sphi 0, %s133
      %s151 = sphi 0, %s151
      %s153 = sphi 0, %s151
      %s154 = sphi 0, %s153
      %s168 = sphi 0, %s154
      %s172 = sphi 0, %s172
      %s174 = sphi 0, %s172
      %s175 = sphi 0, %s174
      %s189 = sphi 0, %s175
      %s193 = sphi 0, %s193
      %s195 = sphi 0, %s193
      %s196 = sphi 0, %s195
      %s210 = sphi 0, %s196
      %s214 = sphi 0, %s214
      %s216 = sphi 0, %s214
      %s217 = sphi 0, %s216
      %s231 = sphi 0, %s217
      %s235 = sphi 0, %s235
      %s237 = sphi 0, %s235
      %s238 = sphi 0, %s237
      %s252 = sphi 0, %s238
      %s256 = sphi 0, %s256
      %s258 = sphi 0, %s256
      %s259 = sphi 0, %s258
      %s273 = sphi 0, %s259
      %s277 = sphi 0, %s277
      %s279 = sphi 0, %s277
      %s280 = sphi 0, %s279
      %s294 = sphi 0, %s280
      %s300 = sphi 0, %s302
      %s303 = sphi 0, %s300
      %s304 = sphi 0, %s303
      %s320 = sphi 0, %s304
    $region4: #{tpu_custom_call.1} parent=1 // loop_header_branch
      %26 = sbr.rel (%p24) target = $region8
    $region5: #{tpu_custom_call.1} parent=1 // loop_body
      %s28 = ssub.s32 %s23, 1
      %s29 = ssub.s32 %s23, 2
      %s30 = sadd.s32 %s23, 1
      %s31 = ssub.s32 %s23, %s30
      %p32 = scmp.eq.s32.totalorder %s31, 0
      %s34 = sadd.s32 %s33, 1
      %s35 = scalar_select %p32, %s33, %s34
      %p38 = pneg %p32
      %p39 = scmp.eq.s32.totalorder %s23, 3
      %p40 = por %p38, %p39
      %p41 = scmp.ne.s32.totalorder %s33, %s36
      %p42 = scmp.eq.s32.totalorder %s23, 0
      %p43 = por %p41, %p42
      %p44 = scmp.ne.s32.totalorder %s33, %s36
      %p45 = scmp.eq.s32.totalorder %s28, 3
      %p46 = por %p44, %p45
      %p47 = scmp.ne.s32.totalorder %s36, %s37
      %p48 = scmp.eq.s32.totalorder %s28, 0
      %p49 = por %p47, %p48
      %p50 = scmp.ne.s32.totalorder %s36, %s37
      %p51 = scmp.eq.s32.totalorder %s29, 3
      %p52 = por %p50, %p51
      %p54 = scmp.ne.s32.totalorder %s37, %s53
      %p55 = scmp.eq.s32.totalorder %s29, 0
      %p56 = por %p54, %p55
      %s57 = ssub.s32 %s23, %s30
      %p58 = scmp.eq.s32.totalorder %s57, 0
      %s60 = sadd.s32 %s59, 1
      %s61 = scalar_select %p58, %s59, %s60
      %p64 = pneg %p58
      %p65 = scmp.eq.s32.totalorder %s23, 3
      %p66 = por %p64, %p65
      %p67 = scmp.ne.s32.totalorder %s59, %s62
      %p68 = scmp.eq.s32.totalorder %s23, 0
      %p69 = por %p67, %p68
      %p70 = scmp.ne.s32.totalorder %s59, %s62
      %p71 = scmp.eq.s32.totalorder %s28, 3
      %p72 = por %p70, %p71
      %p73 = scmp.ne.s32.totalorder %s62, %s63
      %p74 = scmp.eq.s32.totalorder %s28, 0
      %p75 = por %p73, %p74
      %p76 = scmp.ne.s32.totalorder %s62, %s63
      %p77 = scmp.eq.s32.totalorder %s29, 3
      %p78 = por %p76, %p77
      %p80 = scmp.ne.s32.totalorder %s63, %s79
      %p81 = scmp.eq.s32.totalorder %s29, 0
      %p82 = por %p80, %p81
      %s83 = ssub.s32 %s23, %s30
      %p84 = scmp.eq.s32.totalorder %s83, 0
      %s86 = sadd.s32 %s85, 1
      %s87 = scalar_select %p84, %s85, %s86
      %p90 = pneg %p84
      %p91 = scmp.eq.s32.totalorder %s23, 3
      %p92 = por %p90, %p91
      %p93 = scmp.ne.s32.totalorder %s85, %s88
      %p94 = scmp.eq.s32.totalorder %s23, 0
      %p95 = por %p93, %p94
      %p96 = scmp.ne.s32.totalorder %s85, %s88
      %p97 = scmp.eq.s32.totalorder %s28, 3
      %p98 = por %p96, %p97
      %p99 = scmp.ne.s32.totalorder %s88, %s89
      %p100 = scmp.eq.s32.totalorder %s28, 0
      %p101 = por %p99, %p100
      %p102 = scmp.ne.s32.totalorder %s88, %s89
      %p103 = scmp.eq.s32.totalorder %s29, 3
      %p104 = por %p102, %p103
      %p106 = scmp.ne.s32.totalorder %s89, %s105
      %p107 = scmp.eq.s32.totalorder %s29, 0
      %p108 = por %p106, %p107
      %s110 = sadd.s32 %s109, 1
      %p113 = scmp.eq.s32.totalorder %s23, 3
      %p114 = scmp.ne.s32.totalorder %s109, %s111
      %p115 = scmp.eq.s32.totalorder %s23, 0
      %p116 = por %p114, %p115
      %p117 = scmp.ne.s32.totalorder %s109, %s111
      %p118 = scmp.eq.s32.totalorder %s28, 3
      %p119 = por %p117, %p118
      %p120 = scmp.ne.s32.totalorder %s111, %s112
      %p121 = scmp.eq.s32.totalorder %s28, 0
      %p122 = por %p120, %p121
      %p123 = scmp.ne.s32.totalorder %s111, %s112
      %p124 = scmp.eq.s32.totalorder %s29, 3
      %p125 = por %p123, %p124
      %p127 = scmp.ne.s32.totalorder %s112, %s126
      %p128 = scmp.eq.s32.totalorder %s29, 0
      %p129 = por %p127, %p128
      %s131 = sadd.s32 %s130, 1
      %p134 = scmp.eq.s32.totalorder %s23, 3
      %p135 = scmp.ne.s32.totalorder %s130, %s132
      %p136 = scmp.eq.s32.totalorder %s23, 0
      %p137 = por %p135, %p136
      %p138 = scmp.ne.s32.totalorder %s130, %s132
      %p139 = scmp.eq.s32.totalorder %s28, 3
      %p140 = por %p138, %p139
      %p141 = scmp.ne.s32.totalorder %s132, %s133
      %p142 = scmp.eq.s32.totalorder %s28, 0
      %p143 = por %p141, %p142
      %p144 = scmp.ne.s32.totalorder %s132, %s133
      %p145 = scmp.eq.s32.totalorder %s29, 3
      %p146 = por %p144, %p145
      %p148 = scmp.ne.s32.totalorder %s133, %s147
      %p149 = scmp.eq.s32.totalorder %s29, 0
      %p150 = por %p148, %p149
      %s152 = sadd.s32 %s151, 1
      %p155 = scmp.eq.s32.totalorder %s23, 3
      %p156 = scmp.ne.s32.totalorder %s151, %s153
      %p157 = scmp.eq.s32.totalorder %s23, 0
      %p158 = por %p156, %p157
      %p159 = scmp.ne.s32.totalorder %s151, %s153
      %p160 = scmp.eq.s32.totalorder %s28, 3
      %p161 = por %p159, %p160
      %p162 = scmp.ne.s32.totalorder %s153, %s154
      %p163 = scmp.eq.s32.totalorder %s28, 0
      %p164 = por %p162, %p163
      %p165 = scmp.ne.s32.totalorder %s153, %s154
      %p166 = scmp.eq.s32.totalorder %s29, 3
      %p167 = por %p165, %p166
      %p169 = scmp.ne.s32.totalorder %s154, %s168
      %p170 = scmp.eq.s32.totalorder %s29, 0
      %p171 = por %p169, %p170
      %s173 = sadd.s32 %s172, 1
      %p176 = scmp.eq.s32.totalorder %s23, 3
      %p177 = scmp.ne.s32.totalorder %s172, %s174
      %p178 = scmp.eq.s32.totalorder %s23, 0
      %p179 = por %p177, %p178
      %p180 = scmp.ne.s32.totalorder %s172, %s174
      %p181 = scmp.eq.s32.totalorder %s28, 3
      %p182 = por %p180, %p181
      %p183 = scmp.ne.s32.totalorder %s174, %s175
      %p184 = scmp.eq.s32.totalorder %s28, 0
      %p185 = por %p183, %p184
      %p186 = scmp.ne.s32.totalorder %s174, %s175
      %p187 = scmp.eq.s32.totalorder %s29, 3
      %p188 = por %p186, %p187
      %p190 = scmp.ne.s32.totalorder %s175, %s189
      %p191 = scmp.eq.s32.totalorder %s29, 0
      %p192 = por %p190, %p191
      %s194 = sadd.s32 %s193, 1
      %p197 = scmp.eq.s32.totalorder %s23, 3
      %p198 = scmp.ne.s32.totalorder %s193, %s195
      %p199 = scmp.eq.s32.totalorder %s23, 0
      %p200 = por %p198, %p199
      %p201 = scmp.ne.s32.totalorder %s193, %s195
      %p202 = scmp.eq.s32.totalorder %s28, 3
      %p203 = por %p201, %p202
      %p204 = scmp.ne.s32.totalorder %s195, %s196
      %p205 = scmp.eq.s32.totalorder %s28, 0
      %p206 = por %p204, %p205
      %p207 = scmp.ne.s32.totalorder %s195, %s196
      %p208 = scmp.eq.s32.totalorder %s29, 3
      %p209 = por %p207, %p208
      %p211 = scmp.ne.s32.totalorder %s196, %s210
      %p212 = scmp.eq.s32.totalorder %s29, 0
      %p213 = por %p211, %p212
      %s215 = sadd.s32 %s214, 1
      %p218 = scmp.eq.s32.totalorder %s23, 3
      %p219 = scmp.ne.s32.totalorder %s214, %s216
      %p220 = scmp.eq.s32.totalorder %s23, 0
      %p221 = por %p219, %p220
      %p222 = scmp.ne.s32.totalorder %s214, %s216
      %p223 = scmp.eq.s32.totalorder %s28, 3
      %p224 = por %p222, %p223
      %p225 = scmp.ne.s32.totalorder %s216, %s217
      %p226 = scmp.eq.s32.totalorder %s28, 0
      %p227 = por %p225, %p226
      %p228 = scmp.ne.s32.totalorder %s216, %s217
      %p229 = scmp.eq.s32.totalorder %s29, 3
      %p230 = por %p228, %p229
      %p232 = scmp.ne.s32.totalorder %s217, %s231
      %p233 = scmp.eq.s32.totalorder %s29, 0
      %p234 = por %p232, %p233
      %s236 = sadd.s32 %s235, 1
      %p239 = scmp.eq.s32.totalorder %s23, 3
      %p240 = scmp.ne.s32.totalorder %s235, %s237
      %p241 = scmp.eq.s32.totalorder %s23, 0
      %p242 = por %p240, %p241
      %p243 = scmp.ne.s32.totalorder %s235, %s237
      %p244 = scmp.eq.s32.totalorder %s28, 3
      %p245 = por %p243, %p244
      %p246 = scmp.ne.s32.totalorder %s237, %s238
      %p247 = scmp.eq.s32.totalorder %s28, 0
      %p248 = por %p246, %p247
      %p249 = scmp.ne.s32.totalorder %s237, %s238
      %p250 = scmp.eq.s32.totalorder %s29, 3
      %p251 = por %p249, %p250
      %p253 = scmp.ne.s32.totalorder %s238, %s252
      %p254 = scmp.eq.s32.totalorder %s29, 0
      %p255 = por %p253, %p254
      %s257 = sadd.s32 %s256, 1
      %p260 = scmp.eq.s32.totalorder %s23, 3
      %p261 = scmp.ne.s32.totalorder %s256, %s258
      %p262 = scmp.eq.s32.totalorder %s23, 0
      %p263 = por %p261, %p262
      %p264 = scmp.ne.s32.totalorder %s256, %s258
      %p265 = scmp.eq.s32.totalorder %s28, 3
      %p266 = por %p264, %p265
      %p267 = scmp.ne.s32.totalorder %s258, %s259
      %p268 = scmp.eq.s32.totalorder %s28, 0
      %p269 = por %p267, %p268
      %p270 = scmp.ne.s32.totalorder %s258, %s259
      %p271 = scmp.eq.s32.totalorder %s29, 3
      %p272 = por %p270, %p271
      %p274 = scmp.ne.s32.totalorder %s259, %s273
      %p275 = scmp.eq.s32.totalorder %s29, 0
      %p276 = por %p274, %p275
      %s278 = sadd.s32 %s277, 1
      %p281 = scmp.eq.s32.totalorder %s23, 3
      %p282 = scmp.ne.s32.totalorder %s277, %s279
      %p283 = scmp.eq.s32.totalorder %s23, 0
      %p284 = por %p282, %p283
      %p285 = scmp.ne.s32.totalorder %s277, %s279
      %p286 = scmp.eq.s32.totalorder %s28, 3
      %p287 = por %p285, %p286
      %p288 = scmp.ne.s32.totalorder %s279, %s280
      %p289 = scmp.eq.s32.totalorder %s28, 0
      %p290 = por %p288, %p289
      %p291 = scmp.ne.s32.totalorder %s279, %s280
      %p292 = scmp.eq.s32.totalorder %s29, 3
      %p293 = por %p291, %p292
      %p295 = scmp.ne.s32.totalorder %s280, %s294
      %p296 = scmp.eq.s32.totalorder %s29, 0
      %p297 = por %p295, %p296
      %s298 = ssub.s32 %s23, %s30
      %p299 = scmp.eq.s32.totalorder %s298, 0
      %s301 = sadd.s32 %s300, 1
      %s302 = scalar_select %p299, %s300, %s301
      %p305 = pneg %p299
      %p306 = scmp.eq.s32.totalorder %s23, 3
      %p307 = por %p305, %p306
      %p308 = scmp.ne.s32.totalorder %s300, %s303
      %p309 = scmp.eq.s32.totalorder %s23, 0
      %p310 = por %p308, %p309
      %p311 = scmp.ne.s32.totalorder %s300, %s303
      %p312 = scmp.eq.s32.totalorder %s28, 3
      %p313 = por %p311, %p312
      %p314 = scmp.ne.s32.totalorder %s303, %s304
      %p315 = scmp.eq.s32.totalorder %s28, 0
      %p316 = por %p314, %p315
      %p317 = scmp.ne.s32.totalorder %s303, %s304
      %p318 = scmp.eq.s32.totalorder %s29, 3
      %p319 = por %p317, %p318
      %p321 = scmp.ne.s32.totalorder %s304, %s320
      %p322 = scmp.eq.s32.totalorder %s29, 0
      %p323 = por %p321, %p322
      %p324 = scmp.le.s32.totalorder 1, %s23
      %p325 = scmp.lt.s32.totalorder %s23, 5
      %p326 = pnand %p324, %p325
      %p327 = pneg %p326
      // Predicated region
      $region9: #{tpu_custom_call.1} parent=5 // pred_check
        _
      $region10: #{tpu_custom_call.1} parent=5 // pred_check_branch
        %329 = sbr.rel (%p326) target = $region12
      $region11: #{tpu_custom_call.1} parent=5 // pred_region
        %s330 = ssub.s32 %s23, 1
        // Predicated region
        $region13: #{tpu_custom_call.1} parent=11 // pred_check
          %p331 = pneg %p122
        $region14: #{tpu_custom_call.1} parent=11 // pred_check_branch
          %333 = sbr.rel (%p331) target = $region16
        $region15: #{tpu_custom_call.1} parent=11 // pred_region
          %s335 = ssub.s32 8192, 8192
          %336 = vsyncadd [#allocation8], %s335
          %s337 = sshll.u32 [#allocation7], 4
          %s338 = int_to_ptr.vmem [resolvable:$true] %s337
          %343 = dma.hbm_to_vmem [thread:$0]  %s3, 8192, %s338, [#allocation8], 512, 512, 32
        $region16: #{tpu_custom_call.1} parent=11 // pred_fallthru
          _
        // Predicated region
        $region17: #{tpu_custom_call.1} parent=11 // pred_check
          %p344 = pneg %p143
        $region18: #{tpu_custom_call.1} parent=11 // pred_check_branch
          %346 = sbr.rel (%p344) target = $region20
        $region19: #{tpu_custom_call.1} parent=11 // pred_region
          %s348 = ssub.s32 8192, 8192
          %349 = vsyncadd [#allocation8], %s348
          %s350 = sshll.u32 [#allocation9], 4
          %s351 = int_to_ptr.vmem [resolvable:$true] %s350
          %356 = dma.hbm_to_vmem [thread:$0]  %s4, 8192, %s351, [#allocation8], 512, 512, 32
        $region20: #{tpu_custom_call.1} parent=11 // pred_fallthru
          _
        // Predicated region
        $region21: #{tpu_custom_call.1} parent=11 // pred_check
          %p357 = pneg %p164
        $region22: #{tpu_custom_call.1} parent=11 // pred_check_branch
          %359 = sbr.rel (%p357) target = $region24
        $region23: #{tpu_custom_call.1} parent=11 // pred_region
          _
        $region24: #{tpu_custom_call.1} parent=11 // pred_fallthru
          _
        // Predicated region
        $region25: #{tpu_custom_call.1} parent=11 // pred_check
          %p360 = pneg %p185
        $region26: #{tpu_custom_call.1} parent=11 // pred_check_branch
          %362 = sbr.rel (%p360) target = $region28
        $region27: #{tpu_custom_call.1} parent=11 // pred_region
          %s364 = ssub.s32 16384, 16384
          %365 = vsyncadd [#allocation11], %s364
          %s366 = sshll.u32 [#allocation10], 4
          %s367 = int_to_ptr.vmem [resolvable:$true] %s366
          %372 = dma.hbm_to_vmem [thread:$0]  %s6, 16384, %s367, [#allocation11], 512, 512, 32
        $region28: #{tpu_custom_call.1} parent=11 // pred_fallthru
          _
        // Predicated region
        $region29: #{tpu_custom_call.1} parent=11 // pred_check
          %p373 = pneg %p206
        $region30: #{tpu_custom_call.1} parent=11 // pred_check_branch
          %375 = sbr.rel (%p373) target = $region32
        $region31: #{tpu_custom_call.1} parent=11 // pred_region
          _
        $region32: #{tpu_custom_call.1} parent=11 // pred_fallthru
          _
        // Predicated region
        $region33: #{tpu_custom_call.1} parent=11 // pred_check
          %p376 = pneg %p227
        $region34: #{tpu_custom_call.1} parent=11 // pred_check_branch
          %378 = sbr.rel (%p376) target = $region36
        $region35: #{tpu_custom_call.1} parent=11 // pred_region
          _
        $region36: #{tpu_custom_call.1} parent=11 // pred_fallthru
          _
        // Predicated region
        $region37: #{tpu_custom_call.1} parent=11 // pred_check
          %p379 = pneg %p248
        $region38: #{tpu_custom_call.1} parent=11 // pred_check_branch
          %381 = sbr.rel (%p379) target = $region40
        $region39: #{tpu_custom_call.1} parent=11 // pred_region
          _
        $region40: #{tpu_custom_call.1} parent=11 // pred_fallthru
          _
        // Predicated region
        $region41: #{tpu_custom_call.1} parent=11 // pred_check
          %p382 = pneg %p269
        $region42: #{tpu_custom_call.1} parent=11 // pred_check_branch
          %384 = sbr.rel (%p382) target = $region44
        $region43: #{tpu_custom_call.1} parent=11 // pred_region
          %s386 = ssub.s32 4096, 4096
          %387 = vsyncadd [#allocation11], %s386
          %s388 = sshll.u32 [#allocation12], 4
          %s389 = int_to_ptr.vmem [resolvable:$true] %s388
          %394 = dma.hbm_to_vmem [thread:$0]  %s10, 4096, %s389, [#allocation11], 256, 256, 16
        $region44: #{tpu_custom_call.1} parent=11 // pred_fallthru
          _
        // Predicated region
        $region45: #{tpu_custom_call.1} parent=11 // pred_check
          %p395 = pneg %p290
        $region46: #{tpu_custom_call.1} parent=11 // pred_check_branch
          %397 = sbr.rel (%p395) target = $region48
        $region47: #{tpu_custom_call.1} parent=11 // pred_region
          _
        $region48: #{tpu_custom_call.1} parent=11 // pred_fallthru
          _
      $region12: #{tpu_custom_call.1} parent=5 // pred_fallthru
        _
      %p398 = scmp.lt.s32.totalorder %s23, 4
      // Predicated region
      $region49: #{tpu_custom_call.1} parent=5 // pred_check
        %p399 = pneg %p398
      $region50: #{tpu_custom_call.1} parent=5 // pred_check_branch
        %401 = sbr.rel (%p399) target = $region52
      $region51: #{tpu_custom_call.1} parent=5 // pred_region
        // Predicated region
        $region53: #{tpu_custom_call.1} parent=51 // pred_check
          %p402 = pneg %p43
        $region54: #{tpu_custom_call.1} parent=51 // pred_check_branch
          %404 = sbr.rel (%p402) target = $region56
        $region55: #{tpu_custom_call.1} parent=51 // pred_region
          %s405 = sand.u32 %s33, 1
          %s406 = sand.u32 %s33, 1
          %s407 = smul.addr %s406, 256
          %s408 = scalar_lea.vmem [#allocation3], %s407
          %s409 = smul.u32 4, %s23
          %s410 = smul.addr %s409, 8
          %s411 = scalar_lea.vmem %s0, %s410
          // Predicated region
          $region57: #{tpu_custom_call.1} parent=55 // pred_check
            _
          $region58: #{tpu_custom_call.1} parent=55 // pred_check_branch
            %413 = sbr.rel (0) target = $region60
          $region59: #{tpu_custom_call.1} parent=55 // pred_region
            // Predicated region
            $region61: #{tpu_custom_call.1} parent=59 // pred_check
              _
            $region62: #{tpu_custom_call.1} parent=59 // pred_check_branch
              %415 = sbr.rel (0) target = $region64
            $region63: #{tpu_custom_call.1} parent=59 // pred_region
              // Predicated region
              $region76: #{tpu_custom_call.1} parent=63 // pred_check
                _
              $region77: #{tpu_custom_call.1} parent=63 // pred_check_branch
                %492 = sbr.rel (0) target = $region79
              $region78: #{tpu_custom_call.1} parent=63 // pred_region
                loop: start=0, step=1, limit=1
                $region80: #{tpu_custom_call.1} parent=78 // loop_pre_header
                  _
                $region81: #{tpu_custom_call.1} parent=78 // loop_header
                  %s494 = sphi 0, %s498
                  %p495 = scmp.ge.s32.totalorder %s494, 1
                  %s499 = sphi %s411, %s411
                  %s500 = sphi %s408, %s408
                $region82: #{tpu_custom_call.1} parent=78 // loop_header_branch
                  %497 = sbr.rel (%p495) target = $region86
                $region83: #{tpu_custom_call.1} parent=78 // loop_body
                  %v501 = vld [vmem:[%s499] sm:$0xff]
                  %502 = vst [vmem:[%s500] sm:$0xff] %v501
                  %v503 = vld [vmem:[%s499 + $0x8] sm:$0xff]
                  %504 = vst [vmem:[%s500 + $0x8] sm:$0xff] %v503
                  %v505 = vld [vmem:[%s499 + $0x10] sm:$0xff]
                  %506 = vst [vmem:[%s500 + $0x10] sm:$0xff] %v505
                  %v507 = vld [vmem:[%s499 + $0x18] sm:$0xff]
                  %508 = vst [vmem:[%s500 + $0x18] sm:$0xff] %v507
                  %v509 = vld [vmem:[%s499 + $0x80] sm:$0xff]
                  %510 = vst [vmem:[%s500 + $0x20] sm:$0xff] %v509
                  %v511 = vld [vmem:[%s499 + $0x88] sm:$0xff]
                  %512 = vst [vmem:[%s500 + $0x28] sm:$0xff] %v511
                  %v513 = vld [vmem:[%s499 + $0x90] sm:$0xff]
                  %514 = vst [vmem:[%s500 + $0x30] sm:$0xff] %v513
                  %v515 = vld [vmem:[%s499 + $0x98] sm:$0xff]
                  %516 = vst [vmem:[%s500 + $0x38] sm:$0xff] %v515
                  %v517 = vld [vmem:[%s499 + $0x100] sm:$0xff]
                  %518 = vst [vmem:[%s500 + $0x40] sm:$0xff] %v517
                  %v519 = vld [vmem:[%s499 + $0x108] sm:$0xff]
                  %520 = vst [vmem:[%s500 + $0x48] sm:$0xff] %v519
                  %v521 = vld [vmem:[%s499 + $0x110] sm:$0xff]
                  %522 = vst [vmem:[%s500 + $0x50] sm:$0xff] %v521
                  %v523 = vld [vmem:[%s499 + $0x118] sm:$0xff]
                  %524 = vst [vmem:[%s500 + $0x58] sm:$0xff] %v523
                  %v525 = vld [vmem:[%s499 + $0x180] sm:$0xff]
                  %526 = vst [vmem:[%s500 + $0x60] sm:$0xff] %v525
                  %v527 = vld [vmem:[%s499 + $0x188] sm:$0xff]
                  %528 = vst [vmem:[%s500 + $0x68] sm:$0xff] %v527
                  %v529 = vld [vmem:[%s499 + $0x190] sm:$0xff]
                  %530 = vst [vmem:[%s500 + $0x70] sm:$0xff] %v529
                  %v531 = vld [vmem:[%s499 + $0x198] sm:$0xff]
                  %532 = vst [vmem:[%s500 + $0x78] sm:$0xff] %v531
                  %v533 = vld [vmem:[%s499 + $0x200] sm:$0xff]
                  %534 = vst [vmem:[%s500 + $0x80] sm:$0xff] %v533
                  %v535 = vld [vmem:[%s499 + $0x208] sm:$0xff]
                  %536 = vst [vmem:[%s500 + $0x88] sm:$0xff] %v535
                  %v537 = vld [vmem:[%s499 + $0x210] sm:$0xff]
                  %538 = vst [vmem:[%s500 + $0x90] sm:$0xff] %v537
                  %v539 = vld [vmem:[%s499 + $0x218] sm:$0xff]
                  %540 = vst [vmem:[%s500 + $0x98] sm:$0xff] %v539
                  %v541 = vld [vmem:[%s499 + $0x280] sm:$0xff]
                  %542 = vst [vmem:[%s500 + $0xa0] sm:$0xff] %v541
                  %v543 = vld [vmem:[%s499 + $0x288] sm:$0xff]
                  %544 = vst [vmem:[%s500 + $0xa8] sm:$0xff] %v543
                  %v545 = vld [vmem:[%s499 + $0x290] sm:$0xff]
                  %546 = vst [vmem:[%s500 + $0xb0] sm:$0xff] %v545
                  %v547 = vld [vmem:[%s499 + $0x298] sm:$0xff]
                  %548 = vst [vmem:[%s500 + $0xb8] sm:$0xff] %v547
                  %v549 = vld [vmem:[%s499 + $0x300] sm:$0xff]
                  %550 = vst [vmem:[%s500 + $0xc0] sm:$0xff] %v549
                  %v551 = vld [vmem:[%s499 + $0x308] sm:$0xff]
                  %552 = vst [vmem:[%s500 + $0xc8] sm:$0xff] %v551
                  %v553 = vld [vmem:[%s499 + $0x310] sm:$0xff]
                  %554 = vst [vmem:[%s500 + $0xd0] sm:$0xff] %v553
                  %v555 = vld [vmem:[%s499 + $0x318] sm:$0xff]
                  %556 = vst [vmem:[%s500 + $0xd8] sm:$0xff] %v555
                  %v557 = vld [vmem:[%s499 + $0x380] sm:$0xff]
                  %558 = vst [vmem:[%s500 + $0xe0] sm:$0xff] %v557
                  %v559 = vld [vmem:[%s499 + $0x388] sm:$0xff]
                  %560 = vst [vmem:[%s500 + $0xe8] sm:$0xff] %v559
                  %v561 = vld [vmem:[%s499 + $0x390] sm:$0xff]
                  %562 = vst [vmem:[%s500 + $0xf0] sm:$0xff] %v561
                  %v563 = vld [vmem:[%s499 + $0x398] sm:$0xff]
                  %564 = vst [vmem:[%s500 + $0xf8] sm:$0xff] %v563
                $region84: #{tpu_custom_call.1} parent=78 // loop_footer
                  %s498 = sadd.s32 1, %s494
                $region85: #{tpu_custom_call.1} parent=78 // loop_footer_branch
                  %493 = sbr.rel target = $region81
                $region86: #{tpu_custom_call.1} parent=78 // loop_exit
                  _
              $region79: #{tpu_custom_call.1} parent=63 // pred_fallthru
                _
              // Predicated region
              $region87: #{tpu_custom_call.1} parent=63 // pred_check
                _
              $region88: #{tpu_custom_call.1} parent=63 // pred_check_branch
                %566 = sbr.rel target = $region90
              $region89: #{tpu_custom_call.1} parent=63 // pred_region
                _
              $region90: #{tpu_custom_call.1} parent=63 // pred_fallthru
                _
            $region64: #{tpu_custom_call.1} parent=59 // pred_fallthru
              _
            // Predicated region
            $region65: #{tpu_custom_call.1} parent=59 // pred_check
              _
            $region66: #{tpu_custom_call.1} parent=59 // pred_check_branch
              %417 = sbr.rel target = $region68
            $region67: #{tpu_custom_call.1} parent=59 // pred_region
              loop: start=0, step=1, limit=1
              $region69: #{tpu_custom_call.1} parent=67 // loop_pre_header
                _
              $region70: #{tpu_custom_call.1} parent=67 // loop_header
                %s420 = sphi 0, %s424
                %p421 = scmp.ge.s32.totalorder %s420, 1
                %s425 = sphi %s411, %s411
                %s426 = sphi %s408, %s408
              $region71: #{tpu_custom_call.1} parent=67 // loop_header_branch
                %423 = sbr.rel (%p421) target = $region75
              $region72: #{tpu_custom_call.1} parent=67 // loop_body
                %v427 = vld [vmem:[%s425] sm:$0xff]
                %428 = vst [vmem:[%s426] sm:$0xff] %v427
                %v429 = vld [vmem:[%s425 + $0x8] sm:$0xff]
                %430 = vst [vmem:[%s426 + $0x8] sm:$0xff] %v429
                %v431 = vld [vmem:[%s425 + $0x10] sm:$0xff]
                %432 = vst [vmem:[%s426 + $0x10] sm:$0xff] %v431
                %v433 = vld [vmem:[%s425 + $0x18] sm:$0xff]
                %434 = vst [vmem:[%s426 + $0x18] sm:$0xff] %v433
                %v435 = vld [vmem:[%s425 + $0x80] sm:$0xff]
                %436 = vst [vmem:[%s426 + $0x20] sm:$0xff] %v435
                %v437 = vld [vmem:[%s425 + $0x88] sm:$0xff]
                %438 = vst [vmem:[%s426 + $0x28] sm:$0xff] %v437
                %v439 = vld [vmem:[%s425 + $0x90] sm:$0xff]
                %440 = vst [vmem:[%s426 + $0x30] sm:$0xff] %v439
                %v441 = vld [vmem:[%s425 + $0x98] sm:$0xff]
                %442 = vst [vmem:[%s426 + $0x38] sm:$0xff] %v441
                %v443 = vld [vmem:[%s425 + $0x100] sm:$0xff]
                %444 = vst [vmem:[%s426 + $0x40] sm:$0xff] %v443
                %v445 = vld [vmem:[%s425 + $0x108] sm:$0xff]
                %446 = vst [vmem:[%s426 + $0x48] sm:$0xff] %v445
                %v447 = vld [vmem:[%s425 + $0x110] sm:$0xff]
                %448 = vst [vmem:[%s426 + $0x50] sm:$0xff] %v447
                %v449 = vld [vmem:[%s425 + $0x118] sm:$0xff]
                %450 = vst [vmem:[%s426 + $0x58] sm:$0xff] %v449
                %v451 = vld [vmem:[%s425 + $0x180] sm:$0xff]
                %452 = vst [vmem:[%s426 + $0x60] sm:$0xff] %v451
                %v453 = vld [vmem:[%s425 + $0x188] sm:$0xff]
                %454 = vst [vmem:[%s426 + $0x68] sm:$0xff] %v453
                %v455 = vld [vmem:[%s425 + $0x190] sm:$0xff]
                %456 = vst [vmem:[%s426 + $0x70] sm:$0xff] %v455
                %v457 = vld [vmem:[%s425 + $0x198] sm:$0xff]
                %458 = vst [vmem:[%s426 + $0x78] sm:$0xff] %v457
                %v459 = vld [vmem:[%s425 + $0x200] sm:$0xff]
                %460 = vst [vmem:[%s426 + $0x80] sm:$0xff] %v459
                %v461 = vld [vmem:[%s425 + $0x208] sm:$0xff]
                %462 = vst [vmem:[%s426 + $0x88] sm:$0xff] %v461
                %v463 = vld [vmem:[%s425 + $0x210] sm:$0xff]
                %464 = vst [vmem:[%s426 + $0x90] sm:$0xff] %v463
                %v465 = vld [vmem:[%s425 + $0x218] sm:$0xff]
                %466 = vst [vmem:[%s426 + $0x98] sm:$0xff] %v465
                %v467 = vld [vmem:[%s425 + $0x280] sm:$0xff]
                %468 = vst [vmem:[%s426 + $0xa0] sm:$0xff] %v467
                %v469 = vld [vmem:[%s425 + $0x288] sm:$0xff]
                %470 = vst [vmem:[%s426 + $0xa8] sm:$0xff] %v469
                %v471 = vld [vmem:[%s425 + $0x290] sm:$0xff]
                %472 = vst [vmem:[%s426 + $0xb0] sm:$0xff] %v471
                %v473 = vld [vmem:[%s425 + $0x298] sm:$0xff]
                %474 = vst [vmem:[%s426 + $0xb8] sm:$0xff] %v473
                %v475 = vld [vmem:[%s425 + $0x300] sm:$0xff]
                %476 = vst [vmem:[%s426 + $0xc0] sm:$0xff] %v475
                %v477 = vld [vmem:[%s425 + $0x308] sm:$0xff]
                %478 = vst [vmem:[%s426 + $0xc8] sm:$0xff] %v477
                %v479 = vld [vmem:[%s425 + $0x310] sm:$0xff]
                %480 = vst [vmem:[%s426 + $0xd0] sm:$0xff] %v479
                %v481 = vld [vmem:[%s425 + $0x318] sm:$0xff]
                %482 = vst [vmem:[%s426 + $0xd8] sm:$0xff] %v481
                %v483 = vld [vmem:[%s425 + $0x380] sm:$0xff]
                %484 = vst [vmem:[%s426 + $0xe0] sm:$0xff] %v483
                %v485 = vld [vmem:[%s425 + $0x388] sm:$0xff]
                %486 = vst [vmem:[%s426 + $0xe8] sm:$0xff] %v485
                %v487 = vld [vmem:[%s425 + $0x390] sm:$0xff]
                %488 = vst [vmem:[%s426 + $0xf0] sm:$0xff] %v487
                %v489 = vld [vmem:[%s425 + $0x398] sm:$0xff]
                %490 = vst [vmem:[%s426 + $0xf8] sm:$0xff] %v489
              $region73: #{tpu_custom_call.1} parent=67 // loop_footer
                %s424 = sadd.s32 1, %s420
              $region74: #{tpu_custom_call.1} parent=67 // loop_footer_branch
                %419 = sbr.rel target = $region70
              $region75: #{tpu_custom_call.1} parent=67 // loop_exit
                _
            $region68: #{tpu_custom_call.1} parent=59 // pred_fallthru
              _
          $region60: #{tpu_custom_call.1} parent=55 // pred_fallthru
            _
          %567 = vnop
        $region56: #{tpu_custom_call.1} parent=51 // pred_fallthru
          _
        // Predicated region
        $region91: #{tpu_custom_call.1} parent=51 // pred_check
          %p568 = pneg %p69
        $region92: #{tpu_custom_call.1} parent=51 // pred_check_branch
          %570 = sbr.rel (%p568) target = $region94
        $region93: #{tpu_custom_call.1} parent=51 // pred_region
          %s571 = sand.u32 %s59, 1
          %s572 = sand.u32 %s59, 1
          %s573 = smul.addr %s572, 256
          %s574 = scalar_lea.vmem [#allocation4], %s573
          %s575 = smul.u32 4, %s23
          %s576 = smul.addr %s575, 8
          %s577 = scalar_lea.vmem %s1, %s576
          // Predicated region
          $region95: #{tpu_custom_call.1} parent=93 // pred_check
            _
          $region96: #{tpu_custom_call.1} parent=93 // pred_check_branch
            %579 = sbr.rel (0) target = $region98
          $region97: #{tpu_custom_call.1} parent=93 // pred_region
            // Predicated region
            $region99: #{tpu_custom_call.1} parent=97 // pred_check
              _
            $region100: #{tpu_custom_call.1} parent=97 // pred_check_branch
              %581 = sbr.rel (0) target = $region102
            $region101: #{tpu_custom_call.1} parent=97 // pred_region
              // Predicated region
              $region114: #{tpu_custom_call.1} parent=101 // pred_check
                _
              $region115: #{tpu_custom_call.1} parent=101 // pred_check_branch
                %658 = sbr.rel (0) target = $region117
              $region116: #{tpu_custom_call.1} parent=101 // pred_region
                loop: start=0, step=1, limit=1
                $region118: #{tpu_custom_call.1} parent=116 // loop_pre_header
                  _
                $region119: #{tpu_custom_call.1} parent=116 // loop_header
                  %s660 = sphi 0, %s664
                  %p661 = scmp.ge.s32.totalorder %s660, 1
                  %s665 = sphi %s577, %s577
                  %s666 = sphi %s574, %s574
                $region120: #{tpu_custom_call.1} parent=116 // loop_header_branch
                  %663 = sbr.rel (%p661) target = $region124
                $region121: #{tpu_custom_call.1} parent=116 // loop_body
                  %v667 = vld [vmem:[%s665] sm:$0xff]
                  %668 = vst [vmem:[%s666] sm:$0xff] %v667
                  %v669 = vld [vmem:[%s665 + $0x8] sm:$0xff]
                  %670 = vst [vmem:[%s666 + $0x8] sm:$0xff] %v669
                  %v671 = vld [vmem:[%s665 + $0x10] sm:$0xff]
                  %672 = vst [vmem:[%s666 + $0x10] sm:$0xff] %v671
                  %v673 = vld [vmem:[%s665 + $0x18] sm:$0xff]
                  %674 = vst [vmem:[%s666 + $0x18] sm:$0xff] %v673
                  %v675 = vld [vmem:[%s665 + $0x80] sm:$0xff]
                  %676 = vst [vmem:[%s666 + $0x20] sm:$0xff] %v675
                  %v677 = vld [vmem:[%s665 + $0x88] sm:$0xff]
                  %678 = vst [vmem:[%s666 + $0x28] sm:$0xff] %v677
                  %v679 = vld [vmem:[%s665 + $0x90] sm:$0xff]
                  %680 = vst [vmem:[%s666 + $0x30] sm:$0xff] %v679
                  %v681 = vld [vmem:[%s665 + $0x98] sm:$0xff]
                  %682 = vst [vmem:[%s666 + $0x38] sm:$0xff] %v681
                  %v683 = vld [vmem:[%s665 + $0x100] sm:$0xff]
                  %684 = vst [vmem:[%s666 + $0x40] sm:$0xff] %v683
                  %v685 = vld [vmem:[%s665 + $0x108] sm:$0xff]
                  %686 = vst [vmem:[%s666 + $0x48] sm:$0xff] %v685
                  %v687 = vld [vmem:[%s665 + $0x110] sm:$0xff]
                  %688 = vst [vmem:[%s666 + $0x50] sm:$0xff] %v687
                  %v689 = vld [vmem:[%s665 + $0x118] sm:$0xff]
                  %690 = vst [vmem:[%s666 + $0x58] sm:$0xff] %v689
                  %v691 = vld [vmem:[%s665 + $0x180] sm:$0xff]
                  %692 = vst [vmem:[%s666 + $0x60] sm:$0xff] %v691
                  %v693 = vld [vmem:[%s665 + $0x188] sm:$0xff]
                  %694 = vst [vmem:[%s666 + $0x68] sm:$0xff] %v693
                  %v695 = vld [vmem:[%s665 + $0x190] sm:$0xff]
                  %696 = vst [vmem:[%s666 + $0x70] sm:$0xff] %v695
                  %v697 = vld [vmem:[%s665 + $0x198] sm:$0xff]
                  %698 = vst [vmem:[%s666 + $0x78] sm:$0xff] %v697
                  %v699 = vld [vmem:[%s665 + $0x200] sm:$0xff]
                  %700 = vst [vmem:[%s666 + $0x80] sm:$0xff] %v699
                  %v701 = vld [vmem:[%s665 + $0x208] sm:$0xff]
                  %702 = vst [vmem:[%s666 + $0x88] sm:$0xff] %v701
                  %v703 = vld [vmem:[%s665 + $0x210] sm:$0xff]
                  %704 = vst [vmem:[%s666 + $0x90] sm:$0xff] %v703
                  %v705 = vld [vmem:[%s665 + $0x218] sm:$0xff]
                  %706 = vst [vmem:[%s666 + $0x98] sm:$0xff] %v705
                  %v707 = vld [vmem:[%s665 + $0x280] sm:$0xff]
                  %708 = vst [vmem:[%s666 + $0xa0] sm:$0xff] %v707
                  %v709 = vld [vmem:[%s665 + $0x288] sm:$0xff]
                  %710 = vst [vmem:[%s666 + $0xa8] sm:$0xff] %v709
                  %v711 = vld [vmem:[%s665 + $0x290] sm:$0xff]
                  %712 = vst [vmem:[%s666 + $0xb0] sm:$0xff] %v711
                  %v713 = vld [vmem:[%s665 + $0x298] sm:$0xff]
                  %714 = vst [vmem:[%s666 + $0xb8] sm:$0xff] %v713
                  %v715 = vld [vmem:[%s665 + $0x300] sm:$0xff]
                  %716 = vst [vmem:[%s666 + $0xc0] sm:$0xff] %v715
                  %v717 = vld [vmem:[%s665 + $0x308] sm:$0xff]
                  %718 = vst [vmem:[%s666 + $0xc8] sm:$0xff] %v717
                  %v719 = vld [vmem:[%s665 + $0x310] sm:$0xff]
                  %720 = vst [vmem:[%s666 + $0xd0] sm:$0xff] %v719
                  %v721 = vld [vmem:[%s665 + $0x318] sm:$0xff]
                  %722 = vst [vmem:[%s666 + $0xd8] sm:$0xff] %v721
                  %v723 = vld [vmem:[%s665 + $0x380] sm:$0xff]
                  %724 = vst [vmem:[%s666 + $0xe0] sm:$0xff] %v723
                  %v725 = vld [vmem:[%s665 + $0x388] sm:$0xff]
                  %726 = vst [vmem:[%s666 + $0xe8] sm:$0xff] %v725
                  %v727 = vld [vmem:[%s665 + $0x390] sm:$0xff]
                  %728 = vst [vmem:[%s666 + $0xf0] sm:$0xff] %v727
                  %v729 = vld [vmem:[%s665 + $0x398] sm:$0xff]
                  %730 = vst [vmem:[%s666 + $0xf8] sm:$0xff] %v729
                $region122: #{tpu_custom_call.1} parent=116 // loop_footer
                  %s664 = sadd.s32 1, %s660
                $region123: #{tpu_custom_call.1} parent=116 // loop_footer_branch
                  %659 = sbr.rel target = $region119
                $region124: #{tpu_custom_call.1} parent=116 // loop_exit
                  _
              $region117: #{tpu_custom_call.1} parent=101 // pred_fallthru
                _
              // Predicated region
              $region125: #{tpu_custom_call.1} parent=101 // pred_check
                _
              $region126: #{tpu_custom_call.1} parent=101 // pred_check_branch
                %732 = sbr.rel target = $region128
              $region127: #{tpu_custom_call.1} parent=101 // pred_region
                _
              $region128: #{tpu_custom_call.1} parent=101 // pred_fallthru
                _
            $region102: #{tpu_custom_call.1} parent=97 // pred_fallthru
              _
            // Predicated region
            $region103: #{tpu_custom_call.1} parent=97 // pred_check
              _
            $region104: #{tpu_custom_call.1} parent=97 // pred_check_branch
              %583 = sbr.rel target = $region106
            $region105: #{tpu_custom_call.1} parent=97 // pred_region
              loop: start=0, step=1, limit=1
              $region107: #{tpu_custom_call.1} parent=105 // loop_pre_header
                _
              $region108: #{tpu_custom_call.1} parent=105 // loop_header
                %s586 = sphi 0, %s590
                %p587 = scmp.ge.s32.totalorder %s586, 1
                %s591 = sphi %s577, %s577
                %s592 = sphi %s574, %s574
              $region109: #{tpu_custom_call.1} parent=105 // loop_header_branch
                %589 = sbr.rel (%p587) target = $region113
              $region110: #{tpu_custom_call.1} parent=105 // loop_body
                %v593 = vld [vmem:[%s591] sm:$0xff]
                %594 = vst [vmem:[%s592] sm:$0xff] %v593
                %v595 = vld [vmem:[%s591 + $0x8] sm:$0xff]
                %596 = vst [vmem:[%s592 + $0x8] sm:$0xff] %v595
                %v597 = vld [vmem:[%s591 + $0x10] sm:$0xff]
                %598 = vst [vmem:[%s592 + $0x10] sm:$0xff] %v597
                %v599 = vld [vmem:[%s591 + $0x18] sm:$0xff]
                %600 = vst [vmem:[%s592 + $0x18] sm:$0xff] %v599
                %v601 = vld [vmem:[%s591 + $0x80] sm:$0xff]
                %602 = vst [vmem:[%s592 + $0x20] sm:$0xff] %v601
                %v603 = vld [vmem:[%s591 + $0x88] sm:$0xff]
                %604 = vst [vmem:[%s592 + $0x28] sm:$0xff] %v603
                %v605 = vld [vmem:[%s591 + $0x90] sm:$0xff]
                %606 = vst [vmem:[%s592 + $0x30] sm:$0xff] %v605
                %v607 = vld [vmem:[%s591 + $0x98] sm:$0xff]
                %608 = vst [vmem:[%s592 + $0x38] sm:$0xff] %v607
                %v609 = vld [vmem:[%s591 + $0x100] sm:$0xff]
                %610 = vst [vmem:[%s592 + $0x40] sm:$0xff] %v609
                %v611 = vld [vmem:[%s591 + $0x108] sm:$0xff]
                %612 = vst [vmem:[%s592 + $0x48] sm:$0xff] %v611
                %v613 = vld [vmem:[%s591 + $0x110] sm:$0xff]
                %614 = vst [vmem:[%s592 + $0x50] sm:$0xff] %v613
                %v615 = vld [vmem:[%s591 + $0x118] sm:$0xff]
                %616 = vst [vmem:[%s592 + $0x58] sm:$0xff] %v615
                %v617 = vld [vmem:[%s591 + $0x180] sm:$0xff]
                %618 = vst [vmem:[%s592 + $0x60] sm:$0xff] %v617
                %v619 = vld [vmem:[%s591 + $0x188] sm:$0xff]
                %620 = vst [vmem:[%s592 + $0x68] sm:$0xff] %v619
                %v621 = vld [vmem:[%s591 + $0x190] sm:$0xff]
                %622 = vst [vmem:[%s592 + $0x70] sm:$0xff] %v621
                %v623 = vld [vmem:[%s591 + $0x198] sm:$0xff]
                %624 = vst [vmem:[%s592 + $0x78] sm:$0xff] %v623
                %v625 = vld [vmem:[%s591 + $0x200] sm:$0xff]
                %626 = vst [vmem:[%s592 + $0x80] sm:$0xff] %v625
                %v627 = vld [vmem:[%s591 + $0x208] sm:$0xff]
                %628 = vst [vmem:[%s592 + $0x88] sm:$0xff] %v627
                %v629 = vld [vmem:[%s591 + $0x210] sm:$0xff]
                %630 = vst [vmem:[%s592 + $0x90] sm:$0xff] %v629
                %v631 = vld [vmem:[%s591 + $0x218] sm:$0xff]
                %632 = vst [vmem:[%s592 + $0x98] sm:$0xff] %v631
                %v633 = vld [vmem:[%s591 + $0x280] sm:$0xff]
                %634 = vst [vmem:[%s592 + $0xa0] sm:$0xff] %v633
                %v635 = vld [vmem:[%s591 + $0x288] sm:$0xff]
                %636 = vst [vmem:[%s592 + $0xa8] sm:$0xff] %v635
                %v637 = vld [vmem:[%s591 + $0x290] sm:$0xff]
                %638 = vst [vmem:[%s592 + $0xb0] sm:$0xff] %v637
                %v639 = vld [vmem:[%s591 + $0x298] sm:$0xff]
                %640 = vst [vmem:[%s592 + $0xb8] sm:$0xff] %v639
                %v641 = vld [vmem:[%s591 + $0x300] sm:$0xff]
                %642 = vst [vmem:[%s592 + $0xc0] sm:$0xff] %v641
                %v643 = vld [vmem:[%s591 + $0x308] sm:$0xff]
                %644 = vst [vmem:[%s592 + $0xc8] sm:$0xff] %v643
                %v645 = vld [vmem:[%s591 + $0x310] sm:$0xff]
                %646 = vst [vmem:[%s592 + $0xd0] sm:$0xff] %v645
                %v647 = vld [vmem:[%s591 + $0x318] sm:$0xff]
                %648 = vst [vmem:[%s592 + $0xd8] sm:$0xff] %v647
                %v649 = vld [vmem:[%s591 + $0x380] sm:$0xff]
                %650 = vst [vmem:[%s592 + $0xe0] sm:$0xff] %v649
                %v651 = vld [vmem:[%s591 + $0x388] sm:$0xff]
                %652 = vst [vmem:[%s592 + $0xe8] sm:$0xff] %v651
                %v653 = vld [vmem:[%s591 + $0x390] sm:$0xff]
                %654 = vst [vmem:[%s592 + $0xf0] sm:$0xff] %v653
                %v655 = vld [vmem:[%s591 + $0x398] sm:$0xff]
                %656 = vst [vmem:[%s592 + $0xf8] sm:$0xff] %v655
              $region111: #{tpu_custom_call.1} parent=105 // loop_footer
                %s590 = sadd.s32 1, %s586
              $region112: #{tpu_custom_call.1} parent=105 // loop_footer_branch
                %585 = sbr.rel target = $region108
              $region113: #{tpu_custom_call.1} parent=105 // loop_exit
                _
            $region106: #{tpu_custom_call.1} parent=97 // pred_fallthru
              _
          $region98: #{tpu_custom_call.1} parent=93 // pred_fallthru
            _
          %733 = vnop
        $region94: #{tpu_custom_call.1} parent=51 // pred_fallthru
          _
        // Predicated region
        $region129: #{tpu_custom_call.1} parent=51 // pred_check
          %p734 = pneg %p95
        $region130: #{tpu_custom_call.1} parent=51 // pred_check_branch
          %736 = sbr.rel (%p734) target = $region132
        $region131: #{tpu_custom_call.1} parent=51 // pred_region
          %s737 = sand.u32 %s85, 1
          %s738 = scalar_lea.sflag [#allocation6], %s737
          %s739 = sand.u32 %s85, 1
          %s740 = smul.addr %s739, 32
          %s741 = scalar_lea.vmem [#allocation5], %s740
          %s742 = smul.u32 4, %s23
          %s744 = ssub.s32 512, 512
          %745 = vsyncadd %s738, %s744
          %s746 = smul.addr %s742, 128
          %s747 = scalar_lea.hbm %s2, %s746
          %s748 = sshll.u32 %s741, 4
          %s749 = int_to_ptr.vmem [resolvable:$true] %s748
          %754 = dma.hbm_to_vmem [thread:$0]  %s747, 512, %s749, %s738, 128, 128, 8
        $region132: #{tpu_custom_call.1} parent=51 // pred_fallthru
          _
      $region52: #{tpu_custom_call.1} parent=5 // pred_fallthru
        _
      %p755 = scmp.le.s32.totalorder 1, %s23
      %p756 = scmp.lt.s32.totalorder %s23, 5
      %p757 = pnand %p755, %p756
      %p758 = pneg %p757
      // Predicated region
      $region133: #{tpu_custom_call.1} parent=5 // pred_check
        _
      $region134: #{tpu_custom_call.1} parent=5 // pred_check_branch
        %760 = sbr.rel (%p757) target = $region136
      $region135: #{tpu_custom_call.1} parent=5 // pred_region
        %s761 = ssub.s32 %s23, 1
        %s762 = sand.u32 %s36, 1
        %s763 = sand.u32 %s36, 1
        %s764 = smul.addr %s763, 256
        %s765 = scalar_lea.vmem [#allocation3], %s764
        // Predicated region
        $region137: #{tpu_custom_call.1} parent=135 // pred_check
          %p766 = pneg %p49
        $region138: #{tpu_custom_call.1} parent=135 // pred_check_branch
          %768 = sbr.rel (%p766) target = $region140
        $region139: #{tpu_custom_call.1} parent=135 // pred_region
          _
        $region140: #{tpu_custom_call.1} parent=135 // pred_fallthru
          _
        %s769 = sand.u32 %s62, 1
        %s770 = sand.u32 %s62, 1
        %s771 = smul.addr %s770, 256
        %s772 = scalar_lea.vmem [#allocation4], %s771
        // Predicated region
        $region141: #{tpu_custom_call.1} parent=135 // pred_check
          %p773 = pneg %p75
        $region142: #{tpu_custom_call.1} parent=135 // pred_check_branch
          %775 = sbr.rel (%p773) target = $region144
        $region143: #{tpu_custom_call.1} parent=135 // pred_region
          _
        $region144: #{tpu_custom_call.1} parent=135 // pred_fallthru
          _
        %s776 = sand.u32 %s88, 1
        %s777 = scalar_lea.sflag [#allocation6], %s776
        %s778 = sand.u32 %s88, 1
        %s779 = smul.addr %s778, 32
        %s780 = scalar_lea.vmem [#allocation5], %s779
        // Predicated region
        $region145: #{tpu_custom_call.1} parent=135 // pred_check
          %p781 = pneg %p101
        $region146: #{tpu_custom_call.1} parent=135 // pred_check_branch
          %783 = sbr.rel (%p781) target = $region148
        $region147: #{tpu_custom_call.1} parent=135 // pred_region
          %784 = dma.done %s777, 512
        $region148: #{tpu_custom_call.1} parent=135 // pred_fallthru
          _
        // Predicated region
        $region149: #{tpu_custom_call.1} parent=135 // pred_check
          %p785 = pneg %p122
        $region150: #{tpu_custom_call.1} parent=135 // pred_check_branch
          %787 = sbr.rel (%p785) target = $region152
        $region151: #{tpu_custom_call.1} parent=135 // pred_region
          %788 = dma.done [#allocation8], 8192
        $region152: #{tpu_custom_call.1} parent=135 // pred_fallthru
          _
        // Predicated region
        $region153: #{tpu_custom_call.1} parent=135 // pred_check
          %p789 = pneg %p143
        $region154: #{tpu_custom_call.1} parent=135 // pred_check_branch
          %791 = sbr.rel (%p789) target = $region156
        $region155: #{tpu_custom_call.1} parent=135 // pred_region
          %792 = dma.done [#allocation8], 8192
        $region156: #{tpu_custom_call.1} parent=135 // pred_fallthru
          _
        // Predicated region
        $region157: #{tpu_custom_call.1} parent=135 // pred_check
          %p793 = pneg %p185
        $region158: #{tpu_custom_call.1} parent=135 // pred_check_branch
          %795 = sbr.rel (%p793) target = $region160
        $region159: #{tpu_custom_call.1} parent=135 // pred_region
          %796 = dma.done [#allocation11], 16384
        $region160: #{tpu_custom_call.1} parent=135 // pred_fallthru
          _
        // Predicated region
        $region161: #{tpu_custom_call.1} parent=135 // pred_check
          %p797 = pneg %p269
        $region162: #{tpu_custom_call.1} parent=135 // pred_check_branch
          %799 = sbr.rel (%p797) target = $region164
        $region163: #{tpu_custom_call.1} parent=135 // pred_region
          %800 = dma.done [#allocation11], 4096
        $region164: #{tpu_custom_call.1} parent=135 // pred_fallthru
          _
        %s801 = sand.u32 %s36, 1
        %s802 = sand.u32 %s36, 1
        %s803 = smul.addr %s802, 256
        %s804 = scalar_lea.vmem [#allocation3], %s803
        %p805 = pneg %p49
        %p806 = pneg %p46
        %s807 = sand.u32 %s62, 1
        %s808 = sand.u32 %s62, 1
        %s809 = smul.addr %s808, 256
        %s810 = scalar_lea.vmem [#allocation4], %s809
        %p811 = pneg %p75
        %p812 = pneg %p72
        %s813 = sand.u32 %s88, 1
        %s814 = scalar_lea.sflag [#allocation6], %s813
        %s815 = sand.u32 %s88, 1
        %s816 = smul.addr %s815, 32
        %s817 = scalar_lea.vmem [#allocation5], %s816
        %p818 = pneg %p101
        %p819 = pneg %p98
        %p820 = pneg %p122
        %p821 = pneg %p119
        %p822 = pneg %p143
        %p823 = pneg %p140
        %p824 = pneg %p164
        %p825 = pneg %p161
        %p826 = pneg %p185
        %p827 = pneg %p182
        %p828 = pneg %p206
        %p829 = pneg %p203
        %p830 = pneg %p227
        %p831 = pneg %p224
        %p832 = pneg %p248
        %p833 = pneg %p245
        %p834 = pneg %p269
        %p835 = pneg %p266
        %p836 = pneg %p290
        %p837 = pneg %p287
        %p838 = pneg %p316
        %p839 = pneg %p313
        %s840 = smul.u32 4, %s28
        %p841 = scmp.lt.s32.totalorder %s840, 15
        %s842 = scalar_select %p841, %s840, 15
        %s843 = smul.addr %s842, 8
        %s844 = scalar_lea.vmem %s12, %s843
        %s845 = smul.u32 4, %s28
        %s846 = smul.u32 4, %s28
        %s847 = smul.u32 4, %s28
        %s848 = smul.u32 4, %s28
        %p849 = scmp.lt.s32.totalorder %s848, 15
        %s850 = scalar_select %p849, %s848, 15
        %s851 = smul.addr %s850, 8
        %s852 = scalar_lea.vmem %s12, %s851
        %s853 = smul.u32 4, %s28
        %v854 = vld [vmem:[#allocation9] sm:$0xff]
        %v855 = vld [vmem:[#allocation9 + $0x8] sm:$0xff]
        %v856 = vld [vmem:[#allocation9 + $0x10] sm:$0xff]
        %v857 = vld [vmem:[#allocation9 + $0x18] sm:$0xff]
        %v858 = vld [vmem:[#allocation9 + $0x20] sm:$0xff]
        %v859 = vld [vmem:[#allocation9 + $0x28] sm:$0xff]
        %v860 = vld [vmem:[#allocation9 + $0x30] sm:$0xff]
        %v861 = vld [vmem:[#allocation9 + $0x38] sm:$0xff]
        %v862 = vld [vmem:[#allocation9 + $0x40] sm:$0xff]
        %v863 = vld [vmem:[#allocation9 + $0x48] sm:$0xff]
        %v864 = vld [vmem:[#allocation9 + $0x50] sm:$0xff]
        %v865 = vld [vmem:[#allocation9 + $0x58] sm:$0xff]
        %v866 = vld [vmem:[#allocation9 + $0x60] sm:$0xff]
        %v867 = vld [vmem:[#allocation9 + $0x68] sm:$0xff]
        %v868 = vld [vmem:[#allocation9 + $0x70] sm:$0xff]
        %v869 = vld [vmem:[#allocation9 + $0x78] sm:$0xff]
        %v870 = vld [vmem:[#allocation9 + $0x80] sm:$0xff]
        %v871 = vld [vmem:[#allocation9 + $0x88] sm:$0xff]
        %v872 = vld [vmem:[#allocation9 + $0x90] sm:$0xff]
        %v873 = vld [vmem:[#allocation9 + $0x98] sm:$0xff]
        %v874 = vld [vmem:[#allocation9 + $0xa0] sm:$0xff]
        %v875 = vld [vmem:[#allocation9 + $0xa8] sm:$0xff]
        %v876 = vld [vmem:[#allocation9 + $0xb0] sm:$0xff]
        %v877 = vld [vmem:[#allocation9 + $0xb8] sm:$0xff]
        %v878 = vld [vmem:[#allocation9 + $0xc0] sm:$0xff]
        %v879 = vld [vmem:[#allocation9 + $0xc8] sm:$0xff]
        %v880 = vld [vmem:[#allocation9 + $0xd0] sm:$0xff]
        %v881 = vld [vmem:[#allocation9 + $0xd8] sm:$0xff]
        %v882 = vld [vmem:[#allocation9 + $0xe0] sm:$0xff]
        %v883 = vld [vmem:[#allocation9 + $0xe8] sm:$0xff]
        %v884 = vld [vmem:[#allocation9 + $0xf0] sm:$0xff]
        %v885 = vld [vmem:[#allocation9 + $0xf8] sm:$0xff]
        %v886 = vld [vmem:[#allocation9 + $0x100] sm:$0xff]
        %v887 = vld [vmem:[#allocation9 + $0x108] sm:$0xff]
        %v888 = vld [vmem:[#allocation9 + $0x110] sm:$0xff]
        %v889 = vld [vmem:[#allocation9 + $0x118] sm:$0xff]
        %v890 = vld [vmem:[#allocation9 + $0x120] sm:$0xff]
        %v891 = vld [vmem:[#allocation9 + $0x128] sm:$0xff]
        %v892 = vld [vmem:[#allocation9 + $0x130] sm:$0xff]
        %v893 = vld [vmem:[#allocation9 + $0x138] sm:$0xff]
        %v894 = vld [vmem:[#allocation9 + $0x140] sm:$0xff]
        %v895 = vld [vmem:[#allocation9 + $0x148] sm:$0xff]
        %v896 = vld [vmem:[#allocation9 + $0x150] sm:$0xff]
        %v897 = vld [vmem:[#allocation9 + $0x158] sm:$0xff]
        %v898 = vld [vmem:[#allocation9 + $0x160] sm:$0xff]
        %v899 = vld [vmem:[#allocation9 + $0x168] sm:$0xff]
        %v900 = vld [vmem:[#allocation9 + $0x170] sm:$0xff]
        %v901 = vld [vmem:[#allocation9 + $0x178] sm:$0xff]
        %v902 = vld [vmem:[#allocation9 + $0x180] sm:$0xff]
        %v903 = vld [vmem:[#allocation9 + $0x188] sm:$0xff]
        %v904 = vld [vmem:[#allocation9 + $0x190] sm:$0xff]
        %v905 = vld [vmem:[#allocation9 + $0x198] sm:$0xff]
        %v906 = vld [vmem:[#allocation9 + $0x1a0] sm:$0xff]
        %v907 = vld [vmem:[#allocation9 + $0x1a8] sm:$0xff]
        %v908 = vld [vmem:[#allocation9 + $0x1b0] sm:$0xff]
        %v909 = vld [vmem:[#allocation9 + $0x1b8] sm:$0xff]
        %v910 = vld [vmem:[#allocation9 + $0x1c0] sm:$0xff]
        %v911 = vld [vmem:[#allocation9 + $0x1c8] sm:$0xff]
        %v912 = vld [vmem:[#allocation9 + $0x1d0] sm:$0xff]
        %v913 = vld [vmem:[#allocation9 + $0x1d8] sm:$0xff]
        %v914 = vld [vmem:[#allocation9 + $0x1e0] sm:$0xff]
        %v915 = vld [vmem:[#allocation9 + $0x1e8] sm:$0xff]
        %v916 = vld [vmem:[#allocation9 + $0x1f0] sm:$0xff]
        %v917 = vld [vmem:[#allocation9 + $0x1f8] sm:$0xff]
        %v918 = vld [vmem:[#allocation10] sm:$0xff]
        %v919 = vld [vmem:[#allocation10 + $0x8] sm:$0xff]
        %v920 = vld [vmem:[#allocation10 + $0x10] sm:$0xff]
        %v921 = vld [vmem:[#allocation10 + $0x18] sm:$0xff]
        %v922 = vld [vmem:[#allocation10 + $0x20] sm:$0xff]
        %v923 = vld [vmem:[#allocation10 + $0x28] sm:$0xff]
        %v924 = vld [vmem:[#allocation10 + $0x30] sm:$0xff]
        %v925 = vld [vmem:[#allocation10 + $0x38] sm:$0xff]
        %v926 = vld [vmem:[#allocation10 + $0x40] sm:$0xff]
        %v927 = vld [vmem:[#allocation10 + $0x48] sm:$0xff]
        %v928 = vld [vmem:[#allocation10 + $0x50] sm:$0xff]
        %v929 = vld [vmem:[#allocation10 + $0x58] sm:$0xff]
        %v930 = vld [vmem:[#allocation10 + $0x60] sm:$0xff]
        %v931 = vld [vmem:[#allocation10 + $0x68] sm:$0xff]
        %v932 = vld [vmem:[#allocation10 + $0x70] sm:$0xff]
        %v933 = vld [vmem:[#allocation10 + $0x78] sm:$0xff]
        %v934 = vld [vmem:[#allocation10 + $0x80] sm:$0xff]
        %v935 = vld [vmem:[#allocation10 + $0x88] sm:$0xff]
        %v936 = vld [vmem:[#allocation10 + $0x90] sm:$0xff]
        %v937 = vld [vmem:[#allocation10 + $0x98] sm:$0xff]
        %v938 = vld [vmem:[#allocation10 + $0xa0] sm:$0xff]
        %v939 = vld [vmem:[#allocation10 + $0xa8] sm:$0xff]
        %v940 = vld [vmem:[#allocation10 + $0xb0] sm:$0xff]
        %v941 = vld [vmem:[#allocation10 + $0xb8] sm:$0xff]
        %v942 = vld [vmem:[#allocation10 + $0xc0] sm:$0xff]
        %v943 = vld [vmem:[#allocation10 + $0xc8] sm:$0xff]
        %v944 = vld [vmem:[#allocation10 + $0xd0] sm:$0xff]
        %v945 = vld [vmem:[#allocation10 + $0xd8] sm:$0xff]
        %v946 = vld [vmem:[#allocation10 + $0xe0] sm:$0xff]
        %v947 = vld [vmem:[#allocation10 + $0xe8] sm:$0xff]
        %v948 = vld [vmem:[#allocation10 + $0xf0] sm:$0xff]
        %v949 = vld [vmem:[#allocation10 + $0xf8] sm:$0xff]
        %v950 = vld [vmem:[#allocation10 + $0x100] sm:$0xff]
        %v951 = vld [vmem:[#allocation10 + $0x108] sm:$0xff]
        %v952 = vld [vmem:[#allocation10 + $0x110] sm:$0xff]
        %v953 = vld [vmem:[#allocation10 + $0x118] sm:$0xff]
        %v954 = vld [vmem:[#allocation10 + $0x120] sm:$0xff]
        %v955 = vld [vmem:[#allocation10 + $0x128] sm:$0xff]
        %v956 = vld [vmem:[#allocation10 + $0x130] sm:$0xff]
        %v957 = vld [vmem:[#allocation10 + $0x138] sm:$0xff]
        %v958 = vld [vmem:[#allocation10 + $0x140] sm:$0xff]
        %v959 = vld [vmem:[#allocation10 + $0x148] sm:$0xff]
        %v960 = vld [vmem:[#allocation10 + $0x150] sm:$0xff]
        %v961 = vld [vmem:[#allocation10 + $0x158] sm:$0xff]
        %v962 = vld [vmem:[#allocation10 + $0x160] sm:$0xff]
        %v963 = vld [vmem:[#allocation10 + $0x168] sm:$0xff]
        %v964 = vld [vmem:[#allocation10 + $0x170] sm:$0xff]
        %v965 = vld [vmem:[#allocation10 + $0x178] sm:$0xff]
        %v966 = vld [vmem:[#allocation10 + $0x180] sm:$0xff]
        %v967 = vld [vmem:[#allocation10 + $0x188] sm:$0xff]
        %v968 = vld [vmem:[#allocation10 + $0x190] sm:$0xff]
        %v969 = vld [vmem:[#allocation10 + $0x198] sm:$0xff]
        %v970 = vld [vmem:[#allocation10 + $0x1a0] sm:$0xff]
        %v971 = vld [vmem:[#allocation10 + $0x1a8] sm:$0xff]
        %v972 = vld [vmem:[#allocation10 + $0x1b0] sm:$0xff]
        %v973 = vld [vmem:[#allocation10 + $0x1b8] sm:$0xff]
        %v974 = vld [vmem:[#allocation10 + $0x1c0] sm:$0xff]
        %v975 = vld [vmem:[#allocation10 + $0x1c8] sm:$0xff]
        %v976 = vld [vmem:[#allocation10 + $0x1d0] sm:$0xff]
        %v977 = vld [vmem:[#allocation10 + $0x1d8] sm:$0xff]
        %v978 = vld [vmem:[#allocation10 + $0x1e0] sm:$0xff]
        %v979 = vld [vmem:[#allocation10 + $0x1e8] sm:$0xff]
        %v980 = vld [vmem:[#allocation10 + $0x1f0] sm:$0xff]
        %v981 = vld [vmem:[#allocation10 + $0x1f8] sm:$0xff]
        %v982 = vld [vmem:[#allocation10 + $0x200] sm:$0xff]
        %v983 = vld [vmem:[#allocation10 + $0x208] sm:$0xff]
        %v984 = vld [vmem:[#allocation10 + $0x210] sm:$0xff]
        %v985 = vld [vmem:[#allocation10 + $0x218] sm:$0xff]
        %v986 = vld [vmem:[#allocation10 + $0x220] sm:$0xff]
        %v987 = vld [vmem:[#allocation10 + $0x228] sm:$0xff]
        %v988 = vld [vmem:[#allocation10 + $0x230] sm:$0xff]
        %v989 = vld [vmem:[#allocation10 + $0x238] sm:$0xff]
        %v990 = vld [vmem:[#allocation10 + $0x240] sm:$0xff]
        %v991 = vld [vmem:[#allocation10 + $0x248] sm:$0xff]
        %v992 = vld [vmem:[#allocation10 + $0x250] sm:$0xff]
        %v993 = vld [vmem:[#allocation10 + $0x258] sm:$0xff]
        %v994 = vld [vmem:[#allocation10 + $0x260] sm:$0xff]
        %v995 = vld [vmem:[#allocation10 + $0x268] sm:$0xff]
        %v996 = vld [vmem:[#allocation10 + $0x270] sm:$0xff]
        %v997 = vld [vmem:[#allocation10 + $0x278] sm:$0xff]
        %v998 = vld [vmem:[#allocation10 + $0x280] sm:$0xff]
        %v999 = vld [vmem:[#allocation10 + $0x288] sm:$0xff]
        %v1000 = vld [vmem:[#allocation10 + $0x290] sm:$0xff]
        %v1001 = vld [vmem:[#allocation10 + $0x298] sm:$0xff]
        %v1002 = vld [vmem:[#allocation10 + $0x2a0] sm:$0xff]
        %v1003 = vld [vmem:[#allocation10 + $0x2a8] sm:$0xff]
        %v1004 = vld [vmem:[#allocation10 + $0x2b0] sm:$0xff]
        %v1005 = vld [vmem:[#allocation10 + $0x2b8] sm:$0xff]
        %v1006 = vld [vmem:[#allocation10 + $0x2c0] sm:$0xff]
        %v1007 = vld [vmem:[#allocation10 + $0x2c8] sm:$0xff]
        %v1008 = vld [vmem:[#allocation10 + $0x2d0] sm:$0xff]
        %v1009 = vld [vmem:[#allocation10 + $0x2d8] sm:$0xff]
        %v1010 = vld [vmem:[#allocation10 + $0x2e0] sm:$0xff]
        %v1011 = vld [vmem:[#allocation10 + $0x2e8] sm:$0xff]
        %v1012 = vld [vmem:[#allocation10 + $0x2f0] sm:$0xff]
        %v1013 = vld [vmem:[#allocation10 + $0x2f8] sm:$0xff]
        %v1014 = vld [vmem:[#allocation10 + $0x300] sm:$0xff]
        %v1015 = vld [vmem:[#allocation10 + $0x308] sm:$0xff]
        %v1016 = vld [vmem:[#allocation10 + $0x310] sm:$0xff]
        %v1017 = vld [vmem:[#allocation10 + $0x318] sm:$0xff]
        %v1018 = vld [vmem:[#allocation10 + $0x320] sm:$0xff]
        %v1019 = vld [vmem:[#allocation10 + $0x328] sm:$0xff]
        %v1020 = vld [vmem:[#allocation10 + $0x330] sm:$0xff]
        %v1021 = vld [vmem:[#allocation10 + $0x338] sm:$0xff]
        %v1022 = vld [vmem:[#allocation10 + $0x340] sm:$0xff]
        %v1023 = vld [vmem:[#allocation10 + $0x348] sm:$0xff]
        %v1024 = vld [vmem:[#allocation10 + $0x350] sm:$0xff]
        %v1025 = vld [vmem:[#allocation10 + $0x358] sm:$0xff]
        %v1026 = vld [vmem:[#allocation10 + $0x360] sm:$0xff]
        %v1027 = vld [vmem:[#allocation10 + $0x368] sm:$0xff]
        %v1028 = vld [vmem:[#allocation10 + $0x370] sm:$0xff]
        %v1029 = vld [vmem:[#allocation10 + $0x378] sm:$0xff]
        %v1030 = vld [vmem:[#allocation10 + $0x380] sm:$0xff]
        %v1031 = vld [vmem:[#allocation10 + $0x388] sm:$0xff]
        %v1032 = vld [vmem:[#allocation10 + $0x390] sm:$0xff]
        %v1033 = vld [vmem:[#allocation10 + $0x398] sm:$0xff]
        %v1034 = vld [vmem:[#allocation10 + $0x3a0] sm:$0xff]
        %v1035 = vld [vmem:[#allocation10 + $0x3a8] sm:$0xff]
        %v1036 = vld [vmem:[#allocation10 + $0x3b0] sm:$0xff]
        %v1037 = vld [vmem:[#allocation10 + $0x3b8] sm:$0xff]
        %v1038 = vld [vmem:[#allocation10 + $0x3c0] sm:$0xff]
        %v1039 = vld [vmem:[#allocation10 + $0x3c8] sm:$0xff]
        %v1040 = vld [vmem:[#allocation10 + $0x3d0] sm:$0xff]
        %v1041 = vld [vmem:[#allocation10 + $0x3d8] sm:$0xff]
        %v1042 = vld [vmem:[#allocation10 + $0x3e0] sm:$0xff]
        %v1043 = vld [vmem:[#allocation10 + $0x3e8] sm:$0xff]
        %v1044 = vld [vmem:[#allocation10 + $0x3f0] sm:$0xff]
        %v1045 = vld [vmem:[#allocation10 + $0x3f8] sm:$0xff]
        %v1046 = vld [vmem:[%s7] sm:$0xf]
        %v1047 = vld [vmem:[%s8] sm:$0x1]
        %v1048 = vld [vmem:[%s9] sm:$0x1]
        %v1049 = vld [vmem:[#allocation12] sm:$0xff]
        %v1050 = vld [vmem:[#allocation12 + $0x8] sm:$0xff]
        %v1051 = vld [vmem:[#allocation12 + $0x10] sm:$0xff]
        %v1052 = vld [vmem:[#allocation12 + $0x18] sm:$0xff]
        %v1053 = vld [vmem:[#allocation12 + $0x20] sm:$0xff]
        %v1054 = vld [vmem:[#allocation12 + $0x28] sm:$0xff]
        %v1055 = vld [vmem:[#allocation12 + $0x30] sm:$0xff]
        %v1056 = vld [vmem:[#allocation12 + $0x38] sm:$0xff]
        %v1057 = vld [vmem:[#allocation12 + $0x40] sm:$0xff]
        %v1058 = vld [vmem:[#allocation12 + $0x48] sm:$0xff]
        %v1059 = vld [vmem:[#allocation12 + $0x50] sm:$0xff]
        %v1060 = vld [vmem:[#allocation12 + $0x58] sm:$0xff]
        %v1061 = vld [vmem:[#allocation12 + $0x60] sm:$0xff]
        %v1062 = vld [vmem:[#allocation12 + $0x68] sm:$0xff]
        %v1063 = vld [vmem:[#allocation12 + $0x70] sm:$0xff]
        %v1064 = vld [vmem:[#allocation12 + $0x78] sm:$0xff]
        %v1065 = vld [vmem:[#allocation12 + $0x80] sm:$0xff]
        %v1066 = vld [vmem:[#allocation12 + $0x88] sm:$0xff]
        %v1067 = vld [vmem:[#allocation12 + $0x90] sm:$0xff]
        %v1068 = vld [vmem:[#allocation12 + $0x98] sm:$0xff]
        %v1069 = vld [vmem:[#allocation12 + $0xa0] sm:$0xff]
        %v1070 = vld [vmem:[#allocation12 + $0xa8] sm:$0xff]
        %v1071 = vld [vmem:[#allocation12 + $0xb0] sm:$0xff]
        %v1072 = vld [vmem:[#allocation12 + $0xb8] sm:$0xff]
        %v1073 = vld [vmem:[#allocation12 + $0xc0] sm:$0xff]
        %v1074 = vld [vmem:[#allocation12 + $0xc8] sm:$0xff]
        %v1075 = vld [vmem:[#allocation12 + $0xd0] sm:$0xff]
        %v1076 = vld [vmem:[#allocation12 + $0xd8] sm:$0xff]
        %v1077 = vld [vmem:[#allocation12 + $0xe0] sm:$0xff]
        %v1078 = vld [vmem:[#allocation12 + $0xe8] sm:$0xff]
        %v1079 = vld [vmem:[#allocation12 + $0xf0] sm:$0xff]
        %v1080 = vld [vmem:[#allocation12 + $0xf8] sm:$0xff]
        %v1081 = vld [vmem:[%s11] sm:$0x3]
        %v1082 = vld [vmem:[%s765] sm:$0xff]
        %v1083 = vld [vmem:[%s765 + $0x8] sm:$0xff]
        %v1084 = vld [vmem:[%s765 + $0x10] sm:$0xff]
        %v1085 = vld [vmem:[%s765 + $0x18] sm:$0xff]
        %v1086 = vld [vmem:[%s765 + $0x20] sm:$0xff]
        %v1087 = vld [vmem:[%s765 + $0x28] sm:$0xff]
        %v1088 = vld [vmem:[%s765 + $0x30] sm:$0xff]
        %v1089 = vld [vmem:[%s765 + $0x38] sm:$0xff]
        %v1090 = vld [vmem:[%s765 + $0x40] sm:$0xff]
        %v1091 = vld [vmem:[%s765 + $0x48] sm:$0xff]
        %v1092 = vld [vmem:[%s765 + $0x50] sm:$0xff]
        %v1093 = vld [vmem:[%s765 + $0x58] sm:$0xff]
        %v1094 = vld [vmem:[%s765 + $0x60] sm:$0xff]
        %v1095 = vld [vmem:[%s765 + $0x68] sm:$0xff]
        %v1096 = vld [vmem:[%s765 + $0x70] sm:$0xff]
        %v1097 = vld [vmem:[%s765 + $0x78] sm:$0xff]
        %v1098 = vld [vmem:[%s765 + $0x80] sm:$0xff]
        %v1099 = vld [vmem:[%s765 + $0x88] sm:$0xff]
        %v1100 = vld [vmem:[%s765 + $0x90] sm:$0xff]
        %v1101 = vld [vmem:[%s765 + $0x98] sm:$0xff]
        %v1102 = vld [vmem:[%s765 + $0xa0] sm:$0xff]
        %v1103 = vld [vmem:[%s765 + $0xa8] sm:$0xff]
        %v1104 = vld [vmem:[%s765 + $0xb0] sm:$0xff]
        %v1105 = vld [vmem:[%s765 + $0xb8] sm:$0xff]
        %v1106 = vld [vmem:[%s765 + $0xc0] sm:$0xff]
        %v1107 = vld [vmem:[%s765 + $0xc8] sm:$0xff]
        %v1108 = vld [vmem:[%s765 + $0xd0] sm:$0xff]
        %v1109 = vld [vmem:[%s765 + $0xd8] sm:$0xff]
        %v1110 = vld [vmem:[%s765 + $0xe0] sm:$0xff]
        %v1111 = vld [vmem:[%s765 + $0xe8] sm:$0xff]
        %v1112 = vld [vmem:[%s765 + $0xf0] sm:$0xff]
        %v1113 = vld [vmem:[%s765 + $0xf8] sm:$0xff]
        %v1114 = vld [vmem:[#allocation7] sm:$0xff]
        %v1115 = vld [vmem:[#allocation7 + $0x8] sm:$0xff]
        %v1116 = vld [vmem:[#allocation7 + $0x10] sm:$0xff]
        %v1117 = vld [vmem:[#allocation7 + $0x18] sm:$0xff]
        %v1118 = vld [vmem:[#allocation7 + $0x20] sm:$0xff]
        %v1119 = vld [vmem:[#allocation7 + $0x28] sm:$0xff]
        %v1120 = vld [vmem:[#allocation7 + $0x30] sm:$0xff]
        %v1121 = vld [vmem:[#allocation7 + $0x38] sm:$0xff]
        %v1122 = vld [vmem:[#allocation7 + $0x40] sm:$0xff]
        %v1123 = vld [vmem:[#allocation7 + $0x48] sm:$0xff]
        %v1124 = vld [vmem:[#allocation7 + $0x50] sm:$0xff]
        %v1125 = vld [vmem:[#allocation7 + $0x58] sm:$0xff]
        %v1126 = vld [vmem:[#allocation7 + $0x60] sm:$0xff]
        %v1127 = vld [vmem:[#allocation7 + $0x68] sm:$0xff]
        %v1128 = vld [vmem:[#allocation7 + $0x70] sm:$0xff]
        %v1129 = vld [vmem:[#allocation7 + $0x78] sm:$0xff]
        %v1130 = vld [vmem:[#allocation7 + $0x80] sm:$0xff]
        %v1131 = vld [vmem:[#allocation7 + $0x88] sm:$0xff]
        %v1132 = vld [vmem:[#allocation7 + $0x90] sm:$0xff]
        %v1133 = vld [vmem:[#allocation7 + $0x98] sm:$0xff]
        %v1134 = vld [vmem:[#allocation7 + $0xa0] sm:$0xff]
        %v1135 = vld [vmem:[#allocation7 + $0xa8] sm:$0xff]
        %v1136 = vld [vmem:[#allocation7 + $0xb0] sm:$0xff]
        %v1137 = vld [vmem:[#allocation7 + $0xb8] sm:$0xff]
        %v1138 = vld [vmem:[#allocation7 + $0xc0] sm:$0xff]
        %v1139 = vld [vmem:[#allocation7 + $0xc8] sm:$0xff]
        %v1140 = vld [vmem:[#allocation7 + $0xd0] sm:$0xff]
        %v1141 = vld [vmem:[#allocation7 + $0xd8] sm:$0xff]
        %v1142 = vld [vmem:[#allocation7 + $0xe0] sm:$0xff]
        %v1143 = vld [vmem:[#allocation7 + $0xe8] sm:$0xff]
        %v1144 = vld [vmem:[#allocation7 + $0xf0] sm:$0xff]
        %v1145 = vld [vmem:[#allocation7 + $0xf8] sm:$0xff]
        %v1146 = vld [vmem:[#allocation7 + $0x100] sm:$0xff]
        %v1147 = vld [vmem:[#allocation7 + $0x108] sm:$0xff]
        %v1148 = vld [vmem:[#allocation7 + $0x110] sm:$0xff]
        %v1149 = vld [vmem:[#allocation7 + $0x118] sm:$0xff]
        %v1150 = vld [vmem:[#allocation7 + $0x120] sm:$0xff]
        %v1151 = vld [vmem:[#allocation7 + $0x128] sm:$0xff]
        %v1152 = vld [vmem:[#allocation7 + $0x130] sm:$0xff]
        %v1153 = vld [vmem:[#allocation7 + $0x138] sm:$0xff]
        %v1154 = vld [vmem:[#allocation7 + $0x140] sm:$0xff]
        %v1155 = vld [vmem:[#allocation7 + $0x148] sm:$0xff]
        %v1156 = vld [vmem:[#allocation7 + $0x150] sm:$0xff]
        %v1157 = vld [vmem:[#allocation7 + $0x158] sm:$0xff]
        %v1158 = vld [vmem:[#allocation7 + $0x160] sm:$0xff]
        %v1159 = vld [vmem:[#allocation7 + $0x168] sm:$0xff]
        %v1160 = vld [vmem:[#allocation7 + $0x170] sm:$0xff]
        %v1161 = vld [vmem:[#allocation7 + $0x178] sm:$0xff]
        %v1162 = vld [vmem:[#allocation7 + $0x180] sm:$0xff]
        %v1163 = vld [vmem:[#allocation7 + $0x188] sm:$0xff]
        %v1164 = vld [vmem:[#allocation7 + $0x190] sm:$0xff]
        %v1165 = vld [vmem:[#allocation7 + $0x198] sm:$0xff]
        %v1166 = vld [vmem:[#allocation7 + $0x1a0] sm:$0xff]
        %v1167 = vld [vmem:[#allocation7 + $0x1a8] sm:$0xff]
        %v1168 = vld [vmem:[#allocation7 + $0x1b0] sm:$0xff]
        %v1169 = vld [vmem:[#allocation7 + $0x1b8] sm:$0xff]
        %v1170 = vld [vmem:[#allocation7 + $0x1c0] sm:$0xff]
        %v1171 = vld [vmem:[#allocation7 + $0x1c8] sm:$0xff]
        %v1172 = vld [vmem:[#allocation7 + $0x1d0] sm:$0xff]
        %v1173 = vld [vmem:[#allocation7 + $0x1d8] sm:$0xff]
        %v1174 = vld [vmem:[#allocation7 + $0x1e0] sm:$0xff]
        %v1175 = vld [vmem:[#allocation7 + $0x1e8] sm:$0xff]
        %v1176 = vld [vmem:[#allocation7 + $0x1f0] sm:$0xff]
        %v1177 = vld [vmem:[#allocation7 + $0x1f8] sm:$0xff]
        %v1178 = vld [vmem:[%s5] sm:$0xf]
        %v1180 = vlaneseq
        %v1181 = vshrl.u32 %v1180, 7
        %v1182 = vsub.s32 0, %v1181
        %v1183 = vrot.slane %v1178, %v1182
        %v1184 = vlaneseq
        %v1185 = vshrl.u32 %v1184, 7
        %v1186 = vsub.s32 1, %v1185
        %v1187 = vrot.slane %v1178, %v1186
        %v1188 = vlaneseq
        %v1189 = vshrl.u32 %v1188, 7
        %v1190 = vsub.s32 2, %v1189
        %v1191 = vrot.slane %v1178, %v1190
        %v1192 = vlaneseq
        %v1193 = vshrl.u32 %v1192, 7
        %v1194 = vsub.s32 3, %v1193
        %v1195 = vrot.slane %v1178, %v1194
        %1200 = vmatprep.subr.mxu0 %v1115
        %1201 = vmatpush1.msra.mxu0 %v1114
        %1202 = vmatprep.subr.mxu0 %v1119
        %1203 = vmatpush1.msra.mxu0 %v1118
        %1204 = vmatprep.subr.mxu0 %v1123
        %1205 = vmatpush1.msra.mxu0 %v1122
        %1206 = vmatprep.subr.mxu0 %v1127
        %1207 = vmatpush1.msra.mxu0 %v1126
        %1208 = vmatprep.subr.mxu0 %v1131
        %1209 = vmatpush1.msra.mxu0 %v1130
        %1210 = vmatprep.subr.mxu0 %v1135
        %1211 = vmatpush1.msra.mxu0 %v1134
        %1212 = vmatprep.subr.mxu0 %v1139
        %1213 = vmatpush1.msra.mxu0 %v1138
        %1214 = vmatprep.subr.mxu0 %v1143
        %1215 = vmatpush1.msra.mxu0 %v1142
        %1216 = vmatprep.subr.mxu0 %v1147
        %1217 = vmatpush1.msra.mxu0 %v1146
        %1218 = vmatprep.subr.mxu0 %v1151
        %1219 = vmatpush1.msra.mxu0 %v1150
        %1220 = vmatprep.subr.mxu0 %v1155
        %1221 = vmatpush1.msra.mxu0 %v1154
        %1222 = vmatprep.subr.mxu0 %v1159
        %1223 = vmatpush1.msra.mxu0 %v1158
        %1224 = vmatprep.subr.mxu0 %v1163
        %1225 = vmatpush1.msra.mxu0 %v1162
        %1226 = vmatprep.subr.mxu0 %v1167
        %1227 = vmatpush1.msra.mxu0 %v1166
        %1228 = vmatprep.subr.mxu0 %v1171
        %1229 = vmatpush1.msra.mxu0 %v1170
        %1230 = vmatprep.subr.mxu0 %v1175
        %1231 = vmatpush1.msra.mxu0 %v1174
        %1232 = vmatprep.subr.mxu0 0.0
        %1233 = vmatpush1.msra.mxu0 0.0
        %1234 = vmatprep.subr.mxu0 0.0
        %1235 = vmatpush1.msra.mxu0 0.0
        %1236 = vmatprep.subr.mxu0 0.0
        %1237 = vmatpush1.msra.mxu0 0.0
        %1238 = vmatprep.subr.mxu0 0.0
        %1239 = vmatpush1.msra.mxu0 0.0
        %1240 = vmatprep.subr.mxu0 0.0
        %1241 = vmatpush1.msra.mxu0 0.0
        %1242 = vmatprep.subr.mxu0 0.0
        %1243 = vmatpush1.msra.mxu0 0.0
        %1244 = vmatprep.subr.mxu0 0.0
        %1245 = vmatpush1.msra.mxu0 0.0
        %1246 = vmatprep.subr.mxu0 0.0
        %1247 = vmatpush1.msra.mxu0 0.0
        %1248 = vmatprep.subr.mxu0 0.0
        %1249 = vmatpush1.msra.mxu0 0.0
        %1250 = vmatprep.subr.mxu0 0.0
        %1251 = vmatpush1.msra.mxu0 0.0
        %1252 = vmatprep.subr.mxu0 0.0
        %1253 = vmatpush1.msra.mxu0 0.0
        %1254 = vmatprep.subr.mxu0 0.0
        %1255 = vmatpush1.msra.mxu0 0.0
        %1256 = vmatprep.subr.mxu0 0.0
        %1257 = vmatpush1.msra.mxu0 0.0
        %1258 = vmatprep.subr.mxu0 0.0
        %1259 = vmatpush1.msra.mxu0 0.0
        %1260 = vmatprep.subr.mxu0 0.0
        %1261 = vmatpush1.msra.mxu0 0.0
        %1262 = vmatprep.subr.mxu0 0.0
        %1263 = vmatpush1.msra.mxu0 0.0
        %1264 = vmatprep.mubr.f32.mxu0 0.0
        %1265 = vmatmul.mubr.f32.gmra.mrb[0].mxu0 %v1082
        %v1266 = vpop.f32.mrb[0].mxu0
        %v1267 = vadd.f32 %v1183, %v1266
        %v1268 = vpop.f32.mrb[0].mxu0
        %v1269 = vadd.f32 %v1187, %v1268
        %1270 = vmatprep.mubr.f32.mxu0 0.0
        %1271 = vmatmul.mubr.f32.gmra.mrb[0].mxu0 %v1083
        %v1272 = vpop.f32.mrb[0].mxu0
        %v1273 = vadd.f32 %v1183, %v1272
        %v1274 = vpop.f32.mrb[0].mxu0
        %v1275 = vadd.f32 %v1187, %v1274
        %1276 = vmatprep.mubr.f32.mxu0 0.0
        %1277 = vmatmul.mubr.f32.gmra.mrb[0].mxu0 %v1084
        %v1278 = vpop.f32.mrb[0].mxu0
        %v1279 = vadd.f32 %v1183, %v1278
        %v1280 = vpop.f32.mrb[0].mxu0
        %v1281 = vadd.f32 %v1187, %v1280
        %1282 = vmatprep.mubr.f32.mxu0 0.0
        %1283 = vmatmul.mubr.f32.gmra.mrb[0].mxu0 %v1085
        %v1284 = vpop.f32.mrb[0].mxu0
        %v1285 = vadd.f32 %v1183, %v1284
        %v1286 = vpop.f32.mrb[0].mxu0
        %v1287 = vadd.f32 %v1187, %v1286
        %1288 = vmatprep.mubr.f32.mxu0 0.0
        %1289 = vmatmul.mubr.f32.gmra.mrb[0].mxu0 %v1086
        %v1290 = vpop.f32.mrb[0].mxu0
        %v1291 = vadd.f32 %v1183, %v1290
        %v1292 = vpop.f32.mrb[0].mxu0
        %v1293 = vadd.f32 %v1187, %v1292
        %1294 = vmatprep.mubr.f32.mxu0 0.0
        %1295 = vmatmul.mubr.f32.gmra.mrb[0].mxu0 %v1087
        %v1296 = vpop.f32.mrb[0].mxu0
        %v1297 = vadd.f32 %v1183, %v1296
        %v1298 = vpop.f32.mrb[0].mxu0
        %v1299 = vadd.f32 %v1187, %v1298
        %1300 = vmatprep.mubr.f32.mxu0 0.0
        %1301 = vmatmul.mubr.f32.gmra.mrb[0].mxu0 %v1088
        %v1302 = vpop.f32.mrb[0].mxu0
        %v1303 = vadd.f32 %v1183, %v1302
        %v1304 = vpop.f32.mrb[0].mxu0
        %v1305 = vadd.f32 %v1187, %v1304
        %1306 = vmatprep.mubr.f32.mxu0 0.0
        %1307 = vmatmul.mubr.f32.gmra.mrb[0].mxu0 %v1089
        %v1308 = vpop.f32.mrb[0].mxu0
        %v1309 = vadd.f32 %v1183, %v1308
        %v1310 = vpop.f32.mrb[0].mxu0
        %v1311 = vadd.f32 %v1187, %v1310
        %1312 = vmatprep.mubr.f32.mxu0 0.0
        %1313 = vmatmul.mubr.f32.gmra.mrb[0].mxu0 %v1090
        %v1314 = vpop.f32.mrb[0].mxu0
        %v1315 = vadd.f32 %v1183, %v1314
        %v1316 = vpop.f32.mrb[0].mxu0
        %v1317 = vadd.f32 %v1187, %v1316
        %1318 = vmatprep.mubr.f32.mxu0 0.0
        %1319 = vmatmul.mubr.f32.gmra.mrb[0].mxu0 %v1091
        %v1320 = vpop.f32.mrb[0].mxu0
        %v1321 = vadd.f32 %v1183, %v1320
        %v1322 = vpop.f32.mrb[0].mxu0
        %v1323 = vadd.f32 %v1187, %v1322
        %1324 = vmatprep.mubr.f32.mxu0 0.0
        %1325 = vmatmul.mubr.f32.gmra.mrb[0].mxu0 %v1092
        %v1326 = vpop.f32.mrb[0].mxu0
        %v1327 = vadd.f32 %v1183, %v1326
        %v1328 = vpop.f32.mrb[0].mxu0
        %v1329 = vadd.f32 %v1187, %v1328
        %1330 = vmatprep.mubr.f32.mxu0 0.0
        %1331 = vmatmul.mubr.f32.gmra.mrb[0].mxu0 %v1093
        %v1332 = vpop.f32.mrb[0].mxu0
        %v1333 = vadd.f32 %v1183, %v1332
        %v1334 = vpop.f32.mrb[0].mxu0
        %v1335 = vadd.f32 %v1187, %v1334
        %1336 = vmatprep.mubr.f32.mxu0 0.0
        %1337 = vmatmul.mubr.f32.gmra.mrb[0].mxu0 %v1094
        %v1338 = vpop.f32.mrb[0].mxu0
        %v1339 = vadd.f32 %v1183, %v1338
        %v1340 = vpop.f32.mrb[0].mxu0
        %v1341 = vadd.f32 %v1187, %v1340
        %1342 = vmatprep.mubr.f32.mxu0 0.0
        %1343 = vmatmul.mubr.f32.gmra.mrb[0].mxu0 %v1095
        %v1344 = vpop.f32.mrb[0].mxu0
        %v1345 = vadd.f32 %v1183, %v1344
        %v1346 = vpop.f32.mrb[0].mxu0
        %v1347 = vadd.f32 %v1187, %v1346
        %1348 = vmatprep.mubr.f32.mxu0 0.0
        %1349 = vmatmul.mubr.f32.gmra.mrb[0].mxu0 %v1096
        %v1350 = vpop.f32.mrb[0].mxu0
        %v1351 = vadd.f32 %v1183, %v1350
        %v1352 = vpop.f32.mrb[0].mxu0
        %v1353 = vadd.f32 %v1187, %v1352
        %1354 = vmatprep.mubr.f32.mxu0 0.0
        %1355 = vmatmul.mubr.f32.gmra.mrb[0].mxu0 %v1097
        %v1356 = vpop.f32.mrb[0].mxu0
        %v1357 = vadd.f32 %v1183, %v1356
        %v1358 = vpop.f32.mrb[0].mxu0
        %v1359 = vadd.f32 %v1187, %v1358
        %1360 = vmatprep.mubr.f32.mxu0 0.0
        %1361 = vmatmul.mubr.f32.gmra.mrb[0].mxu0 %v1098
        %v1362 = vpop.f32.mrb[0].mxu0
        %v1363 = vadd.f32 %v1183, %v1362
        %v1364 = vpop.f32.mrb[0].mxu0
        %v1365 = vadd.f32 %v1187, %v1364
        %1366 = vmatprep.mubr.f32.mxu0 0.0
        %1367 = vmatmul.mubr.f32.gmra.mrb[0].mxu0 %v1099
        %v1368 = vpop.f32.mrb[0].mxu0
        %v1369 = vadd.f32 %v1183, %v1368
        %v1370 = vpop.f32.mrb[0].mxu0
        %v1371 = vadd.f32 %v1187, %v1370
        %1372 = vmatprep.mubr.f32.mxu0 0.0
        %1373 = vmatmul.mubr.f32.gmra.mrb[0].mxu0 %v1100
        %v1374 = vpop.f32.mrb[0].mxu0
        %v1375 = vadd.f32 %v1183, %v1374
        %v1376 = vpop.f32.mrb[0].mxu0
        %v1377 = vadd.f32 %v1187, %v1376
        %1378 = vmatprep.mubr.f32.mxu0 0.0
        %1379 = vmatmul.mubr.f32.gmra.mrb[0].mxu0 %v1101
        %v1380 = vpop.f32.mrb[0].mxu0
        %v1381 = vadd.f32 %v1183, %v1380
        %v1382 = vpop.f32.mrb[0].mxu0
        %v1383 = vadd.f32 %v1187, %v1382
        %1384 = vmatprep.mubr.f32.mxu0 0.0
        %1385 = vmatmul.mubr.f32.gmra.mrb[0].mxu0 %v1102
        %v1386 = vpop.f32.mrb[0].mxu0
        %v1387 = vadd.f32 %v1183, %v1386
        %v1388 = vpop.f32.mrb[0].mxu0
        %v1389 = vadd.f32 %v1187, %v1388
        %1390 = vmatprep.mubr.f32.mxu0 0.0
        %1391 = vmatmul.mubr.f32.gmra.mrb[0].mxu0 %v1103
        %v1392 = vpop.f32.mrb[0].mxu0
        %v1393 = vadd.f32 %v1183, %v1392
        %v1394 = vpop.f32.mrb[0].mxu0
        %v1395 = vadd.f32 %v1187, %v1394
        %1396 = vmatprep.mubr.f32.mxu0 0.0
        %1397 = vmatmul.mubr.f32.gmra.mrb[0].mxu0 %v1104
        %v1398 = vpop.f32.mrb[0].mxu0
        %v1399 = vadd.f32 %v1183, %v1398
        %v1400 = vpop.f32.mrb[0].mxu0
        %v1401 = vadd.f32 %v1187, %v1400
        %1402 = vmatprep.mubr.f32.mxu0 0.0
        %1403 = vmatmul.mubr.f32.gmra.mrb[0].mxu0 %v1105
        %v1404 = vpop.f32.mrb[0].mxu0
        %v1405 = vadd.f32 %v1183, %v1404
        %v1406 = vpop.f32.mrb[0].mxu0
        %v1407 = vadd.f32 %v1187, %v1406
        %1408 = vmatprep.mubr.f32.mxu0 0.0
        %1409 = vmatmul.mubr.f32.gmra.mrb[0].mxu0 %v1106
        %v1410 = vpop.f32.mrb[0].mxu0
        %v1411 = vadd.f32 %v1183, %v1410
        %v1412 = vpop.f32.mrb[0].mxu0
        %v1413 = vadd.f32 %v1187, %v1412
        %1414 = vmatprep.mubr.f32.mxu0 0.0
        %1415 = vmatmul.mubr.f32.gmra.mrb[0].mxu0 %v1107
        %v1416 = vpop.f32.mrb[0].mxu0
        %v1417 = vadd.f32 %v1183, %v1416
        %v1418 = vpop.f32.mrb[0].mxu0
        %v1419 = vadd.f32 %v1187, %v1418
        %1420 = vmatprep.mubr.f32.mxu0 0.0
        %1421 = vmatmul.mubr.f32.gmra.mrb[0].mxu0 %v1108
        %v1422 = vpop.f32.mrb[0].mxu0
        %v1423 = vadd.f32 %v1183, %v1422
        %v1424 = vpop.f32.mrb[0].mxu0
        %v1425 = vadd.f32 %v1187, %v1424
        %1426 = vmatprep.mubr.f32.mxu0 0.0
        %1427 = vmatmul.mubr.f32.gmra.mrb[0].mxu0 %v1109
        %v1428 = vpop.f32.mrb[0].mxu0
        %v1429 = vadd.f32 %v1183, %v1428
        %v1430 = vpop.f32.mrb[0].mxu0
        %v1431 = vadd.f32 %v1187, %v1430
        %1432 = vmatprep.mubr.f32.mxu0 0.0
        %1433 = vmatmul.mubr.f32.gmra.mrb[0].mxu0 %v1110
        %v1434 = vpop.f32.mrb[0].mxu0
        %v1435 = vadd.f32 %v1183, %v1434
        %v1436 = vpop.f32.mrb[0].mxu0
        %v1437 = vadd.f32 %v1187, %v1436
        %1438 = vmatprep.mubr.f32.mxu0 0.0
        %1439 = vmatmul.mubr.f32.gmra.mrb[0].mxu0 %v1111
        %v1440 = vpop.f32.mrb[0].mxu0
        %v1441 = vadd.f32 %v1183, %v1440
        %v1442 = vpop.f32.mrb[0].mxu0
        %v1443 = vadd.f32 %v1187, %v1442
        %1444 = vmatprep.mubr.f32.mxu0 0.0
        %1445 = vmatmul.mubr.f32.gmra.mrb[0].mxu0 %v1112
        %v1446 = vpop.f32.mrb[0].mxu0
        %v1447 = vadd.f32 %v1183, %v1446
        %v1448 = vpop.f32.mrb[0].mxu0
        %v1449 = vadd.f32 %v1187, %v1448
        %1450 = vmatprep.mubr.f32.mxu0 0.0
        %1451 = vmatmul.mubr.f32.gmra.mrb[0].mxu0 %v1113
        %v1452 = vpop.f32.mrb[0].mxu0
        %v1453 = vadd.f32 %v1183, %v1452
        %v1454 = vpop.f32.mrb[0].mxu0
        %v1455 = vadd.f32 %v1187, %v1454
        %1456 = vdwg.mxu0
        %1457 = vmatprep.subr.mxu0 %v1117
        %1458 = vmatpush1.msra.mxu0 %v1116
        %1459 = vmatprep.subr.mxu0 %v1121
        %1460 = vmatpush1.msra.mxu0 %v1120
        %1461 = vmatprep.subr.mxu0 %v1125
        %1462 = vmatpush1.msra.mxu0 %v1124
        %1463 = vmatprep.subr.mxu0 %v1129
        %1464 = vmatpush1.msra.mxu0 %v1128
        %1465 = vmatprep.subr.mxu0 %v1133
        %1466 = vmatpush1.msra.mxu0 %v1132
        %1467 = vmatprep.subr.mxu0 %v1137
        %1468 = vmatpush1.msra.mxu0 %v1136
        %1469 = vmatprep.subr.mxu0 %v1141
        %1470 = vmatpush1.msra.mxu0 %v1140
        %1471 = vmatprep.subr.mxu0 %v1145
        %1472 = vmatpush1.msra.mxu0 %v1144
        %1473 = vmatprep.subr.mxu0 %v1149
        %1474 = vmatpush1.msra.mxu0 %v1148
        %1475 = vmatprep.subr.mxu0 %v1153
        %1476 = vmatpush1.msra.mxu0 %v1152
        %1477 = vmatprep.subr.mxu0 %v1157
        %1478 = vmatpush1.msra.mxu0 %v1156
        %1479 = vmatprep.subr.mxu0 %v1161
        %1480 = vmatpush1.msra.mxu0 %v1160
        %1481 = vmatprep.subr.mxu0 %v1165
        %1482 = vmatpush1.msra.mxu0 %v1164
        %1483 = vmatprep.subr.mxu0 %v1169
        %1484 = vmatpush1.msra.mxu0 %v1168
        %1485 = vmatprep.subr.mxu0 %v1173
        %1486 = vmatpush1.msra.mxu0 %v1172
        %1487 = vmatprep.subr.mxu0 %v1177
        %1488 = vmatpush1.msra.mxu0 %v1176
        %1489 = vmatprep.subr.mxu0 0.0
        %1490 = vmatpush1.msra.mxu0 0.0
        %1491 = vmatprep.subr.mxu0 0.0
        %1492 = vmatpush1.msra.mxu0 0.0
        %1493 = vmatprep.subr.mxu0 0.0
        %1494 = vmatpush1.msra.mxu0 0.0
        %1495 = vmatprep.subr.mxu0 0.0
        %1496 = vmatpush1.msra.mxu0 0.0
        %1497 = vmatprep.subr.mxu0 0.0
        %1498 = vmatpush1.msra.mxu0 0.0
        %1499 = vmatprep.subr.mxu0 0.0
        %1500 = vmatpush1.msra.mxu0 0.0
        %1501 = vmatprep.subr.mxu0 0.0
        %1502 = vmatpush1.msra.mxu0 0.0
        %1503 = vmatprep.subr.mxu0 0.0
        %1504 = vmatpush1.msra.mxu0 0.0
        %1505 = vmatprep.subr.mxu0 0.0
        %1506 = vmatpush1.msra.mxu0 0.0
        %1507 = vmatprep.subr.mxu0 0.0
        %1508 = vmatpush1.msra.mxu0 0.0
        %1509 = vmatprep.subr.mxu0 0.0
        %1510 = vmatpush1.msra.mxu0 0.0
        %1511 = vmatprep.subr.mxu0 0.0
        %1512 = vmatpush1.msra.mxu0 0.0
        %1513 = vmatprep.subr.mxu0 0.0
        %1514 = vmatpush1.msra.mxu0 0.0
        %1515 = vmatprep.subr.mxu0 0.0
        %1516 = vmatpush1.msra.mxu0 0.0
        %1517 = vmatprep.subr.mxu0 0.0
        %1518 = vmatpush1.msra.mxu0 0.0
        %1519 = vmatprep.subr.mxu0 0.0
        %1520 = vmatpush1.msra.mxu0 0.0
        %1521 = vmatprep.mubr.f32.mxu0 0.0
        %1522 = vmatmul.mubr.f32.gmra.mrb[0].mxu0 %v1082
        %v1523 = vpop.f32.mrb[0].mxu0
        %v1524 = vadd.f32 %v1191, %v1523
        %v1525 = vpop.f32.mrb[0].mxu0
        %v1526 = vadd.f32 %v1195, %v1525
        %1527 = vmatprep.mubr.f32.mxu0 0.0
        %1528 = vmatmul.mubr.f32.gmra.mrb[0].mxu0 %v1083
        %v1529 = vpop.f32.mrb[0].mxu0
        %v1530 = vadd.f32 %v1191, %v1529
        %v1531 = vpop.f32.mrb[0].mxu0
        %v1532 = vadd.f32 %v1195, %v1531
        %1533 = vmatprep.mubr.f32.mxu0 0.0
        %1534 = vmatmul.mubr.f32.gmra.mrb[0].mxu0 %v1084
        %v1535 = vpop.f32.mrb[0].mxu0
        %v1536 = vadd.f32 %v1191, %v1535
        %v1537 = vpop.f32.mrb[0].mxu0
        %v1538 = vadd.f32 %v1195, %v1537
        %1539 = vmatprep.mubr.f32.mxu0 0.0
        %1540 = vmatmul.mubr.f32.gmra.mrb[0].mxu0 %v1085
        %v1541 = vpop.f32.mrb[0].mxu0
        %v1542 = vadd.f32 %v1191, %v1541
        %v1543 = vpop.f32.mrb[0].mxu0
        %v1544 = vadd.f32 %v1195, %v1543
        %1545 = vmatprep.mubr.f32.mxu0 0.0
        %1546 = vmatmul.mubr.f32.gmra.mrb[0].mxu0 %v1086
        %v1547 = vpop.f32.mrb[0].mxu0
        %v1548 = vadd.f32 %v1191, %v1547
        %v1549 = vpop.f32.mrb[0].mxu0
        %v1550 = vadd.f32 %v1195, %v1549
        %1551 = vmatprep.mubr.f32.mxu0 0.0
        %1552 = vmatmul.mubr.f32.gmra.mrb[0].mxu0 %v1087
        %v1553 = vpop.f32.mrb[0].mxu0
        %v1554 = vadd.f32 %v1191, %v1553
        %v1555 = vpop.f32.mrb[0].mxu0
        %v1556 = vadd.f32 %v1195, %v1555
        %1557 = vmatprep.mubr.f32.mxu0 0.0
        %1558 = vmatmul.mubr.f32.gmra.mrb[0].mxu0 %v1088
        %v1559 = vpop.f32.mrb[0].mxu0
        %v1560 = vadd.f32 %v1191, %v1559
        %v1561 = vpop.f32.mrb[0].mxu0
        %v1562 = vadd.f32 %v1195, %v1561
        %1563 = vmatprep.mubr.f32.mxu0 0.0
        %1564 = vmatmul.mubr.f32.gmra.mrb[0].mxu0 %v1089
        %v1565 = vpop.f32.mrb[0].mxu0
        %v1566 = vadd.f32 %v1191, %v1565
        %v1567 = vpop.f32.mrb[0].mxu0
        %v1568 = vadd.f32 %v1195, %v1567
        %1569 = vmatprep.mubr.f32.mxu0 0.0
        %1570 = vmatmul.mubr.f32.gmra.mrb[0].mxu0 %v1090
        %v1571 = vpop.f32.mrb[0].mxu0
        %v1572 = vadd.f32 %v1191, %v1571
        %v1573 = vpop.f32.mrb[0].mxu0
        %v1574 = vadd.f32 %v1195, %v1573
        %1575 = vmatprep.mubr.f32.mxu0 0.0
        %1576 = vmatmul.mubr.f32.gmra.mrb[0].mxu0 %v1091
        %v1577 = vpop.f32.mrb[0].mxu0
        %v1578 = vadd.f32 %v1191, %v1577
        %v1579 = vpop.f32.mrb[0].mxu0
        %v1580 = vadd.f32 %v1195, %v1579
        %1581 = vmatprep.mubr.f32.mxu0 0.0
        %1582 = vmatmul.mubr.f32.gmra.mrb[0].mxu0 %v1092
        %v1583 = vpop.f32.mrb[0].mxu0
        %v1584 = vadd.f32 %v1191, %v1583
        %v1585 = vpop.f32.mrb[0].mxu0
        %v1586 = vadd.f32 %v1195, %v1585
        %1587 = vmatprep.mubr.f32.mxu0 0.0
        %1588 = vmatmul.mubr.f32.gmra.mrb[0].mxu0 %v1093
        %v1589 = vpop.f32.mrb[0].mxu0
        %v1590 = vadd.f32 %v1191, %v1589
        %v1591 = vpop.f32.mrb[0].mxu0
        %v1592 = vadd.f32 %v1195, %v1591
        %1593 = vmatprep.mubr.f32.mxu0 0.0
        %1594 = vmatmul.mubr.f32.gmra.mrb[0].mxu0 %v1094
        %v1595 = vpop.f32.mrb[0].mxu0
        %v1596 = vadd.f32 %v1191, %v1595
        %v1597 = vpop.f32.mrb[0].mxu0
        %v1598 = vadd.f32 %v1195, %v1597
        %1599 = vmatprep.mubr.f32.mxu0 0.0
        %1600 = vmatmul.mubr.f32.gmra.mrb[0].mxu0 %v1095
        %v1601 = vpop.f32.mrb[0].mxu0
        %v1602 = vadd.f32 %v1191, %v1601
        %v1603 = vpop.f32.mrb[0].mxu0
        %v1604 = vadd.f32 %v1195, %v1603
        %1605 = vmatprep.mubr.f32.mxu0 0.0
        %1606 = vmatmul.mubr.f32.gmra.mrb[0].mxu0 %v1096
        %v1607 = vpop.f32.mrb[0].mxu0
        %v1608 = vadd.f32 %v1191, %v1607
        %v1609 = vpop.f32.mrb[0].mxu0
        %v1610 = vadd.f32 %v1195, %v1609
        %1611 = vmatprep.mubr.f32.mxu0 0.0
        %1612 = vmatmul.mubr.f32.gmra.mrb[0].mxu0 %v1097
        %v1613 = vpop.f32.mrb[0].mxu0
        %v1614 = vadd.f32 %v1191, %v1613
        %v1615 = vpop.f32.mrb[0].mxu0
        %v1616 = vadd.f32 %v1195, %v1615
        %1617 = vmatprep.mubr.f32.mxu0 0.0
        %1618 = vmatmul.mubr.f32.gmra.mrb[0].mxu0 %v1098
        %v1619 = vpop.f32.mrb[0].mxu0
        %v1620 = vadd.f32 %v1191, %v1619
        %v1621 = vpop.f32.mrb[0].mxu0
        %v1622 = vadd.f32 %v1195, %v1621
        %1623 = vmatprep.mubr.f32.mxu0 0.0
        %1624 = vmatmul.mubr.f32.gmra.mrb[0].mxu0 %v1099
        %v1625 = vpop.f32.mrb[0].mxu0
        %v1626 = vadd.f32 %v1191, %v1625
        %v1627 = vpop.f32.mrb[0].mxu0
        %v1628 = vadd.f32 %v1195, %v1627
        %1629 = vmatprep.mubr.f32.mxu0 0.0
        %1630 = vmatmul.mubr.f32.gmra.mrb[0].mxu0 %v1100
        %v1631 = vpop.f32.mrb[0].mxu0
        %v1632 = vadd.f32 %v1191, %v1631
        %v1633 = vpop.f32.mrb[0].mxu0
        %v1634 = vadd.f32 %v1195, %v1633
        %1635 = vmatprep.mubr.f32.mxu0 0.0
        %1636 = vmatmul.mubr.f32.gmra.mrb[0].mxu0 %v1101
        %v1637 = vpop.f32.mrb[0].mxu0
        %v1638 = vadd.f32 %v1191, %v1637
        %v1639 = vpop.f32.mrb[0].mxu0
        %v1640 = vadd.f32 %v1195, %v1639
        %1641 = vmatprep.mubr.f32.mxu0 0.0
        %1642 = vmatmul.mubr.f32.gmra.mrb[0].mxu0 %v1102
        %v1643 = vpop.f32.mrb[0].mxu0
        %v1644 = vadd.f32 %v1191, %v1643
        %v1645 = vpop.f32.mrb[0].mxu0
        %v1646 = vadd.f32 %v1195, %v1645
        %1647 = vmatprep.mubr.f32.mxu0 0.0
        %1648 = vmatmul.mubr.f32.gmra.mrb[0].mxu0 %v1103
        %v1649 = vpop.f32.mrb[0].mxu0
        %v1650 = vadd.f32 %v1191, %v1649
        %v1651 = vpop.f32.mrb[0].mxu0
        %v1652 = vadd.f32 %v1195, %v1651
        %1653 = vmatprep.mubr.f32.mxu0 0.0
        %1654 = vmatmul.mubr.f32.gmra.mrb[0].mxu0 %v1104
        %v1655 = vpop.f32.mrb[0].mxu0
        %v1656 = vadd.f32 %v1191, %v1655
        %v1657 = vpop.f32.mrb[0].mxu0
        %v1658 = vadd.f32 %v1195, %v1657
        %1659 = vmatprep.mubr.f32.mxu0 0.0
        %1660 = vmatmul.mubr.f32.gmra.mrb[0].mxu0 %v1105
        %v1661 = vpop.f32.mrb[0].mxu0
        %v1662 = vadd.f32 %v1191, %v1661
        %v1663 = vpop.f32.mrb[0].mxu0
        %v1664 = vadd.f32 %v1195, %v1663
        %1665 = vmatprep.mubr.f32.mxu0 0.0
        %1666 = vmatmul.mubr.f32.gmra.mrb[0].mxu0 %v1106
        %v1667 = vpop.f32.mrb[0].mxu0
        %v1668 = vadd.f32 %v1191, %v1667
        %v1669 = vpop.f32.mrb[0].mxu0
        %v1670 = vadd.f32 %v1195, %v1669
        %1671 = vmatprep.mubr.f32.mxu0 0.0
        %1672 = vmatmul.mubr.f32.gmra.mrb[0].mxu0 %v1107
        %v1673 = vpop.f32.mrb[0].mxu0
        %v1674 = vadd.f32 %v1191, %v1673
        %v1675 = vpop.f32.mrb[0].mxu0
        %v1676 = vadd.f32 %v1195, %v1675
        %1677 = vmatprep.mubr.f32.mxu0 0.0
        %1678 = vmatmul.mubr.f32.gmra.mrb[0].mxu0 %v1108
        %v1679 = vpop.f32.mrb[0].mxu0
        %v1680 = vadd.f32 %v1191, %v1679
        %v1681 = vpop.f32.mrb[0].mxu0
        %v1682 = vadd.f32 %v1195, %v1681
        %1683 = vmatprep.mubr.f32.mxu0 0.0
        %1684 = vmatmul.mubr.f32.gmra.mrb[0].mxu0 %v1109
        %v1685 = vpop.f32.mrb[0].mxu0
        %v1686 = vadd.f32 %v1191, %v1685
        %v1687 = vpop.f32.mrb[0].mxu0
        %v1688 = vadd.f32 %v1195, %v1687
        %1689 = vmatprep.mubr.f32.mxu0 0.0
        %1690 = vmatmul.mubr.f32.gmra.mrb[0].mxu0 %v1110
        %v1691 = vpop.f32.mrb[0].mxu0
        %v1692 = vadd.f32 %v1191, %v1691
        %v1693 = vpop.f32.mrb[0].mxu0
        %v1694 = vadd.f32 %v1195, %v1693
        %1695 = vmatprep.mubr.f32.mxu0 0.0
        %1696 = vmatmul.mubr.f32.gmra.mrb[0].mxu0 %v1111
        %v1697 = vpop.f32.mrb[0].mxu0
        %v1698 = vadd.f32 %v1191, %v1697
        %v1699 = vpop.f32.mrb[0].mxu0
        %v1700 = vadd.f32 %v1195, %v1699
        %1701 = vmatprep.mubr.f32.mxu0 0.0
        %1702 = vmatmul.mubr.f32.gmra.mrb[0].mxu0 %v1112
        %v1703 = vpop.f32.mrb[0].mxu0
        %v1704 = vadd.f32 %v1191, %v1703
        %v1705 = vpop.f32.mrb[0].mxu0
        %v1706 = vadd.f32 %v1195, %v1705
        %1707 = vmatprep.mubr.f32.mxu0 0.0
        %1708 = vmatmul.mubr.f32.gmra.mrb[0].mxu0 %v1113
        %v1709 = vpop.f32.mrb[0].mxu0
        %v1710 = vadd.f32 %v1191, %v1709
        %v1711 = vpop.f32.mrb[0].mxu0
        %v1712 = vadd.f32 %v1195, %v1711
        %1713 = vdwg.mxu0
        %1714 = vst [vmem:[#allocation2] sm:$0xff] %v1267
        %1715 = vst [vmem:[#allocation2 + $0x8] sm:$0xff] %v1269
        %1716 = vst [vmem:[#allocation2 + $0x10] sm:$0xff] %v1524
        %1717 = vst [vmem:[#allocation2 + $0x18] sm:$0xff] %v1526
        %1718 = vst [vmem:[#allocation2 + $0x20] sm:$0xff] %v1273
        %1719 = vst [vmem:[#allocation2 + $0x28] sm:$0xff] %v1275
        %1720 = vst [vmem:[#allocation2 + $0x30] sm:$0xff] %v1530
        %1721 = vst [vmem:[#allocation2 + $0x38] sm:$0xff] %v1532
        %1722 = vst [vmem:[#allocation2 + $0x40] sm:$0xff] %v1279
        %1723 = vst [vmem:[#allocation2 + $0x48] sm:$0xff] %v1281
        %1724 = vst [vmem:[#allocation2 + $0x50] sm:$0xff] %v1536
        %1725 = vst [vmem:[#allocation2 + $0x58] sm:$0xff] %v1538
        %1726 = vst [vmem:[#allocation2 + $0x60] sm:$0xff] %v1285
        %1727 = vst [vmem:[#allocation2 + $0x68] sm:$0xff] %v1287
        %1728 = vst [vmem:[#allocation2 + $0x70] sm:$0xff] %v1542
        %1729 = vst [vmem:[#allocation2 + $0x78] sm:$0xff] %v1544
        %1730 = vst [vmem:[#allocation2 + $0x80] sm:$0xff] %v1291
        %1731 = vst [vmem:[#allocation2 + $0x88] sm:$0xff] %v1293
        %1732 = vst [vmem:[#allocation2 + $0x90] sm:$0xff] %v1548
        %1733 = vst [vmem:[#allocation2 + $0x98] sm:$0xff] %v1550
        %1734 = vst [vmem:[#allocation2 + $0xa0] sm:$0xff] %v1297
        %1735 = vst [vmem:[#allocation2 + $0xa8] sm:$0xff] %v1299
        %1736 = vst [vmem:[#allocation2 + $0xb0] sm:$0xff] %v1554
        %1737 = vst [vmem:[#allocation2 + $0xb8] sm:$0xff] %v1556
        %1738 = vst [vmem:[#allocation2 + $0xc0] sm:$0xff] %v1303
        %1739 = vst [vmem:[#allocation2 + $0xc8] sm:$0xff] %v1305
        %1740 = vst [vmem:[#allocation2 + $0xd0] sm:$0xff] %v1560
        %1741 = vst [vmem:[#allocation2 + $0xd8] sm:$0xff] %v1562
        %1742 = vst [vmem:[#allocation2 + $0xe0] sm:$0xff] %v1309
        %1743 = vst [vmem:[#allocation2 + $0xe8] sm:$0xff] %v1311
        %1744 = vst [vmem:[#allocation2 + $0xf0] sm:$0xff] %v1566
        %1745 = vst [vmem:[#allocation2 + $0xf8] sm:$0xff] %v1568
        %1746 = vst [vmem:[#allocation2 + $0x100] sm:$0xff] %v1315
        %1747 = vst [vmem:[#allocation2 + $0x108] sm:$0xff] %v1317
        %1748 = vst [vmem:[#allocation2 + $0x110] sm:$0xff] %v1572
        %1749 = vst [vmem:[#allocation2 + $0x118] sm:$0xff] %v1574
        %1750 = vst [vmem:[#allocation2 + $0x120] sm:$0xff] %v1321
        %1751 = vst [vmem:[#allocation2 + $0x128] sm:$0xff] %v1323
        %1752 = vst [vmem:[#allocation2 + $0x130] sm:$0xff] %v1578
        %1753 = vst [vmem:[#allocation2 + $0x138] sm:$0xff] %v1580
        %1754 = vst [vmem:[#allocation2 + $0x140] sm:$0xff] %v1327
        %1755 = vst [vmem:[#allocation2 + $0x148] sm:$0xff] %v1329
        %1756 = vst [vmem:[#allocation2 + $0x150] sm:$0xff] %v1584
        %1757 = vst [vmem:[#allocation2 + $0x158] sm:$0xff] %v1586
        %1758 = vst [vmem:[#allocation2 + $0x160] sm:$0xff] %v1333
        %1759 = vst [vmem:[#allocation2 + $0x168] sm:$0xff] %v1335
        %1760 = vst [vmem:[#allocation2 + $0x170] sm:$0xff] %v1590
        %1761 = vst [vmem:[#allocation2 + $0x178] sm:$0xff] %v1592
        %1762 = vst [vmem:[#allocation2 + $0x180] sm:$0xff] %v1339
        %1763 = vst [vmem:[#allocation2 + $0x188] sm:$0xff] %v1341
        %1764 = vst [vmem:[#allocation2 + $0x190] sm:$0xff] %v1596
        %1765 = vst [vmem:[#allocation2 + $0x198] sm:$0xff] %v1598
        %1766 = vst [vmem:[#allocation2 + $0x1a0] sm:$0xff] %v1345
        %1767 = vst [vmem:[#allocation2 + $0x1a8] sm:$0xff] %v1347
        %1768 = vst [vmem:[#allocation2 + $0x1b0] sm:$0xff] %v1602
        %1769 = vst [vmem:[#allocation2 + $0x1b8] sm:$0xff] %v1604
        %1770 = vst [vmem:[#allocation2 + $0x1c0] sm:$0xff] %v1351
        %1771 = vst [vmem:[#allocation2 + $0x1c8] sm:$0xff] %v1353
        %1772 = vst [vmem:[#allocation2 + $0x1d0] sm:$0xff] %v1608
        %1773 = vst [vmem:[#allocation2 + $0x1d8] sm:$0xff] %v1610
        %1774 = vst [vmem:[#allocation2 + $0x1e0] sm:$0xff] %v1357
        %1775 = vst [vmem:[#allocation2 + $0x1e8] sm:$0xff] %v1359
        %1776 = vst [vmem:[#allocation2 + $0x1f0] sm:$0xff] %v1614
        %1777 = vst [vmem:[#allocation2 + $0x1f8] sm:$0xff] %v1616
        %1778 = vst [vmem:[#allocation2 + $0x200] sm:$0xff] %v1363
        %1779 = vst [vmem:[#allocation2 + $0x208] sm:$0xff] %v1365
        %1780 = vst [vmem:[#allocation2 + $0x210] sm:$0xff] %v1620
        %1781 = vst [vmem:[#allocation2 + $0x218] sm:$0xff] %v1622
        %1782 = vst [vmem:[#allocation2 + $0x220] sm:$0xff] %v1369
        %1783 = vst [vmem:[#allocation2 + $0x228] sm:$0xff] %v1371
        %1784 = vst [vmem:[#allocation2 + $0x230] sm:$0xff] %v1626
        %1785 = vst [vmem:[#allocation2 + $0x238] sm:$0xff] %v1628
        %1786 = vst [vmem:[#allocation2 + $0x240] sm:$0xff] %v1375
        %1787 = vst [vmem:[#allocation2 + $0x248] sm:$0xff] %v1377
        %1788 = vst [vmem:[#allocation2 + $0x250] sm:$0xff] %v1632
        %1789 = vst [vmem:[#allocation2 + $0x258] sm:$0xff] %v1634
        %1790 = vst [vmem:[#allocation2 + $0x260] sm:$0xff] %v1381
        %1791 = vst [vmem:[#allocation2 + $0x268] sm:$0xff] %v1383
        %1792 = vst [vmem:[#allocation2 + $0x270] sm:$0xff] %v1638
        %1793 = vst [vmem:[#allocation2 + $0x278] sm:$0xff] %v1640
        %1794 = vst [vmem:[#allocation2 + $0x280] sm:$0xff] %v1387
        %1795 = vst [vmem:[#allocation2 + $0x288] sm:$0xff] %v1389
        %1796 = vst [vmem:[#allocation2 + $0x290] sm:$0xff] %v1644
        %1797 = vst [vmem:[#allocation2 + $0x298] sm:$0xff] %v1646
        %1798 = vst [vmem:[#allocation2 + $0x2a0] sm:$0xff] %v1393
        %1799 = vst [vmem:[#allocation2 + $0x2a8] sm:$0xff] %v1395
        %1800 = vst [vmem:[#allocation2 + $0x2b0] sm:$0xff] %v1650
        %1801 = vst [vmem:[#allocation2 + $0x2b8] sm:$0xff] %v1652
        %1802 = vst [vmem:[#allocation2 + $0x2c0] sm:$0xff] %v1399
        %1803 = vst [vmem:[#allocation2 + $0x2c8] sm:$0xff] %v1401
        %1804 = vst [vmem:[#allocation2 + $0x2d0] sm:$0xff] %v1656
        %1805 = vst [vmem:[#allocation2 + $0x2d8] sm:$0xff] %v1658
        %1806 = vst [vmem:[#allocation2 + $0x2e0] sm:$0xff] %v1405
        %1807 = vst [vmem:[#allocation2 + $0x2e8] sm:$0xff] %v1407
        %1808 = vst [vmem:[#allocation2 + $0x2f0] sm:$0xff] %v1662
        %1809 = vst [vmem:[#allocation2 + $0x2f8] sm:$0xff] %v1664
        %1810 = vst [vmem:[#allocation2 + $0x300] sm:$0xff] %v1411
        %1811 = vst [vmem:[#allocation2 + $0x308] sm:$0xff] %v1413
        %1812 = vst [vmem:[#allocation2 + $0x310] sm:$0xff] %v1668
        %1813 = vst [vmem:[#allocation2 + $0x318] sm:$0xff] %v1670
        %1814 = vst [vmem:[#allocation2 + $0x320] sm:$0xff] %v1417
        %1815 = vst [vmem:[#allocation2 + $0x328] sm:$0xff] %v1419
        %1816 = vst [vmem:[#allocation2 + $0x330] sm:$0xff] %v1674
        %1817 = vst [vmem:[#allocation2 + $0x338] sm:$0xff] %v1676
        %1818 = vst [vmem:[#allocation2 + $0x340] sm:$0xff] %v1423
        %1819 = vst [vmem:[#allocation2 + $0x348] sm:$0xff] %v1425
        %1820 = vst [vmem:[#allocation2 + $0x350] sm:$0xff] %v1680
        %1821 = vst [vmem:[#allocation2 + $0x358] sm:$0xff] %v1682
        %1822 = vst [vmem:[#allocation2 + $0x360] sm:$0xff] %v1429
        %1823 = vst [vmem:[#allocation2 + $0x368] sm:$0xff] %v1431
        %1824 = vst [vmem:[#allocation2 + $0x370] sm:$0xff] %v1686
        %1825 = vst [vmem:[#allocation2 + $0x378] sm:$0xff] %v1688
        %1826 = vst [vmem:[#allocation2 + $0x380] sm:$0xff] %v1435
        %1827 = vst [vmem:[#allocation2 + $0x388] sm:$0xff] %v1437
        %1828 = vst [vmem:[#allocation2 + $0x390] sm:$0xff] %v1692
        %1829 = vst [vmem:[#allocation2 + $0x398] sm:$0xff] %v1694
        %1830 = vst [vmem:[#allocation2 + $0x3a0] sm:$0xff] %v1441
        %1831 = vst [vmem:[#allocation2 + $0x3a8] sm:$0xff] %v1443
        %1832 = vst [vmem:[#allocation2 + $0x3b0] sm:$0xff] %v1698
        %1833 = vst [vmem:[#allocation2 + $0x3b8] sm:$0xff] %v1700
        %1834 = vst [vmem:[#allocation2 + $0x3c0] sm:$0xff] %v1447
        %1835 = vst [vmem:[#allocation2 + $0x3c8] sm:$0xff] %v1449
        %1836 = vst [vmem:[#allocation2 + $0x3d0] sm:$0xff] %v1704
        %1837 = vst [vmem:[#allocation2 + $0x3d8] sm:$0xff] %v1706
        %1838 = vst [vmem:[#allocation2 + $0x3e0] sm:$0xff] %v1453
        %1839 = vst [vmem:[#allocation2 + $0x3e8] sm:$0xff] %v1455
        %1840 = vst [vmem:[#allocation2 + $0x3f0] sm:$0xff] %v1710
        %1841 = vst [vmem:[#allocation2 + $0x3f8] sm:$0xff] %v1712
        %v1842 = vld [vmem:[%s780] sm:$0xff]
        %v1843 = vld [vmem:[%s780 + $0x8] sm:$0xff]
        %v1844 = vld [vmem:[%s780 + $0x10] sm:$0xff]
        %v1845 = vld [vmem:[%s780 + $0x18] sm:$0xff]
        %v1846 = vlaneseq
        %v1847 = vand.u32 %v1846, 127
        %v1848 = vadd.s32 %v1847, 128
        loop: start=0, step=1, limit=8
        $region165: #{tpu_custom_call.1} parent=135 // loop_pre_header
          _
        $region166: #{tpu_custom_call.1} parent=135 // loop_header
          %s1850 = sphi 0, %s1854
          %p1851 = scmp.ge.s32.totalorder %s1850, 8
          %v1855 = vphi %v1842, %v2180
          %v1856 = vphi %v1843, %v2181
          %v1857 = vphi %v1844, %v2182
          %v1858 = vphi %v1845, %v2183
          %v1859 = vphi 0.0, %v2172
          %v1860 = vphi 0.0, %v2173
          %v1861 = vphi 0.0, %v2174
          %v1862 = vphi 0.0, %v2175
          %v1863 = vphi %v1842, %v2475
          %v1864 = vphi %v1843, %v2476
          %v1865 = vphi %v1844, %v2477
          %v1866 = vphi %v1845, %v2478
          %v1867 = vphi 0.0, %v2467
          %v1868 = vphi 0.0, %v2468
          %v1869 = vphi 0.0, %v2469
          %v1870 = vphi 0.0, %v2470
          %v1871 = vphi 0.0, %v2770
          %v1872 = vphi 0.0, %v2771
          %v1873 = vphi 0.0, %v2772
          %v1874 = vphi 0.0, %v2773
        $region167: #{tpu_custom_call.1} parent=135 // loop_header_branch
          %1853 = sbr.rel (%p1851) target = $region171
        $region168: #{tpu_custom_call.1} parent=135 // loop_body
          %s1875 = smul.u32 %s1850, 16
          %s1876 = smul.addr %s1875, 8
          %s1877 = scalar_lea.vmem [#allocation2], %s1876
          %v1878 = vld [vmem:[%s1877] sm:$0xff]
          %v1879 = vld [vmem:[%s1877 + $0x8] sm:$0xff]
          %v1880 = vld [vmem:[%s1877 + $0x10] sm:$0xff]
          %v1881 = vld [vmem:[%s1877 + $0x18] sm:$0xff]
          %v1882 = vld [vmem:[%s1877 + $0x20] sm:$0xff]
          %v1883 = vld [vmem:[%s1877 + $0x28] sm:$0xff]
          %v1884 = vld [vmem:[%s1877 + $0x30] sm:$0xff]
          %v1885 = vld [vmem:[%s1877 + $0x38] sm:$0xff]
          %v1886 = vld [vmem:[%s1877 + $0x40] sm:$0xff]
          %v1887 = vld [vmem:[%s1877 + $0x48] sm:$0xff]
          %v1888 = vld [vmem:[%s1877 + $0x50] sm:$0xff]
          %v1889 = vld [vmem:[%s1877 + $0x58] sm:$0xff]
          %v1890 = vld [vmem:[%s1877 + $0x60] sm:$0xff]
          %v1891 = vld [vmem:[%s1877 + $0x68] sm:$0xff]
          %v1892 = vld [vmem:[%s1877 + $0x70] sm:$0xff]
          %v1893 = vld [vmem:[%s1877 + $0x78] sm:$0xff]
          %1894 = vmatprep.subr.mxu0 %v855
          %1895 = vmatpush1.msra.mxu0 %v854
          %1896 = vmatprep.subr.mxu0 %v859
          %1897 = vmatpush1.msra.mxu0 %v858
          %1898 = vmatprep.subr.mxu0 %v863
          %1899 = vmatpush1.msra.mxu0 %v862
          %1900 = vmatprep.subr.mxu0 %v867
          %1901 = vmatpush1.msra.mxu0 %v866
          %1902 = vmatprep.subr.mxu0 %v871
          %1903 = vmatpush1.msra.mxu0 %v870
          %1904 = vmatprep.subr.mxu0 %v875
          %1905 = vmatpush1.msra.mxu0 %v874
          %1906 = vmatprep.subr.mxu0 %v879
          %1907 = vmatpush1.msra.mxu0 %v878
          %1908 = vmatprep.subr.mxu0 %v883
          %1909 = vmatpush1.msra.mxu0 %v882
          %1910 = vmatprep.subr.mxu0 %v887
          %1911 = vmatpush1.msra.mxu0 %v886
          %1912 = vmatprep.subr.mxu0 %v891
          %1913 = vmatpush1.msra.mxu0 %v890
          %1914 = vmatprep.subr.mxu0 %v895
          %1915 = vmatpush1.msra.mxu0 %v894
          %1916 = vmatprep.subr.mxu0 %v899
          %1917 = vmatpush1.msra.mxu0 %v898
          %1918 = vmatprep.subr.mxu0 %v903
          %1919 = vmatpush1.msra.mxu0 %v902
          %1920 = vmatprep.subr.mxu0 %v907
          %1921 = vmatpush1.msra.mxu0 %v906
          %1922 = vmatprep.subr.mxu0 %v911
          %1923 = vmatpush1.msra.mxu0 %v910
          %1924 = vmatprep.subr.mxu0 %v915
          %1925 = vmatpush1.msra.mxu0 %v914
          %1926 = vmatprep.subr.mxu0 0.0
          %1927 = vmatpush1.msra.mxu0 0.0
          %1928 = vmatprep.subr.mxu0 0.0
          %1929 = vmatpush1.msra.mxu0 0.0
          %1930 = vmatprep.subr.mxu0 0.0
          %1931 = vmatpush1.msra.mxu0 0.0
          %1932 = vmatprep.subr.mxu0 0.0
          %1933 = vmatpush1.msra.mxu0 0.0
          %1934 = vmatprep.subr.mxu0 0.0
          %1935 = vmatpush1.msra.mxu0 0.0
          %1936 = vmatprep.subr.mxu0 0.0
          %1937 = vmatpush1.msra.mxu0 0.0
          %1938 = vmatprep.subr.mxu0 0.0
          %1939 = vmatpush1.msra.mxu0 0.0
          %1940 = vmatprep.subr.mxu0 0.0
          %1941 = vmatpush1.msra.mxu0 0.0
          %1942 = vmatprep.subr.mxu0 0.0
          %1943 = vmatpush1.msra.mxu0 0.0
          %1944 = vmatprep.subr.mxu0 0.0
          %1945 = vmatpush1.msra.mxu0 0.0
          %1946 = vmatprep.subr.mxu0 0.0
          %1947 = vmatpush1.msra.mxu0 0.0
          %1948 = vmatprep.subr.mxu0 0.0
          %1949 = vmatpush1.msra.mxu0 0.0
          %1950 = vmatprep.subr.mxu0 0.0
          %1951 = vmatpush1.msra.mxu0 0.0
          %1952 = vmatprep.subr.mxu0 0.0
          %1953 = vmatpush1.msra.mxu0 0.0
          %1954 = vmatprep.subr.mxu0 0.0
          %1955 = vmatpush1.msra.mxu0 0.0
          %1956 = vmatprep.subr.mxu0 0.0
          %1957 = vmatpush1.msra.mxu0 0.0
          %1958 = vmatprep.mubr.f32.mxu0 0.0
          %1959 = vmatmul.mubr.f32.gmra.mrb[0].mxu0 %v1855
          %v1960 = vpop.f32.mrb[0].mxu0
          %v1961 = vadd.f32 0.0, %v1960
          %v1962 = vpop.f32.mrb[0].mxu0
          %v1963 = vadd.f32 0.0, %v1962
          %1964 = vmatprep.mubr.f32.mxu0 0.0
          %1965 = vmatmul.mubr.f32.gmra.mrb[0].mxu0 %v1856
          %v1966 = vpop.f32.mrb[0].mxu0
          %v1967 = vadd.f32 0.0, %v1966
          %v1968 = vpop.f32.mrb[0].mxu0
          %v1969 = vadd.f32 0.0, %v1968
          %1970 = vmatprep.mubr.f32.mxu0 0.0
          %1971 = vmatmul.mubr.f32.gmra.mrb[0].mxu0 %v1857
          %v1972 = vpop.f32.mrb[0].mxu0
          %v1973 = vadd.f32 0.0, %v1972
          %v1974 = vpop.f32.mrb[0].mxu0
          %v1975 = vadd.f32 0.0, %v1974
          %1976 = vmatprep.mubr.f32.mxu0 0.0
          %1977 = vmatmul.mubr.f32.gmra.mrb[0].mxu0 %v1858
          %v1978 = vpop.f32.mrb[0].mxu0
          %v1979 = vadd.f32 0.0, %v1978
          %v1980 = vpop.f32.mrb[0].mxu0
          %v1981 = vadd.f32 0.0, %v1980
          %1982 = vdwg.mxu0
          %1983 = vmatprep.subr.mxu0 %v857
          %1984 = vmatpush1.msra.mxu0 %v856
          %1985 = vmatprep.subr.mxu0 %v861
          %1986 = vmatpush1.msra.mxu0 %v860
          %1987 = vmatprep.subr.mxu0 %v865
          %1988 = vmatpush1.msra.mxu0 %v864
          %1989 = vmatprep.subr.mxu0 %v869
          %1990 = vmatpush1.msra.mxu0 %v868
          %1991 = vmatprep.subr.mxu0 %v873
          %1992 = vmatpush1.msra.mxu0 %v872
          %1993 = vmatprep.subr.mxu0 %v877
          %1994 = vmatpush1.msra.mxu0 %v876
          %1995 = vmatprep.subr.mxu0 %v881
          %1996 = vmatpush1.msra.mxu0 %v880
          %1997 = vmatprep.subr.mxu0 %v885
          %1998 = vmatpush1.msra.mxu0 %v884
          %1999 = vmatprep.subr.mxu0 %v889
          %2000 = vmatpush1.msra.mxu0 %v888
          %2001 = vmatprep.subr.mxu0 %v893
          %2002 = vmatpush1.msra.mxu0 %v892
          %2003 = vmatprep.subr.mxu0 %v897
          %2004 = vmatpush1.msra.mxu0 %v896
          %2005 = vmatprep.subr.mxu0 %v901
          %2006 = vmatpush1.msra.mxu0 %v900
          %2007 = vmatprep.subr.mxu0 %v905
          %2008 = vmatpush1.msra.mxu0 %v904
          %2009 = vmatprep.subr.mxu0 %v909
          %2010 = vmatpush1.msra.mxu0 %v908
          %2011 = vmatprep.subr.mxu0 %v913
          %2012 = vmatpush1.msra.mxu0 %v912
          %2013 = vmatprep.subr.mxu0 %v917
          %2014 = vmatpush1.msra.mxu0 %v916
          %2015 = vmatprep.subr.mxu0 0.0
          %2016 = vmatpush1.msra.mxu0 0.0
          %2017 = vmatprep.subr.mxu0 0.0
          %2018 = vmatpush1.msra.mxu0 0.0
          %2019 = vmatprep.subr.mxu0 0.0
          %2020 = vmatpush1.msra.mxu0 0.0
          %2021 = vmatprep.subr.mxu0 0.0
          %2022 = vmatpush1.msra.mxu0 0.0
          %2023 = vmatprep.subr.mxu0 0.0
          %2024 = vmatpush1.msra.mxu0 0.0
          %2025 = vmatprep.subr.mxu0 0.0
          %2026 = vmatpush1.msra.mxu0 0.0
          %2027 = vmatprep.subr.mxu0 0.0
          %2028 = vmatpush1.msra.mxu0 0.0
          %2029 = vmatprep.subr.mxu0 0.0
          %2030 = vmatpush1.msra.mxu0 0.0
          %2031 = vmatprep.subr.mxu0 0.0
          %2032 = vmatpush1.msra.mxu0 0.0
          %2033 = vmatprep.subr.mxu0 0.0
          %2034 = vmatpush1.msra.mxu0 0.0
          %2035 = vmatprep.subr.mxu0 0.0
          %2036 = vmatpush1.msra.mxu0 0.0
          %2037 = vmatprep.subr.mxu0 0.0
          %2038 = vmatpush1.msra.mxu0 0.0
          %2039 = vmatprep.subr.mxu0 0.0
          %2040 = vmatpush1.msra.mxu0 0.0
          %2041 = vmatprep.subr.mxu0 0.0
          %2042 = vmatpush1.msra.mxu0 0.0
          %2043 = vmatprep.subr.mxu0 0.0
          %2044 = vmatpush1.msra.mxu0 0.0
          %2045 = vmatprep.subr.mxu0 0.0
          %2046 = vmatpush1.msra.mxu0 0.0
          %2047 = vmatprep.mubr.f32.mxu0 0.0
          %2048 = vmatmul.mubr.f32.gmra.mrb[0].mxu0 %v1855
          %v2049 = vpop.f32.mrb[0].mxu0
          %v2050 = vadd.f32 0.0, %v2049
          %v2051 = vpop.f32.mrb[0].mxu0
          %v2052 = vadd.f32 0.0, %v2051
          %2053 = vmatprep.mubr.f32.mxu0 0.0
          %2054 = vmatmul.mubr.f32.gmra.mrb[0].mxu0 %v1856
          %v2055 = vpop.f32.mrb[0].mxu0
          %v2056 = vadd.f32 0.0, %v2055
          %v2057 = vpop.f32.mrb[0].mxu0
          %v2058 = vadd.f32 0.0, %v2057
          %2059 = vmatprep.mubr.f32.mxu0 0.0
          %2060 = vmatmul.mubr.f32.gmra.mrb[0].mxu0 %v1857
          %v2061 = vpop.f32.mrb[0].mxu0
          %v2062 = vadd.f32 0.0, %v2061
          %v2063 = vpop.f32.mrb[0].mxu0
          %v2064 = vadd.f32 0.0, %v2063
          %2065 = vmatprep.mubr.f32.mxu0 0.0
          %2066 = vmatmul.mubr.f32.gmra.mrb[0].mxu0 %v1858
          %v2067 = vpop.f32.mrb[0].mxu0
          %v2068 = vadd.f32 0.0, %v2067
          %v2069 = vpop.f32.mrb[0].mxu0
          %v2070 = vadd.f32 0.0, %v2069
          %2071 = vdwg.mxu0
          %v2072 = vadd.f32 %v1878, %v1961
          %v2073 = vadd.f32 %v1879, %v1963
          %v2074 = vadd.f32 %v1880, %v2050
          %v2075 = vadd.f32 %v1881, %v2052
          %v2076 = vadd.f32 %v1882, %v1967
          %v2077 = vadd.f32 %v1883, %v1969
          %v2078 = vadd.f32 %v1884, %v2056
          %v2079 = vadd.f32 %v1885, %v2058
          %v2080 = vadd.f32 %v1886, %v1973
          %v2081 = vadd.f32 %v1887, %v1975
          %v2082 = vadd.f32 %v1888, %v2062
          %v2083 = vadd.f32 %v1889, %v2064
          %v2084 = vadd.f32 %v1890, %v1979
          %v2085 = vadd.f32 %v1891, %v1981
          %v2086 = vadd.f32 %v1892, %v2068
          %v2087 = vadd.f32 %v1893, %v2070
          %v2088 = vxor.u32 %v2072, 2147483648
          %v2089 = vxor.u32 %v2076, 2147483648
          %v2090 = vxor.u32 %v2080, 2147483648
          %v2091 = vxor.u32 %v2084, 2147483648
          %v2092 = vmul.f32 %v2088, 1.442695
          %v2093 = vpow.pop %v2092
          %v2094 = vmul.f32 %v2089, 1.442695
          %v2095 = vpow.pop %v2094
          %v2096 = vmul.f32 %v2090, 1.442695
          %v2097 = vpow.pop %v2096
          %v2098 = vmul.f32 %v2091, 1.442695
          %v2099 = vpow.pop %v2098
          %v2100 = vadd.f32 %v2093, 1.0
          %v2101 = vadd.f32 %v2095, 1.0
          %v2102 = vadd.f32 %v2097, 1.0
          %v2103 = vadd.f32 %v2099, 1.0
          %v2104 = vrcp.pop %v2100
          %v2105 = vmul.f32 1.0, %v2104
          %v2106 = vrcp.pop %v2101
          %v2107 = vmul.f32 1.0, %v2106
          %v2108 = vrcp.pop %v2102
          %v2109 = vmul.f32 1.0, %v2108
          %v2110 = vrcp.pop %v2103
          %v2111 = vmul.f32 1.0, %v2110
          %v2112 = vxor.u32 %v2073, 2147483648
          %v2113 = vxor.u32 %v2077, 2147483648
          %v2114 = vxor.u32 %v2081, 2147483648
          %v2115 = vxor.u32 %v2085, 2147483648
          %v2116 = vmul.f32 %v2112, 1.442695
          %v2117 = vpow.pop %v2116
          %v2118 = vmul.f32 %v2113, 1.442695
          %v2119 = vpow.pop %v2118
          %v2120 = vmul.f32 %v2114, 1.442695
          %v2121 = vpow.pop %v2120
          %v2122 = vmul.f32 %v2115, 1.442695
          %v2123 = vpow.pop %v2122
          %v2124 = vadd.f32 %v2117, 1.0
          %v2125 = vadd.f32 %v2119, 1.0
          %v2126 = vadd.f32 %v2121, 1.0
          %v2127 = vadd.f32 %v2123, 1.0
          %v2128 = vrcp.pop %v2124
          %v2129 = vmul.f32 1.0, %v2128
          %v2130 = vrcp.pop %v2125
          %v2131 = vmul.f32 1.0, %v2130
          %v2132 = vrcp.pop %v2126
          %v2133 = vmul.f32 1.0, %v2132
          %v2134 = vrcp.pop %v2127
          %v2135 = vmul.f32 1.0, %v2134
          %v2136 = vtanh.pop %v2074
          %v2137 = vtanh.pop %v2078
          %v2138 = vtanh.pop %v2082
          %v2139 = vtanh.pop %v2086
          %v2140 = vxor.u32 %v2075, 2147483648
          %v2141 = vxor.u32 %v2079, 2147483648
          %v2142 = vxor.u32 %v2083, 2147483648
          %v2143 = vxor.u32 %v2087, 2147483648
          %v2144 = vmul.f32 %v2140, 1.442695
          %v2145 = vpow.pop %v2144
          %v2146 = vmul.f32 %v2141, 1.442695
          %v2147 = vpow.pop %v2146
          %v2148 = vmul.f32 %v2142, 1.442695
          %v2149 = vpow.pop %v2148
          %v2150 = vmul.f32 %v2143, 1.442695
          %v2151 = vpow.pop %v2150
          %v2152 = vadd.f32 %v2145, 1.0
          %v2153 = vadd.f32 %v2147, 1.0
          %v2154 = vadd.f32 %v2149, 1.0
          %v2155 = vadd.f32 %v2151, 1.0
          %v2156 = vrcp.pop %v2152
          %v2157 = vmul.f32 1.0, %v2156
          %v2158 = vrcp.pop %v2153
          %v2159 = vmul.f32 1.0, %v2158
          %v2160 = vrcp.pop %v2154
          %v2161 = vmul.f32 1.0, %v2160
          %v2162 = vrcp.pop %v2155
          %v2163 = vmul.f32 1.0, %v2162
          %v2164 = vmul.f32 %v2129, %v1859
          %v2165 = vmul.f32 %v2131, %v1860
          %v2166 = vmul.f32 %v2133, %v1861
          %v2167 = vmul.f32 %v2135, %v1862
          %v2168 = vmul.f32 %v2105, %v2136
          %v2169 = vmul.f32 %v2107, %v2137
          %v2170 = vmul.f32 %v2109, %v2138
          %v2171 = vmul.f32 %v2111, %v2139
          %v2172 = vadd.f32 %v2164, %v2168
          %v2173 = vadd.f32 %v2165, %v2169
          %v2174 = vadd.f32 %v2166, %v2170
          %v2175 = vadd.f32 %v2167, %v2171
          %v2176 = vtanh.pop %v2172
          %v2177 = vtanh.pop %v2173
          %v2178 = vtanh.pop %v2174
          %v2179 = vtanh.pop %v2175
          %v2180 = vmul.f32 %v2157, %v2176
          %v2181 = vmul.f32 %v2159, %v2177
          %v2182 = vmul.f32 %v2161, %v2178
          %v2183 = vmul.f32 %v2163, %v2179
          %v2185 = vlaneseq
          %v2186 = vshrl.u32 %v2185, 7
          %v2187 = vsub.s32 0, %v2186
          %v2188 = vrot.slane %v1046, %v2187
          %v2189 = vlaneseq
          %v2190 = vshrl.u32 %v2189, 7
          %v2191 = vsub.s32 1, %v2190
          %v2192 = vrot.slane %v1046, %v2191
          %v2193 = vlaneseq
          %v2194 = vshrl.u32 %v2193, 7
          %v2195 = vsub.s32 2, %v2194
          %v2196 = vrot.slane %v1046, %v2195
          %v2197 = vlaneseq
          %v2198 = vshrl.u32 %v2197, 7
          %v2199 = vsub.s32 3, %v2198
          %v2200 = vrot.slane %v1046, %v2199
          %2205 = vmatprep.subr.mxu0 %v919
          %2206 = vmatpush1.msra.mxu0 %v918
          %2207 = vmatprep.subr.mxu0 %v923
          %2208 = vmatpush1.msra.mxu0 %v922
          %2209 = vmatprep.subr.mxu0 %v927
          %2210 = vmatpush1.msra.mxu0 %v926
          %2211 = vmatprep.subr.mxu0 %v931
          %2212 = vmatpush1.msra.mxu0 %v930
          %2213 = vmatprep.subr.mxu0 %v935
          %2214 = vmatpush1.msra.mxu0 %v934
          %2215 = vmatprep.subr.mxu0 %v939
          %2216 = vmatpush1.msra.mxu0 %v938
          %2217 = vmatprep.subr.mxu0 %v943
          %2218 = vmatpush1.msra.mxu0 %v942
          %2219 = vmatprep.subr.mxu0 %v947
          %2220 = vmatpush1.msra.mxu0 %v946
          %2221 = vmatprep.subr.mxu0 %v951
          %2222 = vmatpush1.msra.mxu0 %v950
          %2223 = vmatprep.subr.mxu0 %v955
          %2224 = vmatpush1.msra.mxu0 %v954
          %2225 = vmatprep.subr.mxu0 %v959
          %2226 = vmatpush1.msra.mxu0 %v958
          %2227 = vmatprep.subr.mxu0 %v963
          %2228 = vmatpush1.msra.mxu0 %v962
          %2229 = vmatprep.subr.mxu0 %v967
          %2230 = vmatpush1.msra.mxu0 %v966
          %2231 = vmatprep.subr.mxu0 %v971
          %2232 = vmatpush1.msra.mxu0 %v970
          %2233 = vmatprep.subr.mxu0 %v975
          %2234 = vmatpush1.msra.mxu0 %v974
          %2235 = vmatprep.subr.mxu0 %v979
          %2236 = vmatpush1.msra.mxu0 %v978
          %2237 = vmatprep.subr.mxu0 %v983
          %2238 = vmatpush1.msra.mxu0 %v982
          %2239 = vmatprep.subr.mxu0 %v987
          %2240 = vmatpush1.msra.mxu0 %v986
          %2241 = vmatprep.subr.mxu0 %v991
          %2242 = vmatpush1.msra.mxu0 %v990
          %2243 = vmatprep.subr.mxu0 %v995
          %2244 = vmatpush1.msra.mxu0 %v994
          %2245 = vmatprep.subr.mxu0 %v999
          %2246 = vmatpush1.msra.mxu0 %v998
          %2247 = vmatprep.subr.mxu0 %v1003
          %2248 = vmatpush1.msra.mxu0 %v1002
          %2249 = vmatprep.subr.mxu0 %v1007
          %2250 = vmatpush1.msra.mxu0 %v1006
          %2251 = vmatprep.subr.mxu0 %v1011
          %2252 = vmatpush1.msra.mxu0 %v1010
          %2253 = vmatprep.subr.mxu0 %v1015
          %2254 = vmatpush1.msra.mxu0 %v1014
          %2255 = vmatprep.subr.mxu0 %v1019
          %2256 = vmatpush1.msra.mxu0 %v1018
          %2257 = vmatprep.subr.mxu0 %v1023
          %2258 = vmatpush1.msra.mxu0 %v1022
          %2259 = vmatprep.subr.mxu0 %v1027
          %2260 = vmatpush1.msra.mxu0 %v1026
          %2261 = vmatprep.subr.mxu0 %v1031
          %2262 = vmatpush1.msra.mxu0 %v1030
          %2263 = vmatprep.subr.mxu0 %v1035
          %2264 = vmatpush1.msra.mxu0 %v1034
          %2265 = vmatprep.subr.mxu0 %v1039
          %2266 = vmatpush1.msra.mxu0 %v1038
          %2267 = vmatprep.subr.mxu0 %v1043
          %2268 = vmatpush1.msra.mxu0 %v1042
          %2269 = vmatprep.mubr.f32.mxu0 %v1863
          %2270 = vmatmul.mubr.f32.gmra.mrb[0].mxu0 %v2180
          %v2271 = vpop.f32.mrb[0].mxu0
          %v2272 = vadd.f32 %v2188, %v2271
          %v2273 = vpop.f32.mrb[0].mxu0
          %v2274 = vadd.f32 %v2192, %v2273
          %2275 = vmatprep.mubr.f32.mxu0 %v1864
          %2276 = vmatmul.mubr.f32.gmra.mrb[0].mxu0 %v2181
          %v2277 = vpop.f32.mrb[0].mxu0
          %v2278 = vadd.f32 %v2188, %v2277
          %v2279 = vpop.f32.mrb[0].mxu0
          %v2280 = vadd.f32 %v2192, %v2279
          %2281 = vmatprep.mubr.f32.mxu0 %v1865
          %2282 = vmatmul.mubr.f32.gmra.mrb[0].mxu0 %v2182
          %v2283 = vpop.f32.mrb[0].mxu0
          %v2284 = vadd.f32 %v2188, %v2283
          %v2285 = vpop.f32.mrb[0].mxu0
          %v2286 = vadd.f32 %v2192, %v2285
          %2287 = vmatprep.mubr.f32.mxu0 %v1866
          %2288 = vmatmul.mubr.f32.gmra.mrb[0].mxu0 %v2183
          %v2289 = vpop.f32.mrb[0].mxu0
          %v2290 = vadd.f32 %v2188, %v2289
          %v2291 = vpop.f32.mrb[0].mxu0
          %v2292 = vadd.f32 %v2192, %v2291
          %2293 = vdwg.mxu0
          %2294 = vmatprep.subr.mxu0 %v921
          %2295 = vmatpush1.msra.mxu0 %v920
          %2296 = vmatprep.subr.mxu0 %v925
          %2297 = vmatpush1.msra.mxu0 %v924
          %2298 = vmatprep.subr.mxu0 %v929
          %2299 = vmatpush1.msra.mxu0 %v928
          %2300 = vmatprep.subr.mxu0 %v933
          %2301 = vmatpush1.msra.mxu0 %v932
          %2302 = vmatprep.subr.mxu0 %v937
          %2303 = vmatpush1.msra.mxu0 %v936
          %2304 = vmatprep.subr.mxu0 %v941
          %2305 = vmatpush1.msra.mxu0 %v940
          %2306 = vmatprep.subr.mxu0 %v945
          %2307 = vmatpush1.msra.mxu0 %v944
          %2308 = vmatprep.subr.mxu0 %v949
          %2309 = vmatpush1.msra.mxu0 %v948
          %2310 = vmatprep.subr.mxu0 %v953
          %2311 = vmatpush1.msra.mxu0 %v952
          %2312 = vmatprep.subr.mxu0 %v957
          %2313 = vmatpush1.msra.mxu0 %v956
          %2314 = vmatprep.subr.mxu0 %v961
          %2315 = vmatpush1.msra.mxu0 %v960
          %2316 = vmatprep.subr.mxu0 %v965
          %2317 = vmatpush1.msra.mxu0 %v964
          %2318 = vmatprep.subr.mxu0 %v969
          %2319 = vmatpush1.msra.mxu0 %v968
          %2320 = vmatprep.subr.mxu0 %v973
          %2321 = vmatpush1.msra.mxu0 %v972
          %2322 = vmatprep.subr.mxu0 %v977
          %2323 = vmatpush1.msra.mxu0 %v976
          %2324 = vmatprep.subr.mxu0 %v981
          %2325 = vmatpush1.msra.mxu0 %v980
          %2326 = vmatprep.subr.mxu0 %v985
          %2327 = vmatpush1.msra.mxu0 %v984
          %2328 = vmatprep.subr.mxu0 %v989
          %2329 = vmatpush1.msra.mxu0 %v988
          %2330 = vmatprep.subr.mxu0 %v993
          %2331 = vmatpush1.msra.mxu0 %v992
          %2332 = vmatprep.subr.mxu0 %v997
          %2333 = vmatpush1.msra.mxu0 %v996
          %2334 = vmatprep.subr.mxu0 %v1001
          %2335 = vmatpush1.msra.mxu0 %v1000
          %2336 = vmatprep.subr.mxu0 %v1005
          %2337 = vmatpush1.msra.mxu0 %v1004
          %2338 = vmatprep.subr.mxu0 %v1009
          %2339 = vmatpush1.msra.mxu0 %v1008
          %2340 = vmatprep.subr.mxu0 %v1013
          %2341 = vmatpush1.msra.mxu0 %v1012
          %2342 = vmatprep.subr.mxu0 %v1017
          %2343 = vmatpush1.msra.mxu0 %v1016
          %2344 = vmatprep.subr.mxu0 %v1021
          %2345 = vmatpush1.msra.mxu0 %v1020
          %2346 = vmatprep.subr.mxu0 %v1025
          %2347 = vmatpush1.msra.mxu0 %v1024
          %2348 = vmatprep.subr.mxu0 %v1029
          %2349 = vmatpush1.msra.mxu0 %v1028
          %2350 = vmatprep.subr.mxu0 %v1033
          %2351 = vmatpush1.msra.mxu0 %v1032
          %2352 = vmatprep.subr.mxu0 %v1037
          %2353 = vmatpush1.msra.mxu0 %v1036
          %2354 = vmatprep.subr.mxu0 %v1041
          %2355 = vmatpush1.msra.mxu0 %v1040
          %2356 = vmatprep.subr.mxu0 %v1045
          %2357 = vmatpush1.msra.mxu0 %v1044
          %2358 = vmatprep.mubr.f32.mxu0 %v1863
          %2359 = vmatmul.mubr.f32.gmra.mrb[0].mxu0 %v2180
          %v2360 = vpop.f32.mrb[0].mxu0
          %v2361 = vadd.f32 %v2196, %v2360
          %v2362 = vpop.f32.mrb[0].mxu0
          %v2363 = vadd.f32 %v2200, %v2362
          %2364 = vmatprep.mubr.f32.mxu0 %v1864
          %2365 = vmatmul.mubr.f32.gmra.mrb[0].mxu0 %v2181
          %v2366 = vpop.f32.mrb[0].mxu0
          %v2367 = vadd.f32 %v2196, %v2366
          %v2368 = vpop.f32.mrb[0].mxu0
          %v2369 = vadd.f32 %v2200, %v2368
          %2370 = vmatprep.mubr.f32.mxu0 %v1865
          %2371 = vmatmul.mubr.f32.gmra.mrb[0].mxu0 %v2182
          %v2372 = vpop.f32.mrb[0].mxu0
          %v2373 = vadd.f32 %v2196, %v2372
          %v2374 = vpop.f32.mrb[0].mxu0
          %v2375 = vadd.f32 %v2200, %v2374
          %2376 = vmatprep.mubr.f32.mxu0 %v1866
          %2377 = vmatmul.mubr.f32.gmra.mrb[0].mxu0 %v2183
          %v2378 = vpop.f32.mrb[0].mxu0
          %v2379 = vadd.f32 %v2196, %v2378
          %v2380 = vpop.f32.mrb[0].mxu0
          %v2381 = vadd.f32 %v2200, %v2380
          %2382 = vdwg.mxu0
          %v2383 = vxor.u32 %v2272, 2147483648
          %v2384 = vxor.u32 %v2278, 2147483648
          %v2385 = vxor.u32 %v2284, 2147483648
          %v2386 = vxor.u32 %v2290, 2147483648
          %v2387 = vmul.f32 %v2383, 1.442695
          %v2388 = vpow.pop %v2387
          %v2389 = vmul.f32 %v2384, 1.442695
          %v2390 = vpow.pop %v2389
          %v2391 = vmul.f32 %v2385, 1.442695
          %v2392 = vpow.pop %v2391
          %v2393 = vmul.f32 %v2386, 1.442695
          %v2394 = vpow.pop %v2393
          %v2395 = vadd.f32 %v2388, 1.0
          %v2396 = vadd.f32 %v2390, 1.0
          %v2397 = vadd.f32 %v2392, 1.0
          %v2398 = vadd.f32 %v2394, 1.0
          %v2399 = vrcp.pop %v2395
          %v2400 = vmul.f32 1.0, %v2399
          %v2401 = vrcp.pop %v2396
          %v2402 = vmul.f32 1.0, %v2401
          %v2403 = vrcp.pop %v2397
          %v2404 = vmul.f32 1.0, %v2403
          %v2405 = vrcp.pop %v2398
          %v2406 = vmul.f32 1.0, %v2405
          %v2407 = vxor.u32 %v2274, 2147483648
          %v2408 = vxor.u32 %v2280, 2147483648
          %v2409 = vxor.u32 %v2286, 2147483648
          %v2410 = vxor.u32 %v2292, 2147483648
          %v2411 = vmul.f32 %v2407, 1.442695
          %v2412 = vpow.pop %v2411
          %v2413 = vmul.f32 %v2408, 1.442695
          %v2414 = vpow.pop %v2413
          %v2415 = vmul.f32 %v2409, 1.442695
          %v2416 = vpow.pop %v2415
          %v2417 = vmul.f32 %v2410, 1.442695
          %v2418 = vpow.pop %v2417
          %v2419 = vadd.f32 %v2412, 1.0
          %v2420 = vadd.f32 %v2414, 1.0
          %v2421 = vadd.f32 %v2416, 1.0
          %v2422 = vadd.f32 %v2418, 1.0
          %v2423 = vrcp.pop %v2419
          %v2424 = vmul.f32 1.0, %v2423
          %v2425 = vrcp.pop %v2420
          %v2426 = vmul.f32 1.0, %v2425
          %v2427 = vrcp.pop %v2421
          %v2428 = vmul.f32 1.0, %v2427
          %v2429 = vrcp.pop %v2422
          %v2430 = vmul.f32 1.0, %v2429
          %v2431 = vtanh.pop %v2361
          %v2432 = vtanh.pop %v2367
          %v2433 = vtanh.pop %v2373
          %v2434 = vtanh.pop %v2379
          %v2435 = vxor.u32 %v2363, 2147483648
          %v2436 = vxor.u32 %v2369, 2147483648
          %v2437 = vxor.u32 %v2375, 2147483648
          %v2438 = vxor.u32 %v2381, 2147483648
          %v2439 = vmul.f32 %v2435, 1.442695
          %v2440 = vpow.pop %v2439
          %v2441 = vmul.f32 %v2436, 1.442695
          %v2442 = vpow.pop %v2441
          %v2443 = vmul.f32 %v2437, 1.442695
          %v2444 = vpow.pop %v2443
          %v2445 = vmul.f32 %v2438, 1.442695
          %v2446 = vpow.pop %v2445
          %v2447 = vadd.f32 %v2440, 1.0
          %v2448 = vadd.f32 %v2442, 1.0
          %v2449 = vadd.f32 %v2444, 1.0
          %v2450 = vadd.f32 %v2446, 1.0
          %v2451 = vrcp.pop %v2447
          %v2452 = vmul.f32 1.0, %v2451
          %v2453 = vrcp.pop %v2448
          %v2454 = vmul.f32 1.0, %v2453
          %v2455 = vrcp.pop %v2449
          %v2456 = vmul.f32 1.0, %v2455
          %v2457 = vrcp.pop %v2450
          %v2458 = vmul.f32 1.0, %v2457
          %v2459 = vmul.f32 %v2424, %v1867
          %v2460 = vmul.f32 %v2426, %v1868
          %v2461 = vmul.f32 %v2428, %v1869
          %v2462 = vmul.f32 %v2430, %v1870
          %v2463 = vmul.f32 %v2400, %v2431
          %v2464 = vmul.f32 %v2402, %v2432
          %v2465 = vmul.f32 %v2404, %v2433
          %v2466 = vmul.f32 %v2406, %v2434
          %v2467 = vadd.f32 %v2459, %v2463
          %v2468 = vadd.f32 %v2460, %v2464
          %v2469 = vadd.f32 %v2461, %v2465
          %v2470 = vadd.f32 %v2462, %v2466
          %v2471 = vtanh.pop %v2467
          %v2472 = vtanh.pop %v2468
          %v2473 = vtanh.pop %v2469
          %v2474 = vtanh.pop %v2470
          %v2475 = vmul.f32 %v2452, %v2471
          %v2476 = vmul.f32 %v2454, %v2472
          %v2477 = vmul.f32 %v2456, %v2473
          %v2478 = vmul.f32 %v2458, %v2474
          %2479 = vadd.xlane.f32.xlu0 %v2475
          %v2480 = vpop.xlane.xlu0 %2479
          %2481 = vadd.xlane.f32.xlu0 %v2476
          %v2482 = vpop.xlane.xlu0 %2481
          %2483 = vadd.xlane.f32.xlu0 %v2477
          %v2484 = vpop.xlane.xlu0 %2483
          %2485 = vadd.xlane.f32.xlu0 %v2478
          %v2486 = vpop.xlane.xlu0 %2485
          %v2487 = vrcp.pop 128.0
          %v2488 = vmul.f32 %v2480, %v2487
          %v2489 = vmul.f32 %v2482, %v2487
          %v2490 = vmul.f32 %v2484, %v2487
          %v2491 = vmul.f32 %v2486, %v2487
          %v2492 = vsub.f32 %v2475, %v2488
          %v2493 = vsub.f32 %v2476, %v2489
          %v2494 = vsub.f32 %v2477, %v2490
          %v2495 = vsub.f32 %v2478, %v2491
          %v2496 = vmul.f32 %v2492, %v2492
          %v2497 = vmul.f32 %v2493, %v2493
          %v2498 = vmul.f32 %v2494, %v2494
          %v2499 = vmul.f32 %v2495, %v2495
          %2500 = vadd.xlane.f32.xlu0 %v2496
          %v2501 = vpop.xlane.xlu0 %2500
          %2502 = vadd.xlane.f32.xlu0 %v2497
          %v2503 = vpop.xlane.xlu0 %2502
          %2504 = vadd.xlane.f32.xlu0 %v2498
          %v2505 = vpop.xlane.xlu0 %2504
          %2506 = vadd.xlane.f32.xlu0 %v2499
          %v2507 = vpop.xlane.xlu0 %2506
          %v2508 = vmul.f32 %v2501, %v2487
          %v2509 = vmul.f32 %v2503, %v2487
          %v2510 = vmul.f32 %v2505, %v2487
          %v2511 = vmul.f32 %v2507, %v2487
          %v2512 = vadd.f32 %v2508, 1e-05
          %v2513 = vadd.f32 %v2509, 1e-05
          %v2514 = vadd.f32 %v2510, 1e-05
          %v2515 = vadd.f32 %v2511, 1e-05
          %v2516 = vrsqrt.pop %v2512
          %v2517 = vrsqrt.pop %v2513
          %v2518 = vrsqrt.pop %v2514
          %v2519 = vrsqrt.pop %v2515
          %v2520 = vmul.f32 %v2492, %v2516
          %v2521 = vmul.f32 %v2493, %v2517
          %v2522 = vmul.f32 %v2494, %v2518
          %v2523 = vmul.f32 %v2495, %v2519
          %v2525 = vlaneseq
          %v2526 = vshrl.u32 %v2525, 7
          %v2527 = vsub.s32 0, %v2526
          %v2528 = vrot.slane %v1047, %v2527
          %v2530 = vmul.f32 %v2520, %v2528
          %v2531 = vmul.f32 %v2521, %v2528
          %v2532 = vmul.f32 %v2522, %v2528
          %v2533 = vmul.f32 %v2523, %v2528
          %v2535 = vlaneseq
          %v2536 = vshrl.u32 %v2535, 7
          %v2537 = vsub.s32 0, %v2536
          %v2538 = vrot.slane %v1048, %v2537
          %v2540 = vadd.f32 %v2530, %v2538
          %v2541 = vadd.f32 %v2531, %v2538
          %v2542 = vadd.f32 %v2532, %v2538
          %v2543 = vadd.f32 %v2533, %v2538
          %v2545 = vlaneseq
          %v2546 = vshrl.u32 %v2545, 7
          %v2547 = vsub.s32 0, %v2546
          %v2548 = vrot.slane %v1081, %v2547
          %v2549 = vlaneseq
          %v2550 = vshrl.u32 %v2549, 7
          %v2551 = vsub.s32 1, %v2550
          %v2552 = vrot.slane %v1081, %v2551
          %2555 = vmatprep.subr.mxu0 %v1050
          %2556 = vmatpush1.msra.mxu0 %v1049
          %2557 = vmatprep.subr.mxu0 %v1052
          %2558 = vmatpush1.msra.mxu0 %v1051
          %2559 = vmatprep.subr.mxu0 %v1054
          %2560 = vmatpush1.msra.mxu0 %v1053
          %2561 = vmatprep.subr.mxu0 %v1056
          %2562 = vmatpush1.msra.mxu0 %v1055
          %2563 = vmatprep.subr.mxu0 %v1058
          %2564 = vmatpush1.msra.mxu0 %v1057
          %2565 = vmatprep.subr.mxu0 %v1060
          %2566 = vmatpush1.msra.mxu0 %v1059
          %2567 = vmatprep.subr.mxu0 %v1062
          %2568 = vmatpush1.msra.mxu0 %v1061
          %2569 = vmatprep.subr.mxu0 %v1064
          %2570 = vmatpush1.msra.mxu0 %v1063
          %2571 = vmatprep.subr.mxu0 %v1066
          %2572 = vmatpush1.msra.mxu0 %v1065
          %2573 = vmatprep.subr.mxu0 %v1068
          %2574 = vmatpush1.msra.mxu0 %v1067
          %2575 = vmatprep.subr.mxu0 %v1070
          %2576 = vmatpush1.msra.mxu0 %v1069
          %2577 = vmatprep.subr.mxu0 %v1072
          %2578 = vmatpush1.msra.mxu0 %v1071
          %2579 = vmatprep.subr.mxu0 %v1074
          %2580 = vmatpush1.msra.mxu0 %v1073
          %2581 = vmatprep.subr.mxu0 %v1076
          %2582 = vmatpush1.msra.mxu0 %v1075
          %2583 = vmatprep.subr.mxu0 %v1078
          %2584 = vmatpush1.msra.mxu0 %v1077
          %2585 = vmatprep.subr.mxu0 %v1080
          %2586 = vmatpush1.msra.mxu0 %v1079
          %2587 = vmatprep.subr.mxu0 0.0
          %2588 = vmatpush1.msra.mxu0 0.0
          %2589 = vmatprep.subr.mxu0 0.0
          %2590 = vmatpush1.msra.mxu0 0.0
          %2591 = vmatprep.subr.mxu0 0.0
          %2592 = vmatpush1.msra.mxu0 0.0
          %2593 = vmatprep.subr.mxu0 0.0
          %2594 = vmatpush1.msra.mxu0 0.0
          %2595 = vmatprep.subr.mxu0 0.0
          %2596 = vmatpush1.msra.mxu0 0.0
          %2597 = vmatprep.subr.mxu0 0.0
          %2598 = vmatpush1.msra.mxu0 0.0
          %2599 = vmatprep.subr.mxu0 0.0
          %2600 = vmatpush1.msra.mxu0 0.0
          %2601 = vmatprep.subr.mxu0 0.0
          %2602 = vmatpush1.msra.mxu0 0.0
          %2603 = vmatprep.subr.mxu0 0.0
          %2604 = vmatpush1.msra.mxu0 0.0
          %2605 = vmatprep.subr.mxu0 0.0
          %2606 = vmatpush1.msra.mxu0 0.0
          %2607 = vmatprep.subr.mxu0 0.0
          %2608 = vmatpush1.msra.mxu0 0.0
          %2609 = vmatprep.subr.mxu0 0.0
          %2610 = vmatpush1.msra.mxu0 0.0
          %2611 = vmatprep.subr.mxu0 0.0
          %2612 = vmatpush1.msra.mxu0 0.0
          %2613 = vmatprep.subr.mxu0 0.0
          %2614 = vmatpush1.msra.mxu0 0.0
          %2615 = vmatprep.subr.mxu0 0.0
          %2616 = vmatpush1.msra.mxu0 0.0
          %2617 = vmatprep.subr.mxu0 0.0
          %2618 = vmatpush1.msra.mxu0 0.0
          %2619 = vmatprep.mubr.f32.mxu0 0.0
          %2620 = vmatmul.mubr.f32.gmra.mrb[0].mxu0 %v2540
          %v2621 = vpop.f32.mrb[0].mxu0
          %v2622 = vadd.f32 %v2548, %v2621
          %v2623 = vpop.f32.mrb[0].mxu0
          %v2624 = vadd.f32 %v2552, %v2623
          %2625 = vmatprep.mubr.f32.mxu0 0.0
          %2626 = vmatmul.mubr.f32.gmra.mrb[0].mxu0 %v2541
          %v2627 = vpop.f32.mrb[0].mxu0
          %v2628 = vadd.f32 %v2548, %v2627
          %v2629 = vpop.f32.mrb[0].mxu0
          %v2630 = vadd.f32 %v2552, %v2629
          %2631 = vmatprep.mubr.f32.mxu0 0.0
          %2632 = vmatmul.mubr.f32.gmra.mrb[0].mxu0 %v2542
          %v2633 = vpop.f32.mrb[0].mxu0
          %v2634 = vadd.f32 %v2548, %v2633
          %v2635 = vpop.f32.mrb[0].mxu0
          %v2636 = vadd.f32 %v2552, %v2635
          %2637 = vmatprep.mubr.f32.mxu0 0.0
          %2638 = vmatmul.mubr.f32.gmra.mrb[0].mxu0 %v2543
          %v2639 = vpop.f32.mrb[0].mxu0
          %v2640 = vadd.f32 %v2548, %v2639
          %v2641 = vpop.f32.mrb[0].mxu0
          %v2642 = vadd.f32 %v2552, %v2641
          %2643 = vdwg.mxu0
          %v2644 = vmax.f32 %v2622, %v2624
          %2645 = vmax.xlane.f32.xlu0 %v2644
          %v2646 = vpop.xlane.xlu0 %2645
          %v2647 = vmax.f32 %v2628, %v2630
          %2648 = vmax.xlane.f32.xlu0 %v2647
          %v2649 = vpop.xlane.xlu0 %2648
          %v2650 = vmax.f32 %v2634, %v2636
          %2651 = vmax.xlane.f32.xlu0 %v2650
          %v2652 = vpop.xlane.xlu0 %2651
          %v2653 = vmax.f32 %v2640, %v2642
          %2654 = vmax.xlane.f32.xlu0 %v2653
          %v2655 = vpop.xlane.xlu0 %2654
          %v2656 = vsub.f32 %v2622, %v2646
          %v2657 = vsub.f32 %v2624, %v2646
          %v2658 = vsub.f32 %v2628, %v2649
          %v2659 = vsub.f32 %v2630, %v2649
          %v2660 = vsub.f32 %v2634, %v2652
          %v2661 = vsub.f32 %v2636, %v2652
          %v2662 = vsub.f32 %v2640, %v2655
          %v2663 = vsub.f32 %v2642, %v2655
          %v2664 = vmul.f32 %v2656, 1.442695
          %v2665 = vpow.pop %v2664
          %v2666 = vmul.f32 %v2657, 1.442695
          %v2667 = vpow.pop %v2666
          %v2668 = vmul.f32 %v2658, 1.442695
          %v2669 = vpow.pop %v2668
          %v2670 = vmul.f32 %v2659, 1.442695
          %v2671 = vpow.pop %v2670
          %v2672 = vmul.f32 %v2660, 1.442695
          %v2673 = vpow.pop %v2672
          %v2674 = vmul.f32 %v2661, 1.442695
          %v2675 = vpow.pop %v2674
          %v2676 = vmul.f32 %v2662, 1.442695
          %v2677 = vpow.pop %v2676
          %v2678 = vmul.f32 %v2663, 1.442695
          %v2679 = vpow.pop %v2678
          %v2680 = vadd.f32 %v2665, %v2667
          %2681 = vadd.xlane.f32.xlu0 %v2680
          %v2682 = vpop.xlane.xlu0 %2681
          %v2683 = vadd.f32 %v2669, %v2671
          %2684 = vadd.xlane.f32.xlu0 %v2683
          %v2685 = vpop.xlane.xlu0 %2684
          %v2686 = vadd.f32 %v2673, %v2675
          %2687 = vadd.xlane.f32.xlu0 %v2686
          %v2688 = vpop.xlane.xlu0 %2687
          %v2689 = vadd.f32 %v2677, %v2679
          %2690 = vadd.xlane.f32.xlu0 %v2689
          %v2691 = vpop.xlane.xlu0 %2690
          %v2692 = vlog2.pop %v2682
          %v2693 = vmul.f32 %v2692, 0.6931472
          %v2694 = vlog2.pop %v2685
          %v2695 = vmul.f32 %v2694, 0.6931472
          %v2696 = vlog2.pop %v2688
          %v2697 = vmul.f32 %v2696, 0.6931472
          %v2698 = vlog2.pop %v2691
          %v2699 = vmul.f32 %v2698, 0.6931472
          %v2700 = vadd.f32 %v2693, %v2646
          %v2701 = vadd.f32 %v2695, %v2649
          %v2702 = vadd.f32 %v2697, %v2652
          %v2703 = vadd.f32 %v2699, %v2655
          %s2704 = smul.u32 %s1850, 32
          %s2705 = scalar_lea.vmem %s772, %s2704 [#allocation4]
          %v2706 = vld [vmem:[%s2705] sm:$0xff]
          %v2707 = vld [vmem:[%s2705 + $0x8] sm:$0xff]
          %v2708 = vld [vmem:[%s2705 + $0x10] sm:$0xff]
          %v2709 = vld [vmem:[%s2705 + $0x18] sm:$0xff]
          %2710 = vset.pattern.permute.xlu0 0
          %2711 = vperm.xlu0 %2710, %v2706
          %v2712 = vpop.permute.xlu0 %2711
          %2713 = vset.pattern.permute.xlu0 0
          %2714 = vperm.xlu0 %2713, %v2707
          %v2715 = vpop.permute.xlu0 %2714
          %2716 = vset.pattern.permute.xlu0 0
          %2717 = vperm.xlu0 %2716, %v2708
          %v2718 = vpop.permute.xlu0 %2717
          %2719 = vset.pattern.permute.xlu0 0
          %2720 = vperm.xlu0 %2719, %v2709
          %v2721 = vpop.permute.xlu0 %2720
          %vm2722 = vcmp.eq.s32.totalorder %v1847, %v2712
          %vm2723 = vcmp.eq.s32.totalorder %v1848, %v2712
          %vm2724 = vcmp.eq.s32.totalorder %v1847, %v2715
          %vm2725 = vcmp.eq.s32.totalorder %v1848, %v2715
          %vm2726 = vcmp.eq.s32.totalorder %v1847, %v2718
          %vm2727 = vcmp.eq.s32.totalorder %v1848, %v2718
          %vm2728 = vcmp.eq.s32.totalorder %v1847, %v2721
          %vm2729 = vcmp.eq.s32.totalorder %v1848, %v2721
          %v2730 = vsel %vm2722, %v2622, 0.0
          %v2731 = vsel %vm2723, %v2624, 0.0
          %v2732 = vsel %vm2724, %v2628, 0.0
          %v2733 = vsel %vm2725, %v2630, 0.0
          %v2734 = vsel %vm2726, %v2634, 0.0
          %v2735 = vsel %vm2727, %v2636, 0.0
          %v2736 = vsel %vm2728, %v2640, 0.0
          %v2737 = vsel %vm2729, %v2642, 0.0
          %v2738 = vadd.f32 %v2730, %v2731
          %2739 = vadd.xlane.f32.xlu0 %v2738
          %v2740 = vpop.xlane.xlu0 %2739
          %v2741 = vadd.f32 %v2732, %v2733
          %2742 = vadd.xlane.f32.xlu0 %v2741
          %v2743 = vpop.xlane.xlu0 %2742
          %v2744 = vadd.f32 %v2734, %v2735
          %2745 = vadd.xlane.f32.xlu0 %v2744
          %v2746 = vpop.xlane.xlu0 %2745
          %v2747 = vadd.f32 %v2736, %v2737
          %2748 = vadd.xlane.f32.xlu0 %v2747
          %v2749 = vpop.xlane.xlu0 %2748
          %vm2750 = vcmp.gt.s32.totalorder %v2706, 0
          %vm2751 = vcmp.gt.s32.totalorder %v2707, 0
          %vm2752 = vcmp.gt.s32.totalorder %v2708, 0
          %vm2753 = vcmp.gt.s32.totalorder %v2709, 0
          %v2754 = vsel %vm2750, 1, 0
          %v2755 = vsel %vm2751, 1, 0
          %v2756 = vsel %vm2752, 1, 0
          %v2757 = vsel %vm2753, 1, 0
          %v2758 = vcvt.s32.f32 %v2754
          %v2759 = vcvt.s32.f32 %v2755
          %v2760 = vcvt.s32.f32 %v2756
          %v2761 = vcvt.s32.f32 %v2757
          %v2762 = vsub.f32 %v2740, %v2700
          %v2763 = vsub.f32 %v2743, %v2701
          %v2764 = vsub.f32 %v2746, %v2702
          %v2765 = vsub.f32 %v2749, %v2703
          %v2766 = vmul.f32 %v2762, %v2758
          %v2767 = vmul.f32 %v2763, %v2759
          %v2768 = vmul.f32 %v2764, %v2760
          %v2769 = vmul.f32 %v2765, %v2761
          %v2770 = vadd.f32 %v1871, %v2766
          %v2771 = vadd.f32 %v1872, %v2767
          %v2772 = vadd.f32 %v1873, %v2768
          %v2773 = vadd.f32 %v1874, %v2769
        $region169: #{tpu_custom_call.1} parent=135 // loop_footer
          %s1854 = sadd.s32 1, %s1850
        $region170: #{tpu_custom_call.1} parent=135 // loop_footer_branch
          %1849 = sbr.rel target = $region166
        $region171: #{tpu_custom_call.1} parent=135 // loop_exit
          _
        %vm2774 = vcmask 7168
        %2775 = vst.msk [vmem:[%s852] sm:$0xff] %vm2774, %v1871
        %2776 = vst.msk [vmem:[%s852 + $0x8] sm:$0xff] %vm2774, %v1872
        %2777 = vst.msk [vmem:[%s852 + $0x10] sm:$0xff] %vm2774, %v1873
        %2778 = vst.msk [vmem:[%s852 + $0x18] sm:$0xff] %vm2774, %v1874
        %s2779 = smul.u32 4, %s28
        %p2780 = scmp.lt.s32.totalorder %s2779, 15
        %s2781 = scalar_select %p2780, %s2779, 15
        %s2782 = smul.addr %s2781, 8
        %s2783 = scalar_lea.vmem %s12, %s2782
        // Predicated region
        $region172: #{tpu_custom_call.1} parent=135 // pred_check
          %p2784 = pneg %p313
        $region173: #{tpu_custom_call.1} parent=135 // pred_check_branch
          %2786 = sbr.rel (%p2784) target = $region175
        $region174: #{tpu_custom_call.1} parent=135 // pred_region
          %s2787 = smul.u32 4, %s28
        $region175: #{tpu_custom_call.1} parent=135 // pred_fallthru
          _
      $region136: #{tpu_custom_call.1} parent=5 // pred_fallthru
        _
      %p2788 = scmp.le.s32.totalorder 2, %s23
      // Predicated region
      $region176: #{tpu_custom_call.1} parent=5 // pred_check
        %p2789 = pneg %p2788
      $region177: #{tpu_custom_call.1} parent=5 // pred_check_branch
        %2791 = sbr.rel (%p2789) target = $region179
      $region178: #{tpu_custom_call.1} parent=5 // pred_region
        %s2792 = ssub.s32 %s23, 2
        // Predicated region
        $region180: #{tpu_custom_call.1} parent=178 // pred_check
          %p2793 = pneg %p319
        $region181: #{tpu_custom_call.1} parent=178 // pred_check_branch
          %2795 = sbr.rel (%p2793) target = $region183
        $region182: #{tpu_custom_call.1} parent=178 // pred_region
          %s2796 = smul.u32 4, %s29
          %p2797 = scmp.lt.s32.totalorder %s2796, 15
          %s2798 = scalar_select %p2797, %s2796, 15
          %s2799 = smul.addr %s2798, 8
          %s2800 = scalar_lea.vmem %s12, %s2799
        $region183: #{tpu_custom_call.1} parent=178 // pred_fallthru
          _
      $region179: #{tpu_custom_call.1} parent=5 // pred_fallthru
        _
    $region6: #{tpu_custom_call.1} parent=1 // loop_footer
      %s27 = sadd.s32 1, %s23
    $region7: #{tpu_custom_call.1} parent=1 // loop_footer_branch
      %22 = sbr.rel target = $region3
    $region8: #{tpu_custom_call.1} parent=1 // loop_exit
      _
    %2801 = vsyncpa [#allocation6], 1
    %s2802 = scalar_lea.sflag [#allocation6], 1
    %2803 = vsyncpa %s2802, 1
    %2804 = vsyncpa [#allocation8], 1
    %2805 = vsyncpa [#allocation11], 1

</llo_original>
